<compile_context>
chip_gen: v5e
topology: v5e:2x2
jax: 0.10.0
libtpu: 0.0.40
codegen_flags: <defaults>
</compile_context>

<pallas_src>
import functools

import numpy as np

import jax
import jax.numpy as jnp
from jax.experimental import pallas as pl
from jax.experimental.pallas import tpu as pltpu


def _round_up(x, m):
    return (x + m - 1) // m * m


# --------------------------- weight pre-packing ---------------------------

def _pack_conv_stage(k_oihw, bias, win):
    """Pack a 3x3 'same' conv (+ fused 2x2 maxpool) into 3 banded matrices.

    Activation layout per image: rows = padded height, lanes = ci*Win + w.
    B[dh] maps those lanes to columns s*(Cout*Wo) + co*Wo + wo, where the conv
    output column is w = 2*wo + s (s = column parity -> the two 128-lane
    halves used for the width half of the pool).  Width zero-padding is
    absorbed by dropping out-of-range taps.
    """
    k = np.asarray(k_oihw, np.float32)            # (Cout, Cin, 3, 3)
    b = np.asarray(bias, np.float32)
    cout, cin = k.shape[0], k.shape[1]
    won = win // 2
    lin = cin * win
    cwo = cout * won
    B = np.zeros((3, lin, 2 * cwo), np.float32)
    wo = np.arange(won)
    for dh in range(3):
        for dw in range(3):
            for s in range(2):                    # output-column parity
                w = 2 * wo + s
                wi = w + dw - 1                   # input column (unpadded)
                ok = (wi >= 0) & (wi < win)
                for co in range(cout):
                    for ci in range(cin):
                        B[dh, ci * win + wi[ok],
                          s * cwo + co * won + wo[ok]] += k[co, ci, dh, dw]
    return jnp.asarray(B, jnp.bfloat16), np.repeat(b, won)       # (cwo,) bias


def _pack_head(fc1_w, fc1_b, fc2_w, fc2_b, cout3, ho3, wo3):
    """Permute fc1 so it consumes lanes ordered (pooled-row p, co, wo) -- this
    absorbs PyTorch's NCHW .view() flatten and makes fc1 one K=1024 matmul."""
    fc1_w = np.asarray(fc1_w, np.float32)
    jdim = fc1_w.shape[0]
    w1 = fc1_w.reshape(jdim, cout3, ho3, wo3)
    w1p = np.transpose(w1, (2, 1, 3, 0)).reshape(ho3 * cout3 * wo3, jdim)
    return (jnp.asarray(w1p, jnp.float32),                       # (1024, J)
            jnp.asarray(np.asarray(fc1_b, np.float32).reshape(1, jdim)),
            jnp.asarray(np.asarray(fc2_w, np.float32).T),        # (J, 6)
            jnp.asarray(np.asarray(fc2_b, np.float32).reshape(1, -1)))


def prepare_params(params, win):
    convs, biases = [], []
    w = win
    for name in ("conv1", "conv2", "conv3"):
        wb, brow = _pack_conv_stage(params[name + "_w"], params[name + "_b"], w)
        convs.append(wb)
        biases.append(brow)
        w //= 2
    assert all(br.shape == biases[0].shape for br in biases)     # cwo == 128
    biases = jnp.asarray(np.stack(biases, 0), jnp.float32)       # (3, 128)
    cout3 = params["conv3_w"].shape[0]
    head = _pack_head(params["fc1_w"], params["fc1_b"],
                      params["fc2_w"], params["fc2_b"], cout3, w, w)
    return (convs[0], convs[1], convs[2], biases) + head


# ------------------------------ fused kernel ------------------------------

def _fused_net_kernel(x_ref, wc1_ref, wc2_ref, wc3_ref, bias_ref,
                      w1_ref, b1_ref, w2_ref, b2_ref,
                      o_ref, zh_ref, s2_ref, s3_ref, head_ref,
                      *, bn, r1, h1):
    # Per-image slab layout (rows): 0 = top pad, 1..H = image, H+1 = bottom
    # pad, remaining rows = don't-care filler.  Lanes = c*W + w (= 128/192).
    cwo = bias_ref.shape[1]

    def conv_stage(src_ref, wc_ref, rows_in):
        # 3 contiguous banded matmuls over ALL images/rows (batch folded into
        # M), accumulated into one value, then the width half of the 2x2
        # max-pool as a max over the two 128-lane column-parity halves.
        mz = bn * rows_in - 2
        acc = jnp.dot(src_ref[pl.ds(0, mz), :], wc_ref[0],
                      preferred_element_type=jnp.float32)
        acc = acc + jnp.dot(src_ref[pl.ds(1, mz), :], wc_ref[1],
                            preferred_element_type=jnp.float32)
        acc = acc + jnp.dot(src_ref[pl.ds(2, mz), :], wc_ref[2],
                            preferred_element_type=jnp.float32)
        zh_ref[pl.ds(0, mz), :] = jnp.maximum(acc[:, :cwo], acc[:, cwo:])

    def pool_pack(dst_ref, stage, rows_in, h_in):
        # Height half of the pool via two strided f32 reads of the conv
        # result, bias added ONCE after the max, ReLU, bf16 store into the
        # next stage's padded slab (one offset store), then zero the per-image
        # conv padding rows with tiny single-row stores.
        r_out, h_out = rows_in // 2, h_in // 2
        kst = bn * r_out - 1
        ev = zh_ref[pl.ds(0, kst, 2), :]
        od = zh_ref[pl.ds(1, kst, 2), :]
        pooled = jnp.maximum(
            jnp.maximum(ev, od) + bias_ref[pl.ds(stage, 1), :], 0.0)
        dst_ref[pl.ds(1, kst), :] = pooled.astype(dst_ref.dtype)
        zrow = jnp.zeros((1, cwo), dst_ref.dtype)
        for img in range(bn):
            dst_ref[pl.ds(img * r_out, 1), :] = zrow                 # top pad
            dst_ref[pl.ds(img * r_out + h_out + 1, 1), :] = zrow     # bottom
        return r_out, h_out

    conv_stage(x_ref, wc1_ref, r1)
    r2, h2 = pool_pack(s2_ref, 0, r1, h1)
    conv_stage(s2_ref, wc2_ref, r2)
    r3, h3 = pool_pack(s3_ref, 1, r2, h2)
    conv_stage(s3_ref, wc3_ref, r3)

    # Head: finish the stage-3 pool straight into a lane-dense (bn, 8*128)
    # LHS (no interleaved pad rows) so fc1 is ONE K=1024 matmul.
    b3 = bias_ref[pl.ds(2, 1), :]
    for p in range(h3 // 2):
        ide = pl.ds(2 * p, bn, r3) if bn > 1 else pl.ds(2 * p, 1)
        ido = pl.ds(2 * p + 1, bn, r3) if bn > 1 else pl.ds(2 * p + 1, 1)
        piece = jnp.maximum(
            jnp.maximum(zh_ref[ide, :], zh_ref[ido, :]) + b3, 0.0)
        head_ref[:, pl.ds(p * cwo, cwo)] = piece
    hid = jnp.maximum(
        jnp.dot(head_ref[...], w1_ref[...],
                preferred_element_type=jnp.float32) + b1_ref[...], 0.0)
    logits = jnp.dot(hid, w2_ref[...],
                     preferred_element_type=jnp.float32) + b2_ref[...]
    z = logits - jnp.max(logits, axis=-1, keepdims=True)
    o_ref[...] = z - jnp.log(jnp.sum(jnp.exp(z), axis=-1, keepdims=True))


# ------------------------------ Net forward ------------------------------

def net_forward(x_nchw, packed):
    wc1, wc2, wc3, biases, w1, b1, w2, b2 = packed
    n, cin, hin, win = x_nchw.shape
    cwo = biases.shape[1]
    r1 = _round_up(hin + 8, 8)            # per-image slab rows (8-aligned)

    # Single API-boundary relayout: NCHW -> (N*r1, Cin*W) bf16 slab with the
    # conv zero-pad row above/below each image (trailing rows = filler).
    x = jnp.transpose(x_nchw, (0, 2, 1, 3)).reshape(n, hin, cin * win)
    x = jnp.pad(x, ((0, 0), (1, r1 - hin - 1), (0, 0)))
    x = x.reshape(n * r1, cin * win).astype(jnp.bfloat16)

    g = 2 if (n >= 2 and n % 2 == 0) else 1        # 2-way split for v7x's TCs
    bn = n // g
    ncls = w2.shape[1]

    kern = functools.partial(_fused_net_kernel, bn=bn, r1=r1, h1=hin)
    out = pl.pallas_call(
        kern,
        out_shape=jax.ShapeDtypeStruct((g, bn, ncls), jnp.float32),
        grid=(g,),
        in_specs=[
            pl.BlockSpec((bn * r1, cin * win), lambda i: (i, 0)),
            pl.BlockSpec(wc1.shape, lambda i: (0, 0, 0)),
            pl.BlockSpec(wc2.shape, lambda i: (0, 0, 0)),
            pl.BlockSpec(wc3.shape, lambda i: (0, 0, 0)),
            pl.BlockSpec(biases.shape, lambda i: (0, 0)),
            pl.BlockSpec(w1.shape, lambda i: (0, 0)),
            pl.BlockSpec(b1.shape, lambda i: (0, 0)),
            pl.BlockSpec(w2.shape, lambda i: (0, 0)),
            pl.BlockSpec(b2.shape, lambda i: (0, 0)),
        ],
        out_specs=pl.BlockSpec((None, bn, ncls), lambda i: (i, 0, 0)),
        scratch_shapes=[
            pltpu.VMEM((bn * r1, cwo), jnp.float32),           # conv result
            pltpu.VMEM((bn * (r1 // 2), cwo), jnp.bfloat16),   # stage-2 slab
            pltpu.VMEM((bn * (r1 // 4), cwo), jnp.bfloat16),   # stage-3 slab
            pltpu.VMEM((bn, (hin // 8) * cwo), jnp.float32),   # head LHS
        ],
        compiler_params=pltpu.CompilerParams(
            dimension_semantics=("parallel",)),
    )(x, wc1, wc2, wc3, biases, w1, b1, w2, b2)
    return out.reshape(n, ncls)


# ------------------------------ reference & params ------------------------------

def init_params(key, n_ch):
    ks = jax.random.split(key, 10)
    s = 0.05
    return {
        "conv1_w": s * jax.random.normal(ks[0], (n_ch, 3, 3, 3), jnp.float32),
        "conv1_b": s * jax.random.normal(ks[1], (n_ch,), jnp.float32),
        "conv2_w": s * jax.random.normal(ks[2], (2 * n_ch, n_ch, 3, 3), jnp.float32),
        "conv2_b": s * jax.random.normal(ks[3], (2 * n_ch,), jnp.float32),
        "conv3_w": s * jax.random.normal(ks[4], (4 * n_ch, 2 * n_ch, 3, 3), jnp.float32),
        "conv3_b": s * jax.random.normal(ks[5], (4 * n_ch,), jnp.float32),
        "fc1_w": s * jax.random.normal(ks[6], (4 * n_ch, 4 * n_ch * 8 * 8), jnp.float32),
        "fc1_b": s * jax.random.normal(ks[7], (4 * n_ch,), jnp.float32),
        "fc2_w": s * jax.random.normal(ks[8], (6, 4 * n_ch), jnp.float32),
        "fc2_b": s * jax.random.normal(ks[9], (6,), jnp.float32),
    }


def net_reference(x, params):
    """Pure-JAX f32 reference of the PyTorch forward (verification only)."""
    def conv(x, w, b):
        y = jax.lax.conv_general_dilated(
            x, w, window_strides=(1, 1), padding=((1, 1), (1, 1)),
            dimension_numbers=("NCHW", "OIHW", "NCHW"))
        return y + b[None, :, None, None]

    def pool_relu(x):
        y = jax.lax.reduce_window(x, -jnp.inf, jax.lax.max,
                                  (1, 1, 2, 2), (1, 1, 2, 2), "VALID")
        return jnp.maximum(y, 0.0)

    x = pool_relu(conv(x, params["conv1_w"], params["conv1_b"]))
    x = pool_relu(conv(x, params["conv2_w"], params["conv2_b"]))
    x = pool_relu(conv(x, params["conv3_w"], params["conv3_b"]))
    x = x.reshape(x.shape[0], -1)
    x = jnp.maximum(x @ params["fc1_w"].T + params["fc1_b"], 0.0)
    logits = x @ params["fc2_w"].T + params["fc2_b"]
    return jax.nn.log_softmax(logits, axis=-1)


# ------------------------------ Main ------------------------------

if __name__ == "__main__":
    n_ch = 4
    key = jax.random.PRNGKey(0)
    k_x, k_p = jax.random.split(key)
    # Spatial 64x64 so three maxpool(2) stages give the 8x8 fc1 expects.
    x = jax.random.normal(k_x, (2, 3, 64, 64), jnp.float32)
    params = init_params(k_p, n_ch)
    packed = prepare_params(params, win=64)          # packed once, outside jit

    fwd = jax.jit(net_forward)
    out = jax.block_until_ready(fwd(x, packed))

    assert out.shape == (2, 6), out.shape
    # log_softmax rows should exponentiate-sum to ~1
    assert jnp.allclose(jnp.sum(jnp.exp(out), axis=1), 1.0, atol=1e-4)
    # match the pure-JAX f32 reference (conv matmuls run in bf16 -> loose tol)
    ref = net_reference(x, params)
    assert jnp.allclose(out, ref, atol=3e-2), float(jnp.max(jnp.abs(out - ref)))
    print("KERNEL_OK")
</pallas_src>

<mosaic_0001>
module attributes {stable_mosaic.version = 11 : i64} {
  func.func @_fused_net_kernel(%arg0: i32, %arg1: memref<72x192xbf16, #tpu.memory_space<vmem>>, %arg2: memref<3x192x256xbf16, #tpu.memory_space<vmem>>, %arg3: memref<3x128x256xbf16, #tpu.memory_space<vmem>>, %arg4: memref<3x128x256xbf16, #tpu.memory_space<vmem>>, %arg5: memref<3x128xf32, #tpu.memory_space<vmem>>, %arg6: memref<1024x16xf32, #tpu.memory_space<vmem>>, %arg7: memref<1x16xf32, #tpu.memory_space<vmem>>, %arg8: memref<16x6xf32, #tpu.memory_space<vmem>>, %arg9: memref<1x6xf32, #tpu.memory_space<vmem>>, %arg10: memref<1x1x6xf32, #tpu.memory_space<vmem>>, %arg11: memref<72x128xf32, #tpu.memory_space<vmem>>, %arg12: memref<36x128xbf16, #tpu.memory_space<vmem>>, %arg13: memref<18x128xbf16, #tpu.memory_space<vmem>>, %arg14: memref<1x1024xf32, #tpu.memory_space<vmem>>) attributes {dimension_semantics = [#tpu.dimension_semantics<parallel>], iteration_bounds = array<i64: 2>, scalar_prefetch = 0 : i64, scratch_operands = 4 : i64, tpu.core_type = #tpu.core_type<tc>, window_params = [{transform_indices = @transform_0, window_bounds = array<i64: 72, 192>}, {pipeline_mode = #tpu.pipeline_mode<synchronous>, transform_indices = @transform_1, window_bounds = array<i64: 3, 192, 256>}, {pipeline_mode = #tpu.pipeline_mode<synchronous>, transform_indices = @transform_2, window_bounds = array<i64: 3, 128, 256>}, {pipeline_mode = #tpu.pipeline_mode<synchronous>, transform_indices = @transform_3, window_bounds = array<i64: 3, 128, 256>}, {pipeline_mode = #tpu.pipeline_mode<synchronous>, transform_indices = @transform_4, window_bounds = array<i64: 3, 128>}, {pipeline_mode = #tpu.pipeline_mode<synchronous>, transform_indices = @transform_5, window_bounds = array<i64: 1024, 16>}, {pipeline_mode = #tpu.pipeline_mode<synchronous>, transform_indices = @transform_6, window_bounds = array<i64: 1, 16>}, {pipeline_mode = #tpu.pipeline_mode<synchronous>, transform_indices = @transform_7, window_bounds = array<i64: 16, 6>}, {pipeline_mode = #tpu.pipeline_mode<synchronous>, transform_indices = @transform_8, window_bounds = array<i64: 1, 6>}, {transform_indices = @transform_9, window_bounds = array<i64: 1, 1, 6>}]} {
    %c0 = arith.constant 0 : index
    %c0_0 = arith.constant 0 : index
    %0 = vector.load %arg1[%c0, %c0_0] : memref<72x192xbf16, #tpu.memory_space<vmem>>, vector<70x192xbf16>
    %c0_1 = arith.constant 0 : index
    %c0_2 = arith.constant 0 : index
    %c0_3 = arith.constant 0 : index
    %1 = vector.load %arg2[%c0_1, %c0_2, %c0_3] : memref<3x192x256xbf16, #tpu.memory_space<vmem>>, vector<1x192x256xbf16>
    %2 = vector.shape_cast %1 : vector<1x192x256xbf16> to vector<192x256xbf16>
    %cst = arith.constant dense<0.000000e+00> : vector<70x256xf32>
    %3 = tpu.matmul %0, %2, %cst {dimension_numbers = #tpu.dot_dimension_numbers<[1], [0], [0], [1], [0, 0, 1, 1], [], []>} : vector<70x192xbf16>, vector<192x256xbf16>, vector<70x256xf32> -> vector<70x256xf32>
    %c1 = arith.constant 1 : index
    %c0_4 = arith.constant 0 : index
    %4 = vector.load %arg1[%c1, %c0_4] : memref<72x192xbf16, #tpu.memory_space<vmem>>, vector<70x192xbf16>
    %c1_5 = arith.constant 1 : index
    %c0_6 = arith.constant 0 : index
    %c0_7 = arith.constant 0 : index
    %5 = vector.load %arg2[%c1_5, %c0_6, %c0_7] : memref<3x192x256xbf16, #tpu.memory_space<vmem>>, vector<1x192x256xbf16>
    %6 = vector.shape_cast %5 : vector<1x192x256xbf16> to vector<192x256xbf16>
    %cst_8 = arith.constant dense<0.000000e+00> : vector<70x256xf32>
    %7 = tpu.matmul %4, %6, %cst_8 {dimension_numbers = #tpu.dot_dimension_numbers<[1], [0], [0], [1], [0, 0, 1, 1], [], []>} : vector<70x192xbf16>, vector<192x256xbf16>, vector<70x256xf32> -> vector<70x256xf32>
    %8 = arith.addf %3, %7 : vector<70x256xf32>
    %c2 = arith.constant 2 : index
    %c0_9 = arith.constant 0 : index
    %9 = vector.load %arg1[%c2, %c0_9] : memref<72x192xbf16, #tpu.memory_space<vmem>>, vector<70x192xbf16>
    %c2_10 = arith.constant 2 : index
    %c0_11 = arith.constant 0 : index
    %c0_12 = arith.constant 0 : index
    %10 = vector.load %arg2[%c2_10, %c0_11, %c0_12] : memref<3x192x256xbf16, #tpu.memory_space<vmem>>, vector<1x192x256xbf16>
    %11 = vector.shape_cast %10 : vector<1x192x256xbf16> to vector<192x256xbf16>
    %cst_13 = arith.constant dense<0.000000e+00> : vector<70x256xf32>
    %12 = tpu.matmul %9, %11, %cst_13 {dimension_numbers = #tpu.dot_dimension_numbers<[1], [0], [0], [1], [0, 0, 1, 1], [], []>} : vector<70x192xbf16>, vector<192x256xbf16>, vector<70x256xf32> -> vector<70x256xf32>
    %13 = arith.addf %8, %12 : vector<70x256xf32>
    %14 = vector.extract_strided_slice %13 {offsets = [0, 0], sizes = [70, 128], strides = [1, 1]} : vector<70x256xf32> to vector<70x128xf32>
    %15 = vector.extract_strided_slice %13 {offsets = [0, 128], sizes = [70, 128], strides = [1, 1]} : vector<70x256xf32> to vector<70x128xf32>
    %16 = arith.maximumf %14, %15 : vector<70x128xf32>
    %c0_14 = arith.constant 0 : index
    %c0_15 = arith.constant 0 : index
    %17 = vector.load %arg11[%c0_14, %c0_15] : memref<72x128xf32, #tpu.memory_space<vmem>>, vector<70x128xf32>
    tpu.vector_store %arg11[%c0_14, %c0_15], %16 {strides = array<i32>} : memref<72x128xf32, #tpu.memory_space<vmem>>, vector<70x128xf32>,
    %c0_16 = arith.constant 0 : index
    %c0_17 = arith.constant 0 : index
    %18 = tpu.strided_load %arg11[%c0_16, %c0_17] {strides = array<i32: 2, 1>} : memref<72x128xf32, #tpu.memory_space<vmem>>, vector<35x128xf32>
    %c1_18 = arith.constant 1 : index
    %c0_19 = arith.constant 0 : index
    %19 = tpu.strided_load %arg11[%c1_18, %c0_19] {strides = array<i32: 2, 1>} : memref<72x128xf32, #tpu.memory_space<vmem>>, vector<35x128xf32>
    %20 = arith.maximumf %18, %19 : vector<35x128xf32>
    %c0_20 = arith.constant 0 : index
    %c0_21 = arith.constant 0 : index
    %21 = vector.load %arg5[%c0_20, %c0_21] : memref<3x128xf32, #tpu.memory_space<vmem>>, vector<1x128xf32>
    %22 = vector.broadcast %21 : vector<1x128xf32> to vector<35x128xf32>
    %23 = arith.addf %20, %22 : vector<35x128xf32>
    %cst_22 = arith.constant 0.000000e+00 : f32
    %24 = vector.broadcast %cst_22 : f32 to vector<35x128xf32>
    %25 = arith.maximumf %23, %24 : vector<35x128xf32>
    %26 = arith.truncf %25 : vector<35x128xf32> to vector<35x128xbf16>
    %c1_23 = arith.constant 1 : index
    %c0_24 = arith.constant 0 : index
    %27 = vector.load %arg12[%c1_23, %c0_24] : memref<36x128xbf16, #tpu.memory_space<vmem>>, vector<35x128xbf16>
    tpu.vector_store %arg12[%c1_23, %c0_24], %26 {strides = array<i32>} : memref<36x128xbf16, #tpu.memory_space<vmem>>, vector<35x128xbf16>,
    %cst_25 = arith.constant 0.000000e+00 : bf16
    %28 = vector.broadcast %cst_25 : bf16 to vector<1x128xbf16>
    %c0_26 = arith.constant 0 : index
    %c0_27 = arith.constant 0 : index
    %29 = vector.load %arg12[%c0_26, %c0_27] : memref<36x128xbf16, #tpu.memory_space<vmem>>, vector<1x128xbf16>
    tpu.vector_store %arg12[%c0_26, %c0_27], %28 {strides = array<i32>} : memref<36x128xbf16, #tpu.memory_space<vmem>>, vector<1x128xbf16>,
    %c33 = arith.constant 33 : index
    %c0_28 = arith.constant 0 : index
    %30 = vector.load %arg12[%c33, %c0_28] : memref<36x128xbf16, #tpu.memory_space<vmem>>, vector<1x128xbf16>
    tpu.vector_store %arg12[%c33, %c0_28], %28 {strides = array<i32>} : memref<36x128xbf16, #tpu.memory_space<vmem>>, vector<1x128xbf16>,
    %c0_29 = arith.constant 0 : index
    %c0_30 = arith.constant 0 : index
    %31 = vector.load %arg12[%c0_29, %c0_30] : memref<36x128xbf16, #tpu.memory_space<vmem>>, vector<34x128xbf16>
    %c0_31 = arith.constant 0 : index
    %c0_32 = arith.constant 0 : index
    %c0_33 = arith.constant 0 : index
    %32 = vector.load %arg3[%c0_31, %c0_32, %c0_33] : memref<3x128x256xbf16, #tpu.memory_space<vmem>>, vector<1x128x256xbf16>
    %33 = vector.shape_cast %32 : vector<1x128x256xbf16> to vector<128x256xbf16>
    %cst_34 = arith.constant dense<0.000000e+00> : vector<34x256xf32>
    %34 = tpu.matmul %31, %33, %cst_34 {dimension_numbers = #tpu.dot_dimension_numbers<[1], [0], [0], [1], [0, 0, 1, 1], [], []>} : vector<34x128xbf16>, vector<128x256xbf16>, vector<34x256xf32> -> vector<34x256xf32>
    %c1_35 = arith.constant 1 : index
    %c0_36 = arith.constant 0 : index
    %35 = vector.load %arg12[%c1_35, %c0_36] : memref<36x128xbf16, #tpu.memory_space<vmem>>, vector<34x128xbf16>
    %c1_37 = arith.constant 1 : index
    %c0_38 = arith.constant 0 : index
    %c0_39 = arith.constant 0 : index
    %36 = vector.load %arg3[%c1_37, %c0_38, %c0_39] : memref<3x128x256xbf16, #tpu.memory_space<vmem>>, vector<1x128x256xbf16>
    %37 = vector.shape_cast %36 : vector<1x128x256xbf16> to vector<128x256xbf16>
    %cst_40 = arith.constant dense<0.000000e+00> : vector<34x256xf32>
    %38 = tpu.matmul %35, %37, %cst_40 {dimension_numbers = #tpu.dot_dimension_numbers<[1], [0], [0], [1], [0, 0, 1, 1], [], []>} : vector<34x128xbf16>, vector<128x256xbf16>, vector<34x256xf32> -> vector<34x256xf32>
    %39 = arith.addf %34, %38 : vector<34x256xf32>
    %c2_41 = arith.constant 2 : index
    %c0_42 = arith.constant 0 : index
    %40 = vector.load %arg12[%c2_41, %c0_42] : memref<36x128xbf16, #tpu.memory_space<vmem>>, vector<34x128xbf16>
    %c2_43 = arith.constant 2 : index
    %c0_44 = arith.constant 0 : index
    %c0_45 = arith.constant 0 : index
    %41 = vector.load %arg3[%c2_43, %c0_44, %c0_45] : memref<3x128x256xbf16, #tpu.memory_space<vmem>>, vector<1x128x256xbf16>
    %42 = vector.shape_cast %41 : vector<1x128x256xbf16> to vector<128x256xbf16>
    %cst_46 = arith.constant dense<0.000000e+00> : vector<34x256xf32>
    %43 = tpu.matmul %40, %42, %cst_46 {dimension_numbers = #tpu.dot_dimension_numbers<[1], [0], [0], [1], [0, 0, 1, 1], [], []>} : vector<34x128xbf16>, vector<128x256xbf16>, vector<34x256xf32> -> vector<34x256xf32>
    %44 = arith.addf %39, %43 : vector<34x256xf32>
    %45 = vector.extract_strided_slice %44 {offsets = [0, 0], sizes = [34, 128], strides = [1, 1]} : vector<34x256xf32> to vector<34x128xf32>
    %46 = vector.extract_strided_slice %44 {offsets = [0, 128], sizes = [34, 128], strides = [1, 1]} : vector<34x256xf32> to vector<34x128xf32>
    %47 = arith.maximumf %45, %46 : vector<34x128xf32>
    %c0_47 = arith.constant 0 : index
    %c0_48 = arith.constant 0 : index
    %48 = vector.load %arg11[%c0_47, %c0_48] : memref<72x128xf32, #tpu.memory_space<vmem>>, vector<34x128xf32>
    tpu.vector_store %arg11[%c0_47, %c0_48], %47 {strides = array<i32>} : memref<72x128xf32, #tpu.memory_space<vmem>>, vector<34x128xf32>,
    %c0_49 = arith.constant 0 : index
    %c0_50 = arith.constant 0 : index
    %49 = tpu.strided_load %arg11[%c0_49, %c0_50] {strides = array<i32: 2, 1>} : memref<72x128xf32, #tpu.memory_space<vmem>>, vector<17x128xf32>
    %c1_51 = arith.constant 1 : index
    %c0_52 = arith.constant 0 : index
    %50 = tpu.strided_load %arg11[%c1_51, %c0_52] {strides = array<i32: 2, 1>} : memref<72x128xf32, #tpu.memory_space<vmem>>, vector<17x128xf32>
    %51 = arith.maximumf %49, %50 : vector<17x128xf32>
    %c1_53 = arith.constant 1 : index
    %c0_54 = arith.constant 0 : index
    %52 = vector.load %arg5[%c1_53, %c0_54] : memref<3x128xf32, #tpu.memory_space<vmem>>, vector<1x128xf32>
    %53 = vector.broadcast %52 : vector<1x128xf32> to vector<17x128xf32>
    %54 = arith.addf %51, %53 : vector<17x128xf32>
    %cst_55 = arith.constant 0.000000e+00 : f32
    %55 = vector.broadcast %cst_55 : f32 to vector<17x128xf32>
    %56 = arith.maximumf %54, %55 : vector<17x128xf32>
    %57 = arith.truncf %56 : vector<17x128xf32> to vector<17x128xbf16>
    %c1_56 = arith.constant 1 : index
    %c0_57 = arith.constant 0 : index
    %58 = vector.load %arg13[%c1_56, %c0_57] : memref<18x128xbf16, #tpu.memory_space<vmem>>, vector<17x128xbf16>
    tpu.vector_store %arg13[%c1_56, %c0_57], %57 {strides = array<i32>} : memref<18x128xbf16, #tpu.memory_space<vmem>>, vector<17x128xbf16>,
    %cst_58 = arith.constant 0.000000e+00 : bf16
    %59 = vector.broadcast %cst_58 : bf16 to vector<1x128xbf16>
    %c0_59 = arith.constant 0 : index
    %c0_60 = arith.constant 0 : index
    %60 = vector.load %arg13[%c0_59, %c0_60] : memref<18x128xbf16, #tpu.memory_space<vmem>>, vector<1x128xbf16>
    tpu.vector_store %arg13[%c0_59, %c0_60], %59 {strides = array<i32>} : memref<18x128xbf16, #tpu.memory_space<vmem>>, vector<1x128xbf16>,
    %c17 = arith.constant 17 : index
    %c0_61 = arith.constant 0 : index
    %61 = vector.load %arg13[%c17, %c0_61] : memref<18x128xbf16, #tpu.memory_space<vmem>>, vector<1x128xbf16>
    tpu.vector_store %arg13[%c17, %c0_61], %59 {strides = array<i32>} : memref<18x128xbf16, #tpu.memory_space<vmem>>, vector<1x128xbf16>,
    %c0_62 = arith.constant 0 : index
    %c0_63 = arith.constant 0 : index
    %62 = vector.load %arg13[%c0_62, %c0_63] : memref<18x128xbf16, #tpu.memory_space<vmem>>, vector<16x128xbf16>
    %c0_64 = arith.constant 0 : index
    %c0_65 = arith.constant 0 : index
    %c0_66 = arith.constant 0 : index
    %63 = vector.load %arg4[%c0_64, %c0_65, %c0_66] : memref<3x128x256xbf16, #tpu.memory_space<vmem>>, vector<1x128x256xbf16>
    %64 = vector.shape_cast %63 : vector<1x128x256xbf16> to vector<128x256xbf16>
    %cst_67 = arith.constant dense<0.000000e+00> : vector<16x256xf32>
    %65 = tpu.matmul %62, %64, %cst_67 {dimension_numbers = #tpu.dot_dimension_numbers<[1], [0], [0], [1], [0, 0, 1, 1], [], []>} : vector<16x128xbf16>, vector<128x256xbf16>, vector<16x256xf32> -> vector<16x256xf32>
    %c1_68 = arith.constant 1 : index
    %c0_69 = arith.constant 0 : index
    %66 = vector.load %arg13[%c1_68, %c0_69] : memref<18x128xbf16, #tpu.memory_space<vmem>>, vector<16x128xbf16>
    %c1_70 = arith.constant 1 : index
    %c0_71 = arith.constant 0 : index
    %c0_72 = arith.constant 0 : index
    %67 = vector.load %arg4[%c1_70, %c0_71, %c0_72] : memref<3x128x256xbf16, #tpu.memory_space<vmem>>, vector<1x128x256xbf16>
    %68 = vector.shape_cast %67 : vector<1x128x256xbf16> to vector<128x256xbf16>
    %cst_73 = arith.constant dense<0.000000e+00> : vector<16x256xf32>
    %69 = tpu.matmul %66, %68, %cst_73 {dimension_numbers = #tpu.dot_dimension_numbers<[1], [0], [0], [1], [0, 0, 1, 1], [], []>} : vector<16x128xbf16>, vector<128x256xbf16>, vector<16x256xf32> -> vector<16x256xf32>
    %70 = arith.addf %65, %69 : vector<16x256xf32>
    %c2_74 = arith.constant 2 : index
    %c0_75 = arith.constant 0 : index
    %71 = vector.load %arg13[%c2_74, %c0_75] : memref<18x128xbf16, #tpu.memory_space<vmem>>, vector<16x128xbf16>
    %c2_76 = arith.constant 2 : index
    %c0_77 = arith.constant 0 : index
    %c0_78 = arith.constant 0 : index
    %72 = vector.load %arg4[%c2_76, %c0_77, %c0_78] : memref<3x128x256xbf16, #tpu.memory_space<vmem>>, vector<1x128x256xbf16>
    %73 = vector.shape_cast %72 : vector<1x128x256xbf16> to vector<128x256xbf16>
    %cst_79 = arith.constant dense<0.000000e+00> : vector<16x256xf32>
    %74 = tpu.matmul %71, %73, %cst_79 {dimension_numbers = #tpu.dot_dimension_numbers<[1], [0], [0], [1], [0, 0, 1, 1], [], []>} : vector<16x128xbf16>, vector<128x256xbf16>, vector<16x256xf32> -> vector<16x256xf32>
    %75 = arith.addf %70, %74 : vector<16x256xf32>
    %76 = vector.extract_strided_slice %75 {offsets = [0, 0], sizes = [16, 128], strides = [1, 1]} : vector<16x256xf32> to vector<16x128xf32>
    %77 = vector.extract_strided_slice %75 {offsets = [0, 128], sizes = [16, 128], strides = [1, 1]} : vector<16x256xf32> to vector<16x128xf32>
    %78 = arith.maximumf %76, %77 : vector<16x128xf32>
    %c0_80 = arith.constant 0 : index
    %c0_81 = arith.constant 0 : index
    %79 = vector.load %arg11[%c0_80, %c0_81] : memref<72x128xf32, #tpu.memory_space<vmem>>, vector<16x128xf32>
    tpu.vector_store %arg11[%c0_80, %c0_81], %78 {strides = array<i32>} : memref<72x128xf32, #tpu.memory_space<vmem>>, vector<16x128xf32>,
    %c2_82 = arith.constant 2 : index
    %c0_83 = arith.constant 0 : index
    %80 = vector.load %arg5[%c2_82, %c0_83] : memref<3x128xf32, #tpu.memory_space<vmem>>, vector<1x128xf32>
    %c0_84 = arith.constant 0 : index
    %c0_85 = arith.constant 0 : index
    %81 = vector.load %arg11[%c0_84, %c0_85] : memref<72x128xf32, #tpu.memory_space<vmem>>, vector<1x128xf32>
    %c1_86 = arith.constant 1 : index
    %c0_87 = arith.constant 0 : index
    %82 = vector.load %arg11[%c1_86, %c0_87] : memref<72x128xf32, #tpu.memory_space<vmem>>, vector<1x128xf32>
    %83 = arith.maximumf %81, %82 : vector<1x128xf32>
    %84 = arith.addf %83, %80 : vector<1x128xf32>
    %cst_88 = arith.constant 0.000000e+00 : f32
    %85 = vector.broadcast %cst_88 : f32 to vector<1x128xf32>
    %86 = arith.maximumf %84, %85 : vector<1x128xf32>
    %c0_89 = arith.constant 0 : index
    %c0_90 = arith.constant 0 : index
    %87 = vector.load %arg14[%c0_89, %c0_90] : memref<1x1024xf32, #tpu.memory_space<vmem>>, vector<1x128xf32>
    tpu.vector_store %arg14[%c0_89, %c0_90], %86 {strides = array<i32>} : memref<1x1024xf32, #tpu.memory_space<vmem>>, vector<1x128xf32>,
    %c2_91 = arith.constant 2 : index
    %c0_92 = arith.constant 0 : index
    %88 = vector.load %arg11[%c2_91, %c0_92] : memref<72x128xf32, #tpu.memory_space<vmem>>, vector<1x128xf32>
    %c3 = arith.constant 3 : index
    %c0_93 = arith.constant 0 : index
    %89 = vector.load %arg11[%c3, %c0_93] : memref<72x128xf32, #tpu.memory_space<vmem>>, vector<1x128xf32>
    %90 = arith.maximumf %88, %89 : vector<1x128xf32>
    %91 = arith.addf %90, %80 : vector<1x128xf32>
    %cst_94 = arith.constant 0.000000e+00 : f32
    %92 = vector.broadcast %cst_94 : f32 to vector<1x128xf32>
    %93 = arith.maximumf %91, %92 : vector<1x128xf32>
    %c0_95 = arith.constant 0 : index
    %c128 = arith.constant 128 : index
    %94 = vector.load %arg14[%c0_95, %c128] : memref<1x1024xf32, #tpu.memory_space<vmem>>, vector<1x128xf32>
    tpu.vector_store %arg14[%c0_95, %c128], %93 {strides = array<i32>} : memref<1x1024xf32, #tpu.memory_space<vmem>>, vector<1x128xf32>,
    %c4 = arith.constant 4 : index
    %c0_96 = arith.constant 0 : index
    %95 = vector.load %arg11[%c4, %c0_96] : memref<72x128xf32, #tpu.memory_space<vmem>>, vector<1x128xf32>
    %c5 = arith.constant 5 : index
    %c0_97 = arith.constant 0 : index
    %96 = vector.load %arg11[%c5, %c0_97] : memref<72x128xf32, #tpu.memory_space<vmem>>, vector<1x128xf32>
    %97 = arith.maximumf %95, %96 : vector<1x128xf32>
    %98 = arith.addf %97, %80 : vector<1x128xf32>
    %cst_98 = arith.constant 0.000000e+00 : f32
    %99 = vector.broadcast %cst_98 : f32 to vector<1x128xf32>
    %100 = arith.maximumf %98, %99 : vector<1x128xf32>
    %c0_99 = arith.constant 0 : index
    %c256 = arith.constant 256 : index
    %101 = vector.load %arg14[%c0_99, %c256] : memref<1x1024xf32, #tpu.memory_space<vmem>>, vector<1x128xf32>
    tpu.vector_store %arg14[%c0_99, %c256], %100 {strides = array<i32>} : memref<1x1024xf32, #tpu.memory_space<vmem>>, vector<1x128xf32>,
    %c6 = arith.constant 6 : index
    %c0_100 = arith.constant 0 : index
    %102 = vector.load %arg11[%c6, %c0_100] : memref<72x128xf32, #tpu.memory_space<vmem>>, vector<1x128xf32>
    %c7 = arith.constant 7 : index
    %c0_101 = arith.constant 0 : index
    %103 = vector.load %arg11[%c7, %c0_101] : memref<72x128xf32, #tpu.memory_space<vmem>>, vector<1x128xf32>
    %104 = arith.maximumf %102, %103 : vector<1x128xf32>
    %105 = arith.addf %104, %80 : vector<1x128xf32>
    %cst_102 = arith.constant 0.000000e+00 : f32
    %106 = vector.broadcast %cst_102 : f32 to vector<1x128xf32>
    %107 = arith.maximumf %105, %106 : vector<1x128xf32>
    %c0_103 = arith.constant 0 : index
    %c384 = arith.constant 384 : index
    %108 = vector.load %arg14[%c0_103, %c384] : memref<1x1024xf32, #tpu.memory_space<vmem>>, vector<1x128xf32>
    tpu.vector_store %arg14[%c0_103, %c384], %107 {strides = array<i32>} : memref<1x1024xf32, #tpu.memory_space<vmem>>, vector<1x128xf32>,
    %c8 = arith.constant 8 : index
    %c0_104 = arith.constant 0 : index
    %109 = vector.load %arg11[%c8, %c0_104] : memref<72x128xf32, #tpu.memory_space<vmem>>, vector<1x128xf32>
    %c9 = arith.constant 9 : index
    %c0_105 = arith.constant 0 : index
    %110 = vector.load %arg11[%c9, %c0_105] : memref<72x128xf32, #tpu.memory_space<vmem>>, vector<1x128xf32>
    %111 = arith.maximumf %109, %110 : vector<1x128xf32>
    %112 = arith.addf %111, %80 : vector<1x128xf32>
    %cst_106 = arith.constant 0.000000e+00 : f32
    %113 = vector.broadcast %cst_106 : f32 to vector<1x128xf32>
    %114 = arith.maximumf %112, %113 : vector<1x128xf32>
    %c0_107 = arith.constant 0 : index
    %c512 = arith.constant 512 : index
    %115 = vector.load %arg14[%c0_107, %c512] : memref<1x1024xf32, #tpu.memory_space<vmem>>, vector<1x128xf32>
    tpu.vector_store %arg14[%c0_107, %c512], %114 {strides = array<i32>} : memref<1x1024xf32, #tpu.memory_space<vmem>>, vector<1x128xf32>,
    %c10 = arith.constant 10 : index
    %c0_108 = arith.constant 0 : index
    %116 = vector.load %arg11[%c10, %c0_108] : memref<72x128xf32, #tpu.memory_space<vmem>>, vector<1x128xf32>
    %c11 = arith.constant 11 : index
    %c0_109 = arith.constant 0 : index
    %117 = vector.load %arg11[%c11, %c0_109] : memref<72x128xf32, #tpu.memory_space<vmem>>, vector<1x128xf32>
    %118 = arith.maximumf %116, %117 : vector<1x128xf32>
    %119 = arith.addf %118, %80 : vector<1x128xf32>
    %cst_110 = arith.constant 0.000000e+00 : f32
    %120 = vector.broadcast %cst_110 : f32 to vector<1x128xf32>
    %121 = arith.maximumf %119, %120 : vector<1x128xf32>
    %c0_111 = arith.constant 0 : index
    %c640 = arith.constant 640 : index
    %122 = vector.load %arg14[%c0_111, %c640] : memref<1x1024xf32, #tpu.memory_space<vmem>>, vector<1x128xf32>
    tpu.vector_store %arg14[%c0_111, %c640], %121 {strides = array<i32>} : memref<1x1024xf32, #tpu.memory_space<vmem>>, vector<1x128xf32>,
    %c12 = arith.constant 12 : index
    %c0_112 = arith.constant 0 : index
    %123 = vector.load %arg11[%c12, %c0_112] : memref<72x128xf32, #tpu.memory_space<vmem>>, vector<1x128xf32>
    %c13 = arith.constant 13 : index
    %c0_113 = arith.constant 0 : index
    %124 = vector.load %arg11[%c13, %c0_113] : memref<72x128xf32, #tpu.memory_space<vmem>>, vector<1x128xf32>
    %125 = arith.maximumf %123, %124 : vector<1x128xf32>
    %126 = arith.addf %125, %80 : vector<1x128xf32>
    %cst_114 = arith.constant 0.000000e+00 : f32
    %127 = vector.broadcast %cst_114 : f32 to vector<1x128xf32>
    %128 = arith.maximumf %126, %127 : vector<1x128xf32>
    %c0_115 = arith.constant 0 : index
    %c768 = arith.constant 768 : index
    %129 = vector.load %arg14[%c0_115, %c768] : memref<1x1024xf32, #tpu.memory_space<vmem>>, vector<1x128xf32>
    tpu.vector_store %arg14[%c0_115, %c768], %128 {strides = array<i32>} : memref<1x1024xf32, #tpu.memory_space<vmem>>, vector<1x128xf32>,
    %c14 = arith.constant 14 : index
    %c0_116 = arith.constant 0 : index
    %130 = vector.load %arg11[%c14, %c0_116] : memref<72x128xf32, #tpu.memory_space<vmem>>, vector<1x128xf32>
    %c15 = arith.constant 15 : index
    %c0_117 = arith.constant 0 : index
    %131 = vector.load %arg11[%c15, %c0_117] : memref<72x128xf32, #tpu.memory_space<vmem>>, vector<1x128xf32>
    %132 = arith.maximumf %130, %131 : vector<1x128xf32>
    %133 = arith.addf %132, %80 : vector<1x128xf32>
    %cst_118 = arith.constant 0.000000e+00 : f32
    %134 = vector.broadcast %cst_118 : f32 to vector<1x128xf32>
    %135 = arith.maximumf %133, %134 : vector<1x128xf32>
    %c0_119 = arith.constant 0 : index
    %c896 = arith.constant 896 : index
    %136 = vector.load %arg14[%c0_119, %c896] : memref<1x1024xf32, #tpu.memory_space<vmem>>, vector<1x128xf32>
    tpu.vector_store %arg14[%c0_119, %c896], %135 {strides = array<i32>} : memref<1x1024xf32, #tpu.memory_space<vmem>>, vector<1x128xf32>,
    %c0_120 = arith.constant 0 : index
    %c0_121 = arith.constant 0 : index
    %137 = vector.load %arg14[%c0_120, %c0_121] : memref<1x1024xf32, #tpu.memory_space<vmem>>, vector<1x1024xf32>
    %c0_122 = arith.constant 0 : index
    %c0_123 = arith.constant 0 : index
    %138 = vector.load %arg6[%c0_122, %c0_123] : memref<1024x16xf32, #tpu.memory_space<vmem>>, vector<1024x16xf32>
    %cst_124 = arith.constant dense<0.000000e+00> : vector<1x16xf32>
    %139 = tpu.matmul %137, %138, %cst_124 {dimension_numbers = #tpu.dot_dimension_numbers<[1], [0], [0], [1], [0, 0, 1, 1], [], []>} : vector<1x1024xf32>, vector<1024x16xf32>, vector<1x16xf32> -> vector<1x16xf32>
    %c0_125 = arith.constant 0 : index
    %c0_126 = arith.constant 0 : index
    %140 = vector.load %arg7[%c0_125, %c0_126] : memref<1x16xf32, #tpu.memory_space<vmem>>, vector<1x16xf32>
    %141 = arith.addf %139, %140 : vector<1x16xf32>
    %cst_127 = arith.constant 0.000000e+00 : f32
    %142 = vector.broadcast %cst_127 : f32 to vector<1x16xf32>
    %143 = arith.maximumf %141, %142 : vector<1x16xf32>
    %c0_128 = arith.constant 0 : index
    %c0_129 = arith.constant 0 : index
    %144 = vector.load %arg8[%c0_128, %c0_129] : memref<16x6xf32, #tpu.memory_space<vmem>>, vector<16x6xf32>
    %cst_130 = arith.constant dense<0.000000e+00> : vector<1x6xf32>
    %145 = tpu.matmul %143, %144, %cst_130 {dimension_numbers = #tpu.dot_dimension_numbers<[1], [0], [0], [1], [0, 0, 1, 1], [], []>} : vector<1x16xf32>, vector<16x6xf32>, vector<1x6xf32> -> vector<1x6xf32>
    %c0_131 = arith.constant 0 : index
    %c0_132 = arith.constant 0 : index
    %146 = vector.load %arg9[%c0_131, %c0_132] : memref<1x6xf32, #tpu.memory_space<vmem>>, vector<1x6xf32>
    %147 = arith.addf %145, %146 : vector<1x6xf32>
    %cst_133 = arith.constant dense<0xFF800000> : vector<1xf32>
    %148 = vector.multi_reduction <maximumf>, %147, %cst_133 [1] : vector<1x6xf32> to vector<1xf32>
    %149 = vector.shape_cast %148 : vector<1xf32> to vector<1x1xf32>
    %150 = vector.broadcast %149 : vector<1x1xf32> to vector<1x6xf32>
    %151 = arith.subf %147, %150 : vector<1x6xf32>
    %152 = math.exp %151 : vector<1x6xf32>
    %cst_134 = arith.constant dense<0.000000e+00> : vector<1xf32>
    %153 = vector.multi_reduction <add>, %152, %cst_134 [1] : vector<1x6xf32> to vector<1xf32>
    %154 = vector.shape_cast %153 : vector<1xf32> to vector<1x1xf32>
    %155 = math.log %154 : vector<1x1xf32>
    %156 = vector.broadcast %155 : vector<1x1xf32> to vector<1x6xf32>
    %157 = arith.subf %151, %156 : vector<1x6xf32>
    %c0_135 = arith.constant 0 : index
    %c0_136 = arith.constant 0 : index
    %c0_137 = arith.constant 0 : index
    %158 = vector.load %arg10[%c0_135, %c0_136, %c0_137] : memref<1x1x6xf32, #tpu.memory_space<vmem>>, vector<1x1x6xf32>
    %159 = vector.shape_cast %158 : vector<1x1x6xf32> to vector<1x6xf32>
    %160 = vector.shape_cast %157 : vector<1x6xf32> to vector<1x1x6xf32>
    tpu.vector_store %arg10[%c0_135, %c0_136, %c0_137], %160 {strides = array<i32>} : memref<1x1x6xf32, #tpu.memory_space<vmem>>, vector<1x1x6xf32>,
    return
  }
  func.func @transform_0(%arg0: i32) -> (i32, i32) {
    %c0_i32 = arith.constant 0 : i32
    %c0_i32_0 = arith.constant 0 : i32
    return %arg0, %c0_i32 : i32, i32
  }
  func.func @transform_1(%arg0: i32) -> (i32, i32, i32) {
    %c0_i32 = arith.constant 0 : i32
    %c0_i32_0 = arith.constant 0 : i32
    %c0_i32_1 = arith.constant 0 : i32
    %c0_i32_2 = arith.constant 0 : i32
    return %c0_i32, %c0_i32_0, %c0_i32_1 : i32, i32, i32
  }
  func.func @transform_2(%arg0: i32) -> (i32, i32, i32) {
    %c0_i32 = arith.constant 0 : i32
    %c0_i32_0 = arith.constant 0 : i32
    %c0_i32_1 = arith.constant 0 : i32
    %c0_i32_2 = arith.constant 0 : i32
    return %c0_i32, %c0_i32_0, %c0_i32_1 : i32, i32, i32
  }
  func.func @transform_3(%arg0: i32) -> (i32, i32, i32) {
    %c0_i32 = arith.constant 0 : i32
    %c0_i32_0 = arith.constant 0 : i32
    %c0_i32_1 = arith.constant 0 : i32
    %c0_i32_2 = arith.constant 0 : i32
    return %c0_i32, %c0_i32_0, %c0_i32_1 : i32, i32, i32
  }
  func.func @transform_4(%arg0: i32) -> (i32, i32) {
    %c0_i32 = arith.constant 0 : i32
    %c0_i32_0 = arith.constant 0 : i32
    %c0_i32_1 = arith.constant 0 : i32
    return %c0_i32, %c0_i32_0 : i32, i32
  }
  func.func @transform_5(%arg0: i32) -> (i32, i32) {
    %c0_i32 = arith.constant 0 : i32
    %c0_i32_0 = arith.constant 0 : i32
    %c0_i32_1 = arith.constant 0 : i32
    return %c0_i32, %c0_i32_0 : i32, i32
  }
  func.func @transform_6(%arg0: i32) -> (i32, i32) {
    %c0_i32 = arith.constant 0 : i32
    %c0_i32_0 = arith.constant 0 : i32
    %c0_i32_1 = arith.constant 0 : i32
    return %c0_i32, %c0_i32_0 : i32, i32
  }
  func.func @transform_7(%arg0: i32) -> (i32, i32) {
    %c0_i32 = arith.constant 0 : i32
    %c0_i32_0 = arith.constant 0 : i32
    %c0_i32_1 = arith.constant 0 : i32
    return %c0_i32, %c0_i32_0 : i32, i32
  }
  func.func @transform_8(%arg0: i32) -> (i32, i32) {
    %c0_i32 = arith.constant 0 : i32
    %c0_i32_0 = arith.constant 0 : i32
    %c0_i32_1 = arith.constant 0 : i32
    return %c0_i32, %c0_i32_0 : i32, i32
  }
  func.func @transform_9(%arg0: i32) -> (i32, i32, i32) {
    %c0_i32 = arith.constant 0 : i32
    %c0_i32_0 = arith.constant 0 : i32
    %c0_i32_1 = arith.constant 0 : i32
    return %arg0, %c0_i32, %c0_i32_0 : i32, i32, i32
  }
}

</mosaic_0001>

<llo_original>
// kernel: net_forward.1
$region0: #{net_forward.1}
  #allocation0 [shape = 'u32[]', space=smem, size = 0x4, offset = 0x4, fixed_abs, tag = 'smem constant byte address 0x4 - core index']
  #allocation1 [shape = 'u32[72,128]{1,0:T(1,128)}', space=vmem, size = 0x9000, scoped, tag = 'internal scratch']
  #allocation2 [shape = 'f32[72,128]{1,0:T(8,128)}', space=vmem, size = 0x9000, scoped, tag = 'scratch operand']
  #allocation3 [shape = 'bf16[36,128]{1,0:T(8,128)(2,1)}', space=vmem, size = 0x2800, scoped, tag = 'scratch operand']
  #allocation4 [shape = 'bf16[18,128]{1,0:T(8,128)(2,1)}', space=vmem, size = 0x1800, scoped, tag = 'scratch operand']
  #allocation5 [shape = 'f32[1,1024]{1,0:T(1,128)}', space=vmem, size = 0x1000, scoped, tag = 'scratch operand']
  %s0 = inlined_call_operand.vmem [shape: bf16[144,192], index: 0, kind: input, shape index: {}]
  %s1 = inlined_call_operand.vmem [shape: bf16[3,192,256], index: 1, kind: input, shape index: {}]
  %s2 = inlined_call_operand.vmem [shape: bf16[3,128,256], index: 2, kind: input, shape index: {}]
  %s3 = inlined_call_operand.vmem [shape: bf16[3,128,256], index: 3, kind: input, shape index: {}]
  %s4 = inlined_call_operand.vmem [shape: f32[3,128], index: 4, kind: input, shape index: {}]
  %s5 = inlined_call_operand.vmem [shape: f32[1024,16], index: 5, kind: input, shape index: {}]
  %s6 = inlined_call_operand.vmem [shape: f32[1,16], index: 6, kind: input, shape index: {}]
  %s7 = inlined_call_operand.vmem [shape: f32[16,6], index: 7, kind: input, shape index: {}]
  %s8 = inlined_call_operand.vmem [shape: f32[1,6], index: 8, kind: input, shape index: {}]
  %s9 = inlined_call_operand.hbm [shape: f32[2,1,6], index: 9, kind: output, shape index: {}]
  %s10 = sld [smem:[#allocation0]]
  $region69: #{net_forward.1} parent=0
    _
  %s12 = ssub.s32 1, %s10
  %s13 = scalar_select 0, %s12, %s10
  $region1: #{net_forward.1} parent=0
    #allocation6 [shape = 'u8[1024]{0}', space=vmem, size = 0x400, scoped, tag = 'output window, operand 0']
    #allocation7 [shape = 's32[2]{0}', space=sflag, size = 0x8, scoped, tag = 'scoped memory for net_forward.1']
    %14 = vsyncpa [#allocation7], 0
    %s15 = scalar_lea.sflag [#allocation7], 1
    %16 = vsyncpa %s15, 0
    loop: start=0, step=1, limit=4
    $region2: #{net_forward.1} parent=1 // loop_pre_header
      _
    $region3: #{net_forward.1} parent=1 // loop_header
      %s18 = sphi 0, %s22
      %p19 = scmp.ge.s32.totalorder %s18, 4
      %s28 = sphi 0, %s30
      %s31 = sphi 0, %s28
      %s32 = sphi 0, %s31
      %s48 = sphi 0, %s32
      %s52 = sphi 0, %s52
      %s54 = sphi 0, %s52
      %s55 = sphi 0, %s54
      %s69 = sphi 0, %s55
      %s73 = sphi 0, %s73
      %s75 = sphi 0, %s73
      %s76 = sphi 0, %s75
      %s90 = sphi 0, %s76
      %s94 = sphi 0, %s94
      %s96 = sphi 0, %s94
      %s97 = sphi 0, %s96
      %s111 = sphi 0, %s97
      %s115 = sphi 0, %s115
      %s117 = sphi 0, %s115
      %s118 = sphi 0, %s117
      %s132 = sphi 0, %s118
      %s136 = sphi 0, %s136
      %s138 = sphi 0, %s136
      %s139 = sphi 0, %s138
      %s153 = sphi 0, %s139
      %s157 = sphi 0, %s157
      %s159 = sphi 0, %s157
      %s160 = sphi 0, %s159
      %s174 = sphi 0, %s160
      %s178 = sphi 0, %s178
      %s180 = sphi 0, %s178
      %s181 = sphi 0, %s180
      %s195 = sphi 0, %s181
      %s199 = sphi 0, %s199
      %s201 = sphi 0, %s199
      %s202 = sphi 0, %s201
      %s216 = sphi 0, %s202
      %s222 = sphi 0, %s224
      %s225 = sphi 0, %s222
      %s226 = sphi 0, %s225
      %s242 = sphi 0, %s226
    $region4: #{net_forward.1} parent=1 // loop_header_branch
      %21 = sbr.rel (%p19) target = $region8
    $region5: #{net_forward.1} parent=1 // loop_body
      %s23 = ssub.s32 %s18, 1
      %s24 = ssub.s32 %s18, 2
      %s25 = sadd.s32 %s18, 1
      %s26 = ssub.s32 %s18, %s25
      %p27 = scmp.eq.s32.totalorder %s26, 0
      %s29 = sadd.s32 %s28, 1
      %s30 = scalar_select %p27, %s28, %s29
      %p33 = pneg %p27
      %p34 = scmp.eq.s32.totalorder %s18, 1
      %p35 = por %p33, %p34
      %p36 = scmp.ne.s32.totalorder %s28, %s31
      %p37 = scmp.eq.s32.totalorder %s18, 0
      %p38 = por %p36, %p37
      %p39 = scmp.ne.s32.totalorder %s28, %s31
      %p40 = scmp.eq.s32.totalorder %s23, 1
      %p41 = por %p39, %p40
      %p42 = scmp.ne.s32.totalorder %s31, %s32
      %p43 = scmp.eq.s32.totalorder %s23, 0
      %p44 = por %p42, %p43
      %p45 = scmp.ne.s32.totalorder %s31, %s32
      %p46 = scmp.eq.s32.totalorder %s24, 1
      %p47 = por %p45, %p46
      %p49 = scmp.ne.s32.totalorder %s32, %s48
      %p50 = scmp.eq.s32.totalorder %s24, 0
      %p51 = por %p49, %p50
      %s53 = sadd.s32 %s52, 1
      %p56 = scmp.eq.s32.totalorder %s18, 1
      %p57 = scmp.ne.s32.totalorder %s52, %s54
      %p58 = scmp.eq.s32.totalorder %s18, 0
      %p59 = por %p57, %p58
      %p60 = scmp.ne.s32.totalorder %s52, %s54
      %p61 = scmp.eq.s32.totalorder %s23, 1
      %p62 = por %p60, %p61
      %p63 = scmp.ne.s32.totalorder %s54, %s55
      %p64 = scmp.eq.s32.totalorder %s23, 0
      %p65 = por %p63, %p64
      %p66 = scmp.ne.s32.totalorder %s54, %s55
      %p67 = scmp.eq.s32.totalorder %s24, 1
      %p68 = por %p66, %p67
      %p70 = scmp.ne.s32.totalorder %s55, %s69
      %p71 = scmp.eq.s32.totalorder %s24, 0
      %p72 = por %p70, %p71
      %s74 = sadd.s32 %s73, 1
      %p77 = scmp.eq.s32.totalorder %s18, 1
      %p78 = scmp.ne.s32.totalorder %s73, %s75
      %p79 = scmp.eq.s32.totalorder %s18, 0
      %p80 = por %p78, %p79
      %p81 = scmp.ne.s32.totalorder %s73, %s75
      %p82 = scmp.eq.s32.totalorder %s23, 1
      %p83 = por %p81, %p82
      %p84 = scmp.ne.s32.totalorder %s75, %s76
      %p85 = scmp.eq.s32.totalorder %s23, 0
      %p86 = por %p84, %p85
      %p87 = scmp.ne.s32.totalorder %s75, %s76
      %p88 = scmp.eq.s32.totalorder %s24, 1
      %p89 = por %p87, %p88
      %p91 = scmp.ne.s32.totalorder %s76, %s90
      %p92 = scmp.eq.s32.totalorder %s24, 0
      %p93 = por %p91, %p92
      %s95 = sadd.s32 %s94, 1
      %p98 = scmp.eq.s32.totalorder %s18, 1
      %p99 = scmp.ne.s32.totalorder %s94, %s96
      %p100 = scmp.eq.s32.totalorder %s18, 0
      %p101 = por %p99, %p100
      %p102 = scmp.ne.s32.totalorder %s94, %s96
      %p103 = scmp.eq.s32.totalorder %s23, 1
      %p104 = por %p102, %p103
      %p105 = scmp.ne.s32.totalorder %s96, %s97
      %p106 = scmp.eq.s32.totalorder %s23, 0
      %p107 = por %p105, %p106
      %p108 = scmp.ne.s32.totalorder %s96, %s97
      %p109 = scmp.eq.s32.totalorder %s24, 1
      %p110 = por %p108, %p109
      %p112 = scmp.ne.s32.totalorder %s97, %s111
      %p113 = scmp.eq.s32.totalorder %s24, 0
      %p114 = por %p112, %p113
      %s116 = sadd.s32 %s115, 1
      %p119 = scmp.eq.s32.totalorder %s18, 1
      %p120 = scmp.ne.s32.totalorder %s115, %s117
      %p121 = scmp.eq.s32.totalorder %s18, 0
      %p122 = por %p120, %p121
      %p123 = scmp.ne.s32.totalorder %s115, %s117
      %p124 = scmp.eq.s32.totalorder %s23, 1
      %p125 = por %p123, %p124
      %p126 = scmp.ne.s32.totalorder %s117, %s118
      %p127 = scmp.eq.s32.totalorder %s23, 0
      %p128 = por %p126, %p127
      %p129 = scmp.ne.s32.totalorder %s117, %s118
      %p130 = scmp.eq.s32.totalorder %s24, 1
      %p131 = por %p129, %p130
      %p133 = scmp.ne.s32.totalorder %s118, %s132
      %p134 = scmp.eq.s32.totalorder %s24, 0
      %p135 = por %p133, %p134
      %s137 = sadd.s32 %s136, 1
      %p140 = scmp.eq.s32.totalorder %s18, 1
      %p141 = scmp.ne.s32.totalorder %s136, %s138
      %p142 = scmp.eq.s32.totalorder %s18, 0
      %p143 = por %p141, %p142
      %p144 = scmp.ne.s32.totalorder %s136, %s138
      %p145 = scmp.eq.s32.totalorder %s23, 1
      %p146 = por %p144, %p145
      %p147 = scmp.ne.s32.totalorder %s138, %s139
      %p148 = scmp.eq.s32.totalorder %s23, 0
      %p149 = por %p147, %p148
      %p150 = scmp.ne.s32.totalorder %s138, %s139
      %p151 = scmp.eq.s32.totalorder %s24, 1
      %p152 = por %p150, %p151
      %p154 = scmp.ne.s32.totalorder %s139, %s153
      %p155 = scmp.eq.s32.totalorder %s24, 0
      %p156 = por %p154, %p155
      %s158 = sadd.s32 %s157, 1
      %p161 = scmp.eq.s32.totalorder %s18, 1
      %p162 = scmp.ne.s32.totalorder %s157, %s159
      %p163 = scmp.eq.s32.totalorder %s18, 0
      %p164 = por %p162, %p163
      %p165 = scmp.ne.s32.totalorder %s157, %s159
      %p166 = scmp.eq.s32.totalorder %s23, 1
      %p167 = por %p165, %p166
      %p168 = scmp.ne.s32.totalorder %s159, %s160
      %p169 = scmp.eq.s32.totalorder %s23, 0
      %p170 = por %p168, %p169
      %p171 = scmp.ne.s32.totalorder %s159, %s160
      %p172 = scmp.eq.s32.totalorder %s24, 1
      %p173 = por %p171, %p172
      %p175 = scmp.ne.s32.totalorder %s160, %s174
      %p176 = scmp.eq.s32.totalorder %s24, 0
      %p177 = por %p175, %p176
      %s179 = sadd.s32 %s178, 1
      %p182 = scmp.eq.s32.totalorder %s18, 1
      %p183 = scmp.ne.s32.totalorder %s178, %s180
      %p184 = scmp.eq.s32.totalorder %s18, 0
      %p185 = por %p183, %p184
      %p186 = scmp.ne.s32.totalorder %s178, %s180
      %p187 = scmp.eq.s32.totalorder %s23, 1
      %p188 = por %p186, %p187
      %p189 = scmp.ne.s32.totalorder %s180, %s181
      %p190 = scmp.eq.s32.totalorder %s23, 0
      %p191 = por %p189, %p190
      %p192 = scmp.ne.s32.totalorder %s180, %s181
      %p193 = scmp.eq.s32.totalorder %s24, 1
      %p194 = por %p192, %p193
      %p196 = scmp.ne.s32.totalorder %s181, %s195
      %p197 = scmp.eq.s32.totalorder %s24, 0
      %p198 = por %p196, %p197
      %s200 = sadd.s32 %s199, 1
      %p203 = scmp.eq.s32.totalorder %s18, 1
      %p204 = scmp.ne.s32.totalorder %s199, %s201
      %p205 = scmp.eq.s32.totalorder %s18, 0
      %p206 = por %p204, %p205
      %p207 = scmp.ne.s32.totalorder %s199, %s201
      %p208 = scmp.eq.s32.totalorder %s23, 1
      %p209 = por %p207, %p208
      %p210 = scmp.ne.s32.totalorder %s201, %s202
      %p211 = scmp.eq.s32.totalorder %s23, 0
      %p212 = por %p210, %p211
      %p213 = scmp.ne.s32.totalorder %s201, %s202
      %p214 = scmp.eq.s32.totalorder %s24, 1
      %p215 = por %p213, %p214
      %p217 = scmp.ne.s32.totalorder %s202, %s216
      %p218 = scmp.eq.s32.totalorder %s24, 0
      %p219 = por %p217, %p218
      %s220 = ssub.s32 %s18, %s25
      %p221 = scmp.eq.s32.totalorder %s220, 0
      %s223 = sadd.s32 %s222, 1
      %s224 = scalar_select %p221, %s222, %s223
      %p227 = pneg %p221
      %p228 = scmp.eq.s32.totalorder %s18, 1
      %p229 = por %p227, %p228
      %p230 = scmp.ne.s32.totalorder %s222, %s225
      %p231 = scmp.eq.s32.totalorder %s18, 0
      %p232 = por %p230, %p231
      %p233 = scmp.ne.s32.totalorder %s222, %s225
      %p234 = scmp.eq.s32.totalorder %s23, 1
      %p235 = por %p233, %p234
      %p236 = scmp.ne.s32.totalorder %s225, %s226
      %p237 = scmp.eq.s32.totalorder %s23, 0
      %p238 = por %p236, %p237
      %p239 = scmp.ne.s32.totalorder %s225, %s226
      %p240 = scmp.eq.s32.totalorder %s24, 1
      %p241 = por %p239, %p240
      %p243 = scmp.ne.s32.totalorder %s226, %s242
      %p244 = scmp.eq.s32.totalorder %s24, 0
      %p245 = por %p243, %p244
      %p246 = scmp.le.s32.totalorder 1, %s18
      %p247 = scmp.lt.s32.totalorder %s18, 3
      %p248 = pnand %p246, %p247
      %p249 = pneg %p248
      // Predicated region
      $region9: #{net_forward.1} parent=5 // pred_check
        _
      $region10: #{net_forward.1} parent=5 // pred_check_branch
        %251 = sbr.rel (%p248) target = $region12
      $region11: #{net_forward.1} parent=5 // pred_region
        %s252 = ssub.s32 %s18, 1
        // Predicated region
        $region13: #{net_forward.1} parent=11 // pred_check
          %p253 = pneg %p65
        $region14: #{net_forward.1} parent=11 // pred_check_branch
          %255 = sbr.rel (%p253) target = $region16
        $region15: #{net_forward.1} parent=11 // pred_region
          _
        $region16: #{net_forward.1} parent=11 // pred_fallthru
          _
        // Predicated region
        $region17: #{net_forward.1} parent=11 // pred_check
          %p256 = pneg %p86
        $region18: #{net_forward.1} parent=11 // pred_check_branch
          %258 = sbr.rel (%p256) target = $region20
        $region19: #{net_forward.1} parent=11 // pred_region
          _
        $region20: #{net_forward.1} parent=11 // pred_fallthru
          _
        // Predicated region
        $region21: #{net_forward.1} parent=11 // pred_check
          %p259 = pneg %p107
        $region22: #{net_forward.1} parent=11 // pred_check_branch
          %261 = sbr.rel (%p259) target = $region24
        $region23: #{net_forward.1} parent=11 // pred_region
          _
        $region24: #{net_forward.1} parent=11 // pred_fallthru
          _
        // Predicated region
        $region25: #{net_forward.1} parent=11 // pred_check
          %p262 = pneg %p128
        $region26: #{net_forward.1} parent=11 // pred_check_branch
          %264 = sbr.rel (%p262) target = $region28
        $region27: #{net_forward.1} parent=11 // pred_region
          _
        $region28: #{net_forward.1} parent=11 // pred_fallthru
          _
        // Predicated region
        $region29: #{net_forward.1} parent=11 // pred_check
          %p265 = pneg %p149
        $region30: #{net_forward.1} parent=11 // pred_check_branch
          %267 = sbr.rel (%p265) target = $region32
        $region31: #{net_forward.1} parent=11 // pred_region
          _
        $region32: #{net_forward.1} parent=11 // pred_fallthru
          _
        // Predicated region
        $region33: #{net_forward.1} parent=11 // pred_check
          %p268 = pneg %p170
        $region34: #{net_forward.1} parent=11 // pred_check_branch
          %270 = sbr.rel (%p268) target = $region36
        $region35: #{net_forward.1} parent=11 // pred_region
          _
        $region36: #{net_forward.1} parent=11 // pred_fallthru
          _
        // Predicated region
        $region37: #{net_forward.1} parent=11 // pred_check
          %p271 = pneg %p191
        $region38: #{net_forward.1} parent=11 // pred_check_branch
          %273 = sbr.rel (%p271) target = $region40
        $region39: #{net_forward.1} parent=11 // pred_region
          _
        $region40: #{net_forward.1} parent=11 // pred_fallthru
          _
        // Predicated region
        $region41: #{net_forward.1} parent=11 // pred_check
          %p274 = pneg %p212
        $region42: #{net_forward.1} parent=11 // pred_check_branch
          %276 = sbr.rel (%p274) target = $region44
        $region43: #{net_forward.1} parent=11 // pred_region
          _
        $region44: #{net_forward.1} parent=11 // pred_fallthru
          _
      $region12: #{net_forward.1} parent=5 // pred_fallthru
        _
      %p277 = scmp.lt.s32.totalorder %s18, 2
      // Predicated region
      $region45: #{net_forward.1} parent=5 // pred_check
        %p278 = pneg %p277
      $region46: #{net_forward.1} parent=5 // pred_check_branch
        %280 = sbr.rel (%p278) target = $region48
      $region47: #{net_forward.1} parent=5 // pred_region
        // Predicated region
        $region49: #{net_forward.1} parent=47 // pred_check
          %p281 = pneg %p38
        $region50: #{net_forward.1} parent=47 // pred_check_branch
          %283 = sbr.rel (%p281) target = $region52
        $region51: #{net_forward.1} parent=47 // pred_region
          %s284 = smul.u32 9, %s18
          %p285 = scmp.lt.s32.totalorder %s284, 17
          %s286 = scalar_select %p285, %s284, 17
          %s287 = smul.addr %s286, 2
          %s288 = smul.addr %s287, 4
          %s289 = scalar_lea.vmem %s0, %s288
          %s290 = smul.u32 9, %s18
        $region52: #{net_forward.1} parent=47 // pred_fallthru
          _
      $region48: #{net_forward.1} parent=5 // pred_fallthru
        _
      %p291 = scmp.le.s32.totalorder 1, %s18
      %p292 = scmp.lt.s32.totalorder %s18, 3
      %p293 = pnand %p291, %p292
      %p294 = pneg %p293
      // Predicated region
      $region53: #{net_forward.1} parent=5 // pred_check
        _
      $region54: #{net_forward.1} parent=5 // pred_check_branch
        %296 = sbr.rel (%p293) target = $region56
      $region55: #{net_forward.1} parent=5 // pred_region
        %s297 = ssub.s32 %s18, 1
        %s298 = smul.u32 9, %s23
        %p299 = scmp.lt.s32.totalorder %s298, 17
        %s300 = scalar_select %p299, %s298, 17
        %s301 = smul.addr %s300, 2
        %s302 = smul.addr %s301, 4
        %s303 = scalar_lea.vmem %s0, %s302
        %p304 = pneg %p44
        %p305 = pneg %p41
        %p306 = pneg %p65
        %p307 = pneg %p62
        %p308 = pneg %p86
        %p309 = pneg %p83
        %p310 = pneg %p107
        %p311 = pneg %p104
        %p312 = pneg %p128
        %p313 = pneg %p125
        %p314 = pneg %p149
        %p315 = pneg %p146
        %p316 = pneg %p170
        %p317 = pneg %p167
        %p318 = pneg %p191
        %p319 = pneg %p188
        %p320 = pneg %p212
        %p321 = pneg %p209
        %p322 = pneg %p238
        %p323 = pneg %p235
        %s324 = sand.u32 %s225, 1
        %s325 = scalar_lea.sflag [#allocation7], %s324
        %s326 = sand.u32 %s225, 1
        %s327 = scalar_lea.vmem [#allocation6], %s326
        %s328 = smul.u32 9, %s23
        %p329 = scmp.lt.s32.totalorder %s328, 17
        %s330 = scalar_select %p329, %s328, 17
        %s331 = smul.addr %s330, 2
        %s332 = smul.addr %s331, 4
        %s333 = scalar_lea.vmem %s0, %s332
        %s334 = smul.u32 9, %s23
        %v336 = vld [vmem:[%s333] sm:$0xff]
        %v337 = vld [vmem:[%s333 + $0x8] sm:$0xff]
        %v338 = vld [vmem:[%s333 + $0x10] sm:$0xff]
        %v339 = vld [vmem:[%s333 + $0x18] sm:$0xff]
        %v340 = vld [vmem:[%s333 + $0x20] sm:$0xff]
        %v341 = vld [vmem:[%s333 + $0x28] sm:$0xff]
        %v342 = vld [vmem:[%s333 + $0x30] sm:$0xff]
        %v343 = vld [vmem:[%s333 + $0x38] sm:$0xff]
        %v344 = vld [vmem:[%s333 + $0x40] sm:$0x77]
        %v345 = vld [vmem:[%s1] sm:$0xff]
        %v346 = vld [vmem:[%s1 + $0x8] sm:$0xff]
        %v347 = vld [vmem:[%s1 + $0x10] sm:$0xff]
        %v348 = vld [vmem:[%s1 + $0x18] sm:$0xff]
        %v349 = vld [vmem:[%s1 + $0x20] sm:$0xff]
        %v350 = vld [vmem:[%s1 + $0x28] sm:$0xff]
        %v351 = vld [vmem:[%s1 + $0x30] sm:$0xff]
        %v352 = vld [vmem:[%s1 + $0x38] sm:$0xff]
        %v353 = vld [vmem:[%s1 + $0x40] sm:$0xff]
        %v354 = vld [vmem:[%s1 + $0x48] sm:$0xff]
        %v355 = vld [vmem:[%s1 + $0x50] sm:$0xff]
        %v356 = vld [vmem:[%s1 + $0x58] sm:$0xff]
        %v357 = vld [vmem:[%s1 + $0x60] sm:$0xff]
        %v358 = vld [vmem:[%s1 + $0x68] sm:$0xff]
        %v359 = vld [vmem:[%s1 + $0x70] sm:$0xff]
        %v360 = vld [vmem:[%s1 + $0x78] sm:$0xff]
        %v361 = vld [vmem:[%s1 + $0x80] sm:$0xff]
        %v362 = vld [vmem:[%s1 + $0x88] sm:$0xff]
        %v363 = vld [vmem:[%s1 + $0x90] sm:$0xff]
        %v364 = vld [vmem:[%s1 + $0x98] sm:$0xff]
        %v365 = vld [vmem:[%s1 + $0xa0] sm:$0xff]
        %v366 = vld [vmem:[%s1 + $0xa8] sm:$0xff]
        %v367 = vld [vmem:[%s1 + $0xb0] sm:$0xff]
        %v368 = vld [vmem:[%s1 + $0xb8] sm:$0xff]
        %v369 = vld [vmem:[%s333 + $0x40] sm:$0xff]
        %s370 = scalar_lea.vmem %s1, 192
        %v371 = vld [vmem:[%s370] sm:$0xff]
        %v372 = vld [vmem:[%s370 + $0x8] sm:$0xff]
        %v373 = vld [vmem:[%s370 + $0x10] sm:$0xff]
        %v374 = vld [vmem:[%s370 + $0x18] sm:$0xff]
        %v375 = vld [vmem:[%s370 + $0x20] sm:$0xff]
        %v376 = vld [vmem:[%s370 + $0x28] sm:$0xff]
        %v377 = vld [vmem:[%s370 + $0x30] sm:$0xff]
        %v378 = vld [vmem:[%s370 + $0x38] sm:$0xff]
        %v379 = vld [vmem:[%s370 + $0x40] sm:$0xff]
        %v380 = vld [vmem:[%s370 + $0x48] sm:$0xff]
        %v381 = vld [vmem:[%s370 + $0x50] sm:$0xff]
        %v382 = vld [vmem:[%s370 + $0x58] sm:$0xff]
        %v383 = vld [vmem:[%s370 + $0x60] sm:$0xff]
        %v384 = vld [vmem:[%s370 + $0x68] sm:$0xff]
        %v385 = vld [vmem:[%s370 + $0x70] sm:$0xff]
        %v386 = vld [vmem:[%s370 + $0x78] sm:$0xff]
        %v387 = vld [vmem:[%s370 + $0x80] sm:$0xff]
        %v388 = vld [vmem:[%s370 + $0x88] sm:$0xff]
        %v389 = vld [vmem:[%s370 + $0x90] sm:$0xff]
        %v390 = vld [vmem:[%s370 + $0x98] sm:$0xff]
        %v391 = vld [vmem:[%s370 + $0xa0] sm:$0xff]
        %v392 = vld [vmem:[%s370 + $0xa8] sm:$0xff]
        %v393 = vld [vmem:[%s370 + $0xb0] sm:$0xff]
        %v394 = vld [vmem:[%s370 + $0xb8] sm:$0xff]
        %v404 = vunpack.c.l.b16 %v336
        %v405 = vunpack.c.h.b16 %v336
        %v406 = vunpack.c.l.b16 %v337
        %v407 = vunpack.c.h.b16 %v337
        %v408 = vunpack.c.l.b16 %v338
        %v409 = vunpack.c.h.b16 %v338
        %v410 = vunpack.c.l.b16 %v339
        %v411 = vunpack.c.h.b16 %v339
        %v412 = vunpack.c.l.b16 %v340
        %v413 = vunpack.c.h.b16 %v340
        %v414 = vunpack.c.l.b16 %v341
        %v415 = vunpack.c.h.b16 %v341
        %v416 = vunpack.c.l.b16 %v342
        %v417 = vunpack.c.h.b16 %v342
        %v418 = vunpack.c.l.b16 %v343
        %v419 = vunpack.c.h.b16 %v343
        %v420 = vunpack.c.l.b16 %v369
        %v421 = vunpack.c.h.b16 %v369
        %v422 = vpack.c.b16 %v406, %v404
        %v423 = vpack.c.b16 %v407, %v405
        %v424 = vpack.c.b16 %v410, %v408
        %v425 = vpack.c.b16 %v411, %v409
        %v426 = vpack.c.b16 %v414, %v412
        %v427 = vpack.c.b16 %v415, %v413
        %v428 = vpack.c.b16 %v418, %v416
        %v429 = vpack.c.b16 %v419, %v417
        %v430 = vpack.c.b16 %v420, %v420
        %v431 = vpack.c.b16 %v421, %v421
        %vm432 = vsmask.f32 7424
        %v434 = vshrl.u32 %v422, 16
        %v436 = vshll.u32 %v422, 16
        %v438 = vrot.slane %v436, 1
        %v439 = vor.u32 %v434, %v438
        %v441 = vshll.u32 %v424, 16
        %v443 = vrot.slane %v441, 1
        %v444 = vsel %vm432, %v439, %v443
        %v446 = vshrl.u32 %v423, 16
        %v448 = vshll.u32 %v423, 16
        %v450 = vrot.slane %v448, 1
        %v451 = vor.u32 %v446, %v450
        %v453 = vshll.u32 %v425, 16
        %v455 = vrot.slane %v453, 1
        %v456 = vsel %vm432, %v451, %v455
        %v457 = vshrl.u32 %v424, 16
        %v459 = vor.u32 %v457, %v443
        %v461 = vshll.u32 %v426, 16
        %v463 = vrot.slane %v461, 1
        %v464 = vsel %vm432, %v459, %v463
        %v465 = vshrl.u32 %v425, 16
        %v467 = vor.u32 %v465, %v455
        %v469 = vshll.u32 %v427, 16
        %v471 = vrot.slane %v469, 1
        %v472 = vsel %vm432, %v467, %v471
        %v473 = vshrl.u32 %v426, 16
        %v475 = vor.u32 %v473, %v463
        %v477 = vshll.u32 %v428, 16
        %v479 = vrot.slane %v477, 1
        %v480 = vsel %vm432, %v475, %v479
        %v481 = vshrl.u32 %v427, 16
        %v483 = vor.u32 %v481, %v471
        %v485 = vshll.u32 %v429, 16
        %v487 = vrot.slane %v485, 1
        %v488 = vsel %vm432, %v483, %v487
        %v489 = vshrl.u32 %v428, 16
        %v491 = vor.u32 %v489, %v479
        %v493 = vshll.u32 %v430, 16
        %v495 = vrot.slane %v493, 1
        %v496 = vsel %vm432, %v491, %v495
        %v497 = vshrl.u32 %v429, 16
        %v499 = vor.u32 %v497, %v487
        %v501 = vshll.u32 %v431, 16
        %v503 = vrot.slane %v501, 1
        %v504 = vsel %vm432, %v499, %v503
        %v505 = vshrl.u32 %v430, 16
        %v507 = vor.u32 %v505, %v495
        %v508 = vshrl.u32 %v431, 16
        %v510 = vor.u32 %v508, %v503
        %v540 = vunpack.c.l.b16 %v371
        %v541 = vunpack.c.h.b16 %v371
        %v542 = vunpack.c.l.b16 %v372
        %v543 = vunpack.c.h.b16 %v372
        %v544 = vunpack.c.l.b16 %v373
        %v545 = vunpack.c.h.b16 %v373
        %v546 = vunpack.c.l.b16 %v374
        %v547 = vunpack.c.h.b16 %v374
        %v548 = vunpack.c.l.b16 %v375
        %v549 = vunpack.c.h.b16 %v375
        %v550 = vunpack.c.l.b16 %v376
        %v551 = vunpack.c.h.b16 %v376
        %v552 = vunpack.c.l.b16 %v377
        %v553 = vunpack.c.h.b16 %v377
        %v554 = vunpack.c.l.b16 %v378
        %v555 = vunpack.c.h.b16 %v378
        %v556 = vunpack.c.l.b16 %v379
        %v557 = vunpack.c.h.b16 %v379
        %v558 = vunpack.c.l.b16 %v380
        %v559 = vunpack.c.h.b16 %v380
        %v560 = vunpack.c.l.b16 %v381
        %v561 = vunpack.c.h.b16 %v381
        %v562 = vunpack.c.l.b16 %v382
        %v563 = vunpack.c.h.b16 %v382
        %v564 = vunpack.c.l.b16 %v383
        %v565 = vunpack.c.h.b16 %v383
        %v566 = vunpack.c.l.b16 %v384
        %v567 = vunpack.c.h.b16 %v384
        %v568 = vunpack.c.l.b16 %v385
        %v569 = vunpack.c.h.b16 %v385
        %v570 = vunpack.c.l.b16 %v386
        %v571 = vunpack.c.h.b16 %v386
        %v572 = vunpack.c.l.b16 %v387
        %v573 = vunpack.c.h.b16 %v387
        %v574 = vunpack.c.l.b16 %v388
        %v575 = vunpack.c.h.b16 %v388
        %v576 = vunpack.c.l.b16 %v389
        %v577 = vunpack.c.h.b16 %v389
        %v578 = vunpack.c.l.b16 %v390
        %v579 = vunpack.c.h.b16 %v390
        %v580 = vunpack.c.l.b16 %v391
        %v581 = vunpack.c.h.b16 %v391
        %v582 = vunpack.c.l.b16 %v392
        %v583 = vunpack.c.h.b16 %v392
        %v584 = vunpack.c.l.b16 %v393
        %v585 = vunpack.c.h.b16 %v393
        %v586 = vunpack.c.l.b16 %v394
        %v587 = vunpack.c.h.b16 %v394
        %v588 = vpack.c.b16 %v542, %v540
        %v589 = vpack.c.b16 %v543, %v541
        %v590 = vpack.c.b16 %v546, %v544
        %v591 = vpack.c.b16 %v547, %v545
        %v592 = vpack.c.b16 %v550, %v548
        %v593 = vpack.c.b16 %v551, %v549
        %v594 = vpack.c.b16 %v554, %v552
        %v595 = vpack.c.b16 %v555, %v553
        %v596 = vpack.c.b16 %v558, %v556
        %v597 = vpack.c.b16 %v559, %v557
        %v598 = vpack.c.b16 %v562, %v560
        %v599 = vpack.c.b16 %v563, %v561
        %v600 = vpack.c.b16 %v566, %v564
        %v601 = vpack.c.b16 %v567, %v565
        %v602 = vpack.c.b16 %v570, %v568
        %v603 = vpack.c.b16 %v571, %v569
        %v604 = vpack.c.b16 %v574, %v572
        %v605 = vpack.c.b16 %v575, %v573
        %v606 = vpack.c.b16 %v578, %v576
        %v607 = vpack.c.b16 %v579, %v577
        %v608 = vpack.c.b16 %v582, %v580
        %v609 = vpack.c.b16 %v583, %v581
        %v610 = vpack.c.b16 %v586, %v584
        %v611 = vpack.c.b16 %v587, %v585
        %vm636 = vcmask 523264
        %v638 = vsel %vm636, %v456, 0
        %v641 = vsel %vm636, %v472, 0
        %v644 = vsel %vm636, %v488, 0
        %v647 = vsel %vm636, %v504, 0
        %v650 = vsel %vm636, %v510, 0
        %652 = vmatpush.bf16.msra.mxu0 %v602
        %653 = vmatpush.bf16.msra.mxu0 %v600
        %654 = vmatpush.bf16.msra.mxu0 %v598
        %655 = vmatpush.bf16.msra.mxu0 %v596
        %656 = vmatpush.bf16.msra.mxu0 %v594
        %657 = vmatpush.bf16.msra.mxu0 %v592
        %658 = vmatpush.bf16.msra.mxu0 %v590
        %659 = vmatpush.bf16.msra.mxu0 %v588
        %660 = vmatmul.bf16.gmra.mxu0 %v444
        %v661 = vpop.f32.mrf.mxu0
        %v662 = vadd.f32 0.0, %v661
        %v663 = vpop.f32.mrf.mxu0
        %v664 = vadd.f32 0.0, %v663
        %665 = vmatmul.bf16.gmra.mxu0 %v464
        %v666 = vpop.f32.mrf.mxu0
        %v667 = vadd.f32 0.0, %v666
        %v668 = vpop.f32.mrf.mxu0
        %v669 = vadd.f32 0.0, %v668
        %670 = vmatmul.bf16.gmra.mxu0 %v480
        %v671 = vpop.f32.mrf.mxu0
        %v672 = vadd.f32 0.0, %v671
        %v673 = vpop.f32.mrf.mxu0
        %v674 = vadd.f32 0.0, %v673
        %675 = vmatmul.bf16.gmra.mxu0 %v496
        %v676 = vpop.f32.mrf.mxu0
        %v677 = vadd.f32 0.0, %v676
        %v678 = vpop.f32.mrf.mxu0
        %v679 = vadd.f32 0.0, %v678
        %680 = vmatmul.bf16.gmra.mxu0 %v507
        %v681 = vpop.f32.mrf.mxu0
        %v682 = vadd.f32 0.0, %v681
        %v683 = vpop.f32.mrf.mxu0
        %684 = vdwg.mxu0
        %685 = vmatpush.bf16.msra.mxu0 0
        %686 = vmatpush.bf16.msra.mxu0 0
        %687 = vmatpush.bf16.msra.mxu0 0
        %688 = vmatpush.bf16.msra.mxu0 0
        %689 = vmatpush.bf16.msra.mxu0 %v610
        %690 = vmatpush.bf16.msra.mxu0 %v608
        %691 = vmatpush.bf16.msra.mxu0 %v606
        %692 = vmatpush.bf16.msra.mxu0 %v604
        %693 = vmatmul.bf16.gmra.mxu0 %v638
        %v694 = vpop.f32.mrf.mxu0
        %v695 = vadd.f32 %v662, %v694
        %v696 = vpop.f32.mrf.mxu0
        %v697 = vadd.f32 %v664, %v696
        %698 = vmatmul.bf16.gmra.mxu0 %v641
        %v699 = vpop.f32.mrf.mxu0
        %v700 = vadd.f32 %v667, %v699
        %v701 = vpop.f32.mrf.mxu0
        %v702 = vadd.f32 %v669, %v701
        %703 = vmatmul.bf16.gmra.mxu0 %v644
        %v704 = vpop.f32.mrf.mxu0
        %v705 = vadd.f32 %v672, %v704
        %v706 = vpop.f32.mrf.mxu0
        %v707 = vadd.f32 %v674, %v706
        %708 = vmatmul.bf16.gmra.mxu0 %v647
        %v709 = vpop.f32.mrf.mxu0
        %v710 = vadd.f32 %v677, %v709
        %v711 = vpop.f32.mrf.mxu0
        %v712 = vadd.f32 %v679, %v711
        %713 = vmatmul.bf16.gmra.mxu0 %v650
        %v714 = vpop.f32.mrf.mxu0
        %v715 = vadd.f32 %v682, %v714
        %v716 = vpop.f32.mrf.mxu0
        %717 = vdwg.mxu0
        %718 = vmatpush.bf16.msra.mxu0 %v603
        %719 = vmatpush.bf16.msra.mxu0 %v601
        %720 = vmatpush.bf16.msra.mxu0 %v599
        %721 = vmatpush.bf16.msra.mxu0 %v597
        %722 = vmatpush.bf16.msra.mxu0 %v595
        %723 = vmatpush.bf16.msra.mxu0 %v593
        %724 = vmatpush.bf16.msra.mxu0 %v591
        %725 = vmatpush.bf16.msra.mxu0 %v589
        %726 = vmatmul.bf16.gmra.mxu0 %v444
        %v727 = vpop.f32.mrf.mxu0
        %v728 = vadd.f32 0.0, %v727
        %v729 = vpop.f32.mrf.mxu0
        %v730 = vadd.f32 0.0, %v729
        %731 = vmatmul.bf16.gmra.mxu0 %v464
        %v732 = vpop.f32.mrf.mxu0
        %v733 = vadd.f32 0.0, %v732
        %v734 = vpop.f32.mrf.mxu0
        %v735 = vadd.f32 0.0, %v734
        %736 = vmatmul.bf16.gmra.mxu0 %v480
        %v737 = vpop.f32.mrf.mxu0
        %v738 = vadd.f32 0.0, %v737
        %v739 = vpop.f32.mrf.mxu0
        %v740 = vadd.f32 0.0, %v739
        %741 = vmatmul.bf16.gmra.mxu0 %v496
        %v742 = vpop.f32.mrf.mxu0
        %v743 = vadd.f32 0.0, %v742
        %v744 = vpop.f32.mrf.mxu0
        %v745 = vadd.f32 0.0, %v744
        %746 = vmatmul.bf16.gmra.mxu0 %v507
        %v747 = vpop.f32.mrf.mxu0
        %v748 = vadd.f32 0.0, %v747
        %v749 = vpop.f32.mrf.mxu0
        %750 = vdwg.mxu0
        %751 = vmatpush.bf16.msra.mxu0 0
        %752 = vmatpush.bf16.msra.mxu0 0
        %753 = vmatpush.bf16.msra.mxu0 0
        %754 = vmatpush.bf16.msra.mxu0 0
        %755 = vmatpush.bf16.msra.mxu0 %v611
        %756 = vmatpush.bf16.msra.mxu0 %v609
        %757 = vmatpush.bf16.msra.mxu0 %v607
        %758 = vmatpush.bf16.msra.mxu0 %v605
        %759 = vmatmul.bf16.gmra.mxu0 %v638
        %v760 = vpop.f32.mrf.mxu0
        %v761 = vadd.f32 %v728, %v760
        %v762 = vpop.f32.mrf.mxu0
        %v763 = vadd.f32 %v730, %v762
        %764 = vmatmul.bf16.gmra.mxu0 %v641
        %v765 = vpop.f32.mrf.mxu0
        %v766 = vadd.f32 %v733, %v765
        %v767 = vpop.f32.mrf.mxu0
        %v768 = vadd.f32 %v735, %v767
        %769 = vmatmul.bf16.gmra.mxu0 %v644
        %v770 = vpop.f32.mrf.mxu0
        %v771 = vadd.f32 %v738, %v770
        %v772 = vpop.f32.mrf.mxu0
        %v773 = vadd.f32 %v740, %v772
        %774 = vmatmul.bf16.gmra.mxu0 %v647
        %v775 = vpop.f32.mrf.mxu0
        %v776 = vadd.f32 %v743, %v775
        %v777 = vpop.f32.mrf.mxu0
        %v778 = vadd.f32 %v745, %v777
        %779 = vmatmul.bf16.gmra.mxu0 %v650
        %v780 = vpop.f32.mrf.mxu0
        %v781 = vadd.f32 %v748, %v780
        %v782 = vpop.f32.mrf.mxu0
        %783 = vdwg.mxu0
        %v785 = vunpack.c.l.b16 %v344
        %v786 = vunpack.c.h.b16 %v344
        %v787 = vpack.c.b16 %v785, %v785
        %v788 = vpack.c.b16 %v786, %v786
        %v818 = vunpack.c.l.b16 %v345
        %v819 = vunpack.c.h.b16 %v345
        %v820 = vunpack.c.l.b16 %v346
        %v821 = vunpack.c.h.b16 %v346
        %v822 = vunpack.c.l.b16 %v347
        %v823 = vunpack.c.h.b16 %v347
        %v824 = vunpack.c.l.b16 %v348
        %v825 = vunpack.c.h.b16 %v348
        %v826 = vunpack.c.l.b16 %v349
        %v827 = vunpack.c.h.b16 %v349
        %v828 = vunpack.c.l.b16 %v350
        %v829 = vunpack.c.h.b16 %v350
        %v830 = vunpack.c.l.b16 %v351
        %v831 = vunpack.c.h.b16 %v351
        %v832 = vunpack.c.l.b16 %v352
        %v833 = vunpack.c.h.b16 %v352
        %v834 = vunpack.c.l.b16 %v353
        %v835 = vunpack.c.h.b16 %v353
        %v836 = vunpack.c.l.b16 %v354
        %v837 = vunpack.c.h.b16 %v354
        %v838 = vunpack.c.l.b16 %v355
        %v839 = vunpack.c.h.b16 %v355
        %v840 = vunpack.c.l.b16 %v356
        %v841 = vunpack.c.h.b16 %v356
        %v842 = vunpack.c.l.b16 %v357
        %v843 = vunpack.c.h.b16 %v357
        %v844 = vunpack.c.l.b16 %v358
        %v845 = vunpack.c.h.b16 %v358
        %v846 = vunpack.c.l.b16 %v359
        %v847 = vunpack.c.h.b16 %v359
        %v848 = vunpack.c.l.b16 %v360
        %v849 = vunpack.c.h.b16 %v360
        %v850 = vunpack.c.l.b16 %v361
        %v851 = vunpack.c.h.b16 %v361
        %v852 = vunpack.c.l.b16 %v362
        %v853 = vunpack.c.h.b16 %v362
        %v854 = vunpack.c.l.b16 %v363
        %v855 = vunpack.c.h.b16 %v363
        %v856 = vunpack.c.l.b16 %v364
        %v857 = vunpack.c.h.b16 %v364
        %v858 = vunpack.c.l.b16 %v365
        %v859 = vunpack.c.h.b16 %v365
        %v860 = vunpack.c.l.b16 %v366
        %v861 = vunpack.c.h.b16 %v366
        %v862 = vunpack.c.l.b16 %v367
        %v863 = vunpack.c.h.b16 %v367
        %v864 = vunpack.c.l.b16 %v368
        %v865 = vunpack.c.h.b16 %v368
        %v866 = vpack.c.b16 %v820, %v818
        %v867 = vpack.c.b16 %v821, %v819
        %v868 = vpack.c.b16 %v824, %v822
        %v869 = vpack.c.b16 %v825, %v823
        %v870 = vpack.c.b16 %v828, %v826
        %v871 = vpack.c.b16 %v829, %v827
        %v872 = vpack.c.b16 %v832, %v830
        %v873 = vpack.c.b16 %v833, %v831
        %v874 = vpack.c.b16 %v836, %v834
        %v875 = vpack.c.b16 %v837, %v835
        %v876 = vpack.c.b16 %v840, %v838
        %v877 = vpack.c.b16 %v841, %v839
        %v878 = vpack.c.b16 %v844, %v842
        %v879 = vpack.c.b16 %v845, %v843
        %v880 = vpack.c.b16 %v848, %v846
        %v881 = vpack.c.b16 %v849, %v847
        %v882 = vpack.c.b16 %v852, %v850
        %v883 = vpack.c.b16 %v853, %v851
        %v884 = vpack.c.b16 %v856, %v854
        %v885 = vpack.c.b16 %v857, %v855
        %v886 = vpack.c.b16 %v860, %v858
        %v887 = vpack.c.b16 %v861, %v859
        %v888 = vpack.c.b16 %v864, %v862
        %v889 = vpack.c.b16 %v865, %v863
        %v914 = vsel %vm636, %v423, 0
        %v916 = vsel %vm636, %v425, 0
        %v918 = vsel %vm636, %v427, 0
        %v920 = vsel %vm636, %v429, 0
        %v923 = vsel %vm636, %v788, 0
        %925 = vmatpush.bf16.msra.mxu0 %v880
        %926 = vmatpush.bf16.msra.mxu0 %v878
        %927 = vmatpush.bf16.msra.mxu0 %v876
        %928 = vmatpush.bf16.msra.mxu0 %v874
        %929 = vmatpush.bf16.msra.mxu0 %v872
        %930 = vmatpush.bf16.msra.mxu0 %v870
        %931 = vmatpush.bf16.msra.mxu0 %v868
        %932 = vmatpush.bf16.msra.mxu0 %v866
        %933 = vmatmul.bf16.gmra.mxu0 %v422
        %v934 = vpop.f32.mrf.mxu0
        %v935 = vadd.f32 %v695, %v934
        %v936 = vpop.f32.mrf.mxu0
        %v937 = vadd.f32 %v697, %v936
        %938 = vmatmul.bf16.gmra.mxu0 %v424
        %v939 = vpop.f32.mrf.mxu0
        %v940 = vadd.f32 %v700, %v939
        %v941 = vpop.f32.mrf.mxu0
        %v942 = vadd.f32 %v702, %v941
        %943 = vmatmul.bf16.gmra.mxu0 %v426
        %v944 = vpop.f32.mrf.mxu0
        %v945 = vadd.f32 %v705, %v944
        %v946 = vpop.f32.mrf.mxu0
        %v947 = vadd.f32 %v707, %v946
        %948 = vmatmul.bf16.gmra.mxu0 %v428
        %v949 = vpop.f32.mrf.mxu0
        %v950 = vadd.f32 %v710, %v949
        %v951 = vpop.f32.mrf.mxu0
        %v952 = vadd.f32 %v712, %v951
        %953 = vmatmul.bf16.gmra.mxu0 %v787
        %v954 = vpop.f32.mrf.mxu0
        %v955 = vadd.f32 %v715, %v954
        %v956 = vpop.f32.mrf.mxu0
        %957 = vdwg.mxu0
        %958 = vmatpush.bf16.msra.mxu0 0
        %959 = vmatpush.bf16.msra.mxu0 0
        %960 = vmatpush.bf16.msra.mxu0 0
        %961 = vmatpush.bf16.msra.mxu0 0
        %962 = vmatpush.bf16.msra.mxu0 %v888
        %963 = vmatpush.bf16.msra.mxu0 %v886
        %964 = vmatpush.bf16.msra.mxu0 %v884
        %965 = vmatpush.bf16.msra.mxu0 %v882
        %966 = vmatmul.bf16.gmra.mxu0 %v914
        %v967 = vpop.f32.mrf.mxu0
        %v968 = vadd.f32 %v935, %v967
        %v969 = vpop.f32.mrf.mxu0
        %v970 = vadd.f32 %v937, %v969
        %971 = vmatmul.bf16.gmra.mxu0 %v916
        %v972 = vpop.f32.mrf.mxu0
        %v973 = vadd.f32 %v940, %v972
        %v974 = vpop.f32.mrf.mxu0
        %v975 = vadd.f32 %v942, %v974
        %976 = vmatmul.bf16.gmra.mxu0 %v918
        %v977 = vpop.f32.mrf.mxu0
        %v978 = vadd.f32 %v945, %v977
        %v979 = vpop.f32.mrf.mxu0
        %v980 = vadd.f32 %v947, %v979
        %981 = vmatmul.bf16.gmra.mxu0 %v920
        %v982 = vpop.f32.mrf.mxu0
        %v983 = vadd.f32 %v950, %v982
        %v984 = vpop.f32.mrf.mxu0
        %v985 = vadd.f32 %v952, %v984
        %986 = vmatmul.bf16.gmra.mxu0 %v923
        %v987 = vpop.f32.mrf.mxu0
        %v988 = vadd.f32 %v955, %v987
        %v989 = vpop.f32.mrf.mxu0
        %990 = vdwg.mxu0
        %991 = vmatpush.bf16.msra.mxu0 %v881
        %992 = vmatpush.bf16.msra.mxu0 %v879
        %993 = vmatpush.bf16.msra.mxu0 %v877
        %994 = vmatpush.bf16.msra.mxu0 %v875
        %995 = vmatpush.bf16.msra.mxu0 %v873
        %996 = vmatpush.bf16.msra.mxu0 %v871
        %997 = vmatpush.bf16.msra.mxu0 %v869
        %998 = vmatpush.bf16.msra.mxu0 %v867
        %999 = vmatmul.bf16.gmra.mxu0 %v422
        %v1000 = vpop.f32.mrf.mxu0
        %v1001 = vadd.f32 %v761, %v1000
        %v1002 = vpop.f32.mrf.mxu0
        %v1003 = vadd.f32 %v763, %v1002
        %1004 = vmatmul.bf16.gmra.mxu0 %v424
        %v1005 = vpop.f32.mrf.mxu0
        %v1006 = vadd.f32 %v766, %v1005
        %v1007 = vpop.f32.mrf.mxu0
        %v1008 = vadd.f32 %v768, %v1007
        %1009 = vmatmul.bf16.gmra.mxu0 %v426
        %v1010 = vpop.f32.mrf.mxu0
        %v1011 = vadd.f32 %v771, %v1010
        %v1012 = vpop.f32.mrf.mxu0
        %v1013 = vadd.f32 %v773, %v1012
        %1014 = vmatmul.bf16.gmra.mxu0 %v428
        %v1015 = vpop.f32.mrf.mxu0
        %v1016 = vadd.f32 %v776, %v1015
        %v1017 = vpop.f32.mrf.mxu0
        %v1018 = vadd.f32 %v778, %v1017
        %1019 = vmatmul.bf16.gmra.mxu0 %v787
        %v1020 = vpop.f32.mrf.mxu0
        %v1021 = vadd.f32 %v781, %v1020
        %v1022 = vpop.f32.mrf.mxu0
        %1023 = vdwg.mxu0
        %1024 = vmatpush.bf16.msra.mxu0 0
        %1025 = vmatpush.bf16.msra.mxu0 0
        %1026 = vmatpush.bf16.msra.mxu0 0
        %1027 = vmatpush.bf16.msra.mxu0 0
        %1028 = vmatpush.bf16.msra.mxu0 %v889
        %1029 = vmatpush.bf16.msra.mxu0 %v887
        %1030 = vmatpush.bf16.msra.mxu0 %v885
        %1031 = vmatpush.bf16.msra.mxu0 %v883
        %1032 = vmatmul.bf16.gmra.mxu0 %v914
        %v1033 = vpop.f32.mrf.mxu0
        %v1034 = vadd.f32 %v1001, %v1033
        %v1035 = vpop.f32.mrf.mxu0
        %v1036 = vadd.f32 %v1003, %v1035
        %1037 = vmatmul.bf16.gmra.mxu0 %v916
        %v1038 = vpop.f32.mrf.mxu0
        %v1039 = vadd.f32 %v1006, %v1038
        %v1040 = vpop.f32.mrf.mxu0
        %v1041 = vadd.f32 %v1008, %v1040
        %1042 = vmatmul.bf16.gmra.mxu0 %v918
        %v1043 = vpop.f32.mrf.mxu0
        %v1044 = vadd.f32 %v1011, %v1043
        %v1045 = vpop.f32.mrf.mxu0
        %v1046 = vadd.f32 %v1013, %v1045
        %1047 = vmatmul.bf16.gmra.mxu0 %v920
        %v1048 = vpop.f32.mrf.mxu0
        %v1049 = vadd.f32 %v1016, %v1048
        %v1050 = vpop.f32.mrf.mxu0
        %v1051 = vadd.f32 %v1018, %v1050
        %1052 = vmatmul.bf16.gmra.mxu0 %v923
        %v1053 = vpop.f32.mrf.mxu0
        %v1054 = vadd.f32 %v1021, %v1053
        %v1055 = vpop.f32.mrf.mxu0
        %1056 = vdwg.mxu0
        %v1057 = vld [vmem:[%s333] sm:$0xee]
        %s1058 = scalar_lea.vmem %s1, 384
        %v1059 = vld [vmem:[%s1058] sm:$0xff]
        %v1060 = vld [vmem:[%s1058 + $0x8] sm:$0xff]
        %v1061 = vld [vmem:[%s1058 + $0x10] sm:$0xff]
        %v1062 = vld [vmem:[%s1058 + $0x18] sm:$0xff]
        %v1063 = vld [vmem:[%s1058 + $0x20] sm:$0xff]
        %v1064 = vld [vmem:[%s1058 + $0x28] sm:$0xff]
        %v1065 = vld [vmem:[%s1058 + $0x30] sm:$0xff]
        %v1066 = vld [vmem:[%s1058 + $0x38] sm:$0xff]
        %v1067 = vld [vmem:[%s1058 + $0x40] sm:$0xff]
        %v1068 = vld [vmem:[%s1058 + $0x48] sm:$0xff]
        %v1069 = vld [vmem:[%s1058 + $0x50] sm:$0xff]
        %v1070 = vld [vmem:[%s1058 + $0x58] sm:$0xff]
        %v1071 = vld [vmem:[%s1058 + $0x60] sm:$0xff]
        %v1072 = vld [vmem:[%s1058 + $0x68] sm:$0xff]
        %v1073 = vld [vmem:[%s1058 + $0x70] sm:$0xff]
        %v1074 = vld [vmem:[%s1058 + $0x78] sm:$0xff]
        %v1075 = vld [vmem:[%s1058 + $0x80] sm:$0xff]
        %v1076 = vld [vmem:[%s1058 + $0x88] sm:$0xff]
        %v1077 = vld [vmem:[%s1058 + $0x90] sm:$0xff]
        %v1078 = vld [vmem:[%s1058 + $0x98] sm:$0xff]
        %v1079 = vld [vmem:[%s1058 + $0xa0] sm:$0xff]
        %v1080 = vld [vmem:[%s1058 + $0xa8] sm:$0xff]
        %v1081 = vld [vmem:[%s1058 + $0xb0] sm:$0xff]
        %v1082 = vld [vmem:[%s1058 + $0xb8] sm:$0xff]
        %v1084 = vunpack.c.l.b16 %v1057
        %v1085 = vunpack.c.h.b16 %v1057
        %v1086 = vpack.c.b16 %v406, %v1084
        %v1087 = vpack.c.b16 %v407, %v1085
        %vm1088 = vcmask 1046528
        %v1089 = vrot.slane %v1086, 1
        %v1090 = vrot.slane %v424, 1
        %v1091 = vsel %vm1088, %v1089, %v1090
        %v1092 = vrot.slane %v1087, 1
        %v1093 = vrot.slane %v425, 1
        %v1094 = vsel %vm1088, %v1092, %v1093
        %v1095 = vrot.slane %v426, 1
        %v1096 = vsel %vm1088, %v1090, %v1095
        %v1097 = vrot.slane %v427, 1
        %v1098 = vsel %vm1088, %v1093, %v1097
        %v1099 = vrot.slane %v428, 1
        %v1100 = vsel %vm1088, %v1095, %v1099
        %v1101 = vrot.slane %v429, 1
        %v1102 = vsel %vm1088, %v1097, %v1101
        %v1103 = vrot.slane %v430, 1
        %v1104 = vsel %vm1088, %v1099, %v1103
        %v1105 = vrot.slane %v431, 1
        %v1106 = vsel %vm1088, %v1101, %v1105
        %v1136 = vunpack.c.l.b16 %v1059
        %v1137 = vunpack.c.h.b16 %v1059
        %v1138 = vunpack.c.l.b16 %v1060
        %v1139 = vunpack.c.h.b16 %v1060
        %v1140 = vunpack.c.l.b16 %v1061
        %v1141 = vunpack.c.h.b16 %v1061
        %v1142 = vunpack.c.l.b16 %v1062
        %v1143 = vunpack.c.h.b16 %v1062
        %v1144 = vunpack.c.l.b16 %v1063
        %v1145 = vunpack.c.h.b16 %v1063
        %v1146 = vunpack.c.l.b16 %v1064
        %v1147 = vunpack.c.h.b16 %v1064
        %v1148 = vunpack.c.l.b16 %v1065
        %v1149 = vunpack.c.h.b16 %v1065
        %v1150 = vunpack.c.l.b16 %v1066
        %v1151 = vunpack.c.h.b16 %v1066
        %v1152 = vunpack.c.l.b16 %v1067
        %v1153 = vunpack.c.h.b16 %v1067
        %v1154 = vunpack.c.l.b16 %v1068
        %v1155 = vunpack.c.h.b16 %v1068
        %v1156 = vunpack.c.l.b16 %v1069
        %v1157 = vunpack.c.h.b16 %v1069
        %v1158 = vunpack.c.l.b16 %v1070
        %v1159 = vunpack.c.h.b16 %v1070
        %v1160 = vunpack.c.l.b16 %v1071
        %v1161 = vunpack.c.h.b16 %v1071
        %v1162 = vunpack.c.l.b16 %v1072
        %v1163 = vunpack.c.h.b16 %v1072
        %v1164 = vunpack.c.l.b16 %v1073
        %v1165 = vunpack.c.h.b16 %v1073
        %v1166 = vunpack.c.l.b16 %v1074
        %v1167 = vunpack.c.h.b16 %v1074
        %v1168 = vunpack.c.l.b16 %v1075
        %v1169 = vunpack.c.h.b16 %v1075
        %v1170 = vunpack.c.l.b16 %v1076
        %v1171 = vunpack.c.h.b16 %v1076
        %v1172 = vunpack.c.l.b16 %v1077
        %v1173 = vunpack.c.h.b16 %v1077
        %v1174 = vunpack.c.l.b16 %v1078
        %v1175 = vunpack.c.h.b16 %v1078
        %v1176 = vunpack.c.l.b16 %v1079
        %v1177 = vunpack.c.h.b16 %v1079
        %v1178 = vunpack.c.l.b16 %v1080
        %v1179 = vunpack.c.h.b16 %v1080
        %v1180 = vunpack.c.l.b16 %v1081
        %v1181 = vunpack.c.h.b16 %v1081
        %v1182 = vunpack.c.l.b16 %v1082
        %v1183 = vunpack.c.h.b16 %v1082
        %v1184 = vpack.c.b16 %v1138, %v1136
        %v1185 = vpack.c.b16 %v1139, %v1137
        %v1186 = vpack.c.b16 %v1142, %v1140
        %v1187 = vpack.c.b16 %v1143, %v1141
        %v1188 = vpack.c.b16 %v1146, %v1144
        %v1189 = vpack.c.b16 %v1147, %v1145
        %v1190 = vpack.c.b16 %v1150, %v1148
        %v1191 = vpack.c.b16 %v1151, %v1149
        %v1192 = vpack.c.b16 %v1154, %v1152
        %v1193 = vpack.c.b16 %v1155, %v1153
        %v1194 = vpack.c.b16 %v1158, %v1156
        %v1195 = vpack.c.b16 %v1159, %v1157
        %v1196 = vpack.c.b16 %v1162, %v1160
        %v1197 = vpack.c.b16 %v1163, %v1161
        %v1198 = vpack.c.b16 %v1166, %v1164
        %v1199 = vpack.c.b16 %v1167, %v1165
        %v1200 = vpack.c.b16 %v1170, %v1168
        %v1201 = vpack.c.b16 %v1171, %v1169
        %v1202 = vpack.c.b16 %v1174, %v1172
        %v1203 = vpack.c.b16 %v1175, %v1173
        %v1204 = vpack.c.b16 %v1178, %v1176
        %v1205 = vpack.c.b16 %v1179, %v1177
        %v1206 = vpack.c.b16 %v1182, %v1180
        %v1207 = vpack.c.b16 %v1183, %v1181
        %v1233 = vsel %vm636, %v1094, 0
        %v1236 = vsel %vm636, %v1098, 0
        %v1239 = vsel %vm636, %v1102, 0
        %v1242 = vsel %vm636, %v1106, 0
        %v1245 = vsel %vm636, %v1105, 0
        %1247 = vmatpush.bf16.msra.mxu0 %v1198
        %1248 = vmatpush.bf16.msra.mxu0 %v1196
        %1249 = vmatpush.bf16.msra.mxu0 %v1194
        %1250 = vmatpush.bf16.msra.mxu0 %v1192
        %1251 = vmatpush.bf16.msra.mxu0 %v1190
        %1252 = vmatpush.bf16.msra.mxu0 %v1188
        %1253 = vmatpush.bf16.msra.mxu0 %v1186
        %1254 = vmatpush.bf16.msra.mxu0 %v1184
        %1255 = vmatmul.bf16.gmra.mxu0 %v1091
        %v1256 = vpop.f32.mrf.mxu0
        %v1257 = vadd.f32 0.0, %v1256
        %v1258 = vpop.f32.mrf.mxu0
        %v1259 = vadd.f32 0.0, %v1258
        %1260 = vmatmul.bf16.gmra.mxu0 %v1096
        %v1261 = vpop.f32.mrf.mxu0
        %v1262 = vadd.f32 0.0, %v1261
        %v1263 = vpop.f32.mrf.mxu0
        %v1264 = vadd.f32 0.0, %v1263
        %1265 = vmatmul.bf16.gmra.mxu0 %v1100
        %v1266 = vpop.f32.mrf.mxu0
        %v1267 = vadd.f32 0.0, %v1266
        %v1268 = vpop.f32.mrf.mxu0
        %v1269 = vadd.f32 0.0, %v1268
        %1270 = vmatmul.bf16.gmra.mxu0 %v1104
        %v1271 = vpop.f32.mrf.mxu0
        %v1272 = vadd.f32 0.0, %v1271
        %v1273 = vpop.f32.mrf.mxu0
        %v1274 = vadd.f32 0.0, %v1273
        %1275 = vmatmul.bf16.gmra.mxu0 %v1103
        %v1276 = vpop.f32.mrf.mxu0
        %v1277 = vadd.f32 0.0, %v1276
        %v1278 = vpop.f32.mrf.mxu0
        %1279 = vdwg.mxu0
        %1280 = vmatpush.bf16.msra.mxu0 0
        %1281 = vmatpush.bf16.msra.mxu0 0
        %1282 = vmatpush.bf16.msra.mxu0 0
        %1283 = vmatpush.bf16.msra.mxu0 0
        %1284 = vmatpush.bf16.msra.mxu0 %v1206
        %1285 = vmatpush.bf16.msra.mxu0 %v1204
        %1286 = vmatpush.bf16.msra.mxu0 %v1202
        %1287 = vmatpush.bf16.msra.mxu0 %v1200
        %1288 = vmatmul.bf16.gmra.mxu0 %v1233
        %v1289 = vpop.f32.mrf.mxu0
        %v1290 = vadd.f32 %v1257, %v1289
        %v1291 = vpop.f32.mrf.mxu0
        %v1292 = vadd.f32 %v1259, %v1291
        %1293 = vmatmul.bf16.gmra.mxu0 %v1236
        %v1294 = vpop.f32.mrf.mxu0
        %v1295 = vadd.f32 %v1262, %v1294
        %v1296 = vpop.f32.mrf.mxu0
        %v1297 = vadd.f32 %v1264, %v1296
        %1298 = vmatmul.bf16.gmra.mxu0 %v1239
        %v1299 = vpop.f32.mrf.mxu0
        %v1300 = vadd.f32 %v1267, %v1299
        %v1301 = vpop.f32.mrf.mxu0
        %v1302 = vadd.f32 %v1269, %v1301
        %1303 = vmatmul.bf16.gmra.mxu0 %v1242
        %v1304 = vpop.f32.mrf.mxu0
        %v1305 = vadd.f32 %v1272, %v1304
        %v1306 = vpop.f32.mrf.mxu0
        %v1307 = vadd.f32 %v1274, %v1306
        %1308 = vmatmul.bf16.gmra.mxu0 %v1245
        %v1309 = vpop.f32.mrf.mxu0
        %v1310 = vadd.f32 %v1277, %v1309
        %v1311 = vpop.f32.mrf.mxu0
        %1312 = vdwg.mxu0
        %1313 = vmatpush.bf16.msra.mxu0 %v1199
        %1314 = vmatpush.bf16.msra.mxu0 %v1197
        %1315 = vmatpush.bf16.msra.mxu0 %v1195
        %1316 = vmatpush.bf16.msra.mxu0 %v1193
        %1317 = vmatpush.bf16.msra.mxu0 %v1191
        %1318 = vmatpush.bf16.msra.mxu0 %v1189
        %1319 = vmatpush.bf16.msra.mxu0 %v1187
        %1320 = vmatpush.bf16.msra.mxu0 %v1185
        %1321 = vmatmul.bf16.gmra.mxu0 %v1091
        %v1322 = vpop.f32.mrf.mxu0
        %v1323 = vadd.f32 0.0, %v1322
        %v1324 = vpop.f32.mrf.mxu0
        %v1325 = vadd.f32 0.0, %v1324
        %1326 = vmatmul.bf16.gmra.mxu0 %v1096
        %v1327 = vpop.f32.mrf.mxu0
        %v1328 = vadd.f32 0.0, %v1327
        %v1329 = vpop.f32.mrf.mxu0
        %v1330 = vadd.f32 0.0, %v1329
        %1331 = vmatmul.bf16.gmra.mxu0 %v1100
        %v1332 = vpop.f32.mrf.mxu0
        %v1333 = vadd.f32 0.0, %v1332
        %v1334 = vpop.f32.mrf.mxu0
        %v1335 = vadd.f32 0.0, %v1334
        %1336 = vmatmul.bf16.gmra.mxu0 %v1104
        %v1337 = vpop.f32.mrf.mxu0
        %v1338 = vadd.f32 0.0, %v1337
        %v1339 = vpop.f32.mrf.mxu0
        %v1340 = vadd.f32 0.0, %v1339
        %1341 = vmatmul.bf16.gmra.mxu0 %v1103
        %v1342 = vpop.f32.mrf.mxu0
        %v1343 = vadd.f32 0.0, %v1342
        %v1344 = vpop.f32.mrf.mxu0
        %1345 = vdwg.mxu0
        %1346 = vmatpush.bf16.msra.mxu0 0
        %1347 = vmatpush.bf16.msra.mxu0 0
        %1348 = vmatpush.bf16.msra.mxu0 0
        %1349 = vmatpush.bf16.msra.mxu0 0
        %1350 = vmatpush.bf16.msra.mxu0 %v1207
        %1351 = vmatpush.bf16.msra.mxu0 %v1205
        %1352 = vmatpush.bf16.msra.mxu0 %v1203
        %1353 = vmatpush.bf16.msra.mxu0 %v1201
        %1354 = vmatmul.bf16.gmra.mxu0 %v1233
        %v1355 = vpop.f32.mrf.mxu0
        %v1356 = vadd.f32 %v1323, %v1355
        %v1357 = vpop.f32.mrf.mxu0
        %v1358 = vadd.f32 %v1325, %v1357
        %1359 = vmatmul.bf16.gmra.mxu0 %v1236
        %v1360 = vpop.f32.mrf.mxu0
        %v1361 = vadd.f32 %v1328, %v1360
        %v1362 = vpop.f32.mrf.mxu0
        %v1363 = vadd.f32 %v1330, %v1362
        %1364 = vmatmul.bf16.gmra.mxu0 %v1239
        %v1365 = vpop.f32.mrf.mxu0
        %v1366 = vadd.f32 %v1333, %v1365
        %v1367 = vpop.f32.mrf.mxu0
        %v1368 = vadd.f32 %v1335, %v1367
        %1369 = vmatmul.bf16.gmra.mxu0 %v1242
        %v1370 = vpop.f32.mrf.mxu0
        %v1371 = vadd.f32 %v1338, %v1370
        %v1372 = vpop.f32.mrf.mxu0
        %v1373 = vadd.f32 %v1340, %v1372
        %1374 = vmatmul.bf16.gmra.mxu0 %v1245
        %v1375 = vpop.f32.mrf.mxu0
        %v1376 = vadd.f32 %v1343, %v1375
        %v1377 = vpop.f32.mrf.mxu0
        %1378 = vdwg.mxu0
        %v1379 = vadd.f32 %v968, %v1290
        %v1380 = vadd.f32 %v1034, %v1356
        %v1381 = vadd.f32 %v970, %v1292
        %v1382 = vadd.f32 %v1036, %v1358
        %v1383 = vadd.f32 %v973, %v1295
        %v1384 = vadd.f32 %v1039, %v1361
        %v1385 = vadd.f32 %v975, %v1297
        %v1386 = vadd.f32 %v1041, %v1363
        %v1387 = vadd.f32 %v978, %v1300
        %v1388 = vadd.f32 %v1044, %v1366
        %v1389 = vadd.f32 %v980, %v1302
        %v1390 = vadd.f32 %v1046, %v1368
        %v1391 = vadd.f32 %v983, %v1305
        %v1392 = vadd.f32 %v1049, %v1371
        %v1393 = vadd.f32 %v985, %v1307
        %v1394 = vadd.f32 %v1051, %v1373
        %v1395 = vadd.f32 %v988, %v1310
        %v1396 = vadd.f32 %v1054, %v1376
        %v1397 = vmax.f32 %v1379, %v1380
        %v1398 = vmax.f32 %v1381, %v1382
        %v1399 = vmax.f32 %v1383, %v1384
        %v1400 = vmax.f32 %v1385, %v1386
        %v1401 = vmax.f32 %v1387, %v1388
        %v1402 = vmax.f32 %v1389, %v1390
        %v1403 = vmax.f32 %v1391, %v1392
        %v1404 = vmax.f32 %v1393, %v1394
        %v1405 = vmax.f32 %v1395, %v1396
        %1406 = vst [vmem:[#allocation2] sm:$0xff] %v1397
        %1407 = vst [vmem:[#allocation2 + $0x8] sm:$0xff] %v1398
        %1408 = vst [vmem:[#allocation2 + $0x10] sm:$0xff] %v1399
        %1409 = vst [vmem:[#allocation2 + $0x18] sm:$0xff] %v1400
        %1410 = vst [vmem:[#allocation2 + $0x20] sm:$0xff] %v1401
        %1411 = vst [vmem:[#allocation2 + $0x28] sm:$0xff] %v1402
        %1412 = vst [vmem:[#allocation2 + $0x30] sm:$0xff] %v1403
        %1413 = vst [vmem:[#allocation2 + $0x38] sm:$0xff] %v1404
        %1414 = vst [vmem:[#allocation2 + $0x40] sm:$0x3f] %v1405
        %v1415 = vld [vmem:[#allocation2] ss:$2 sm:$0xff]
        %s1416 = scalar_lea.vmem [#allocation2], 16
        %v1417 = vld [vmem:[%s1416] ss:$2 sm:$0xff]
        %s1418 = scalar_lea.vmem [#allocation2], 32
        %v1419 = vld [vmem:[%s1418] ss:$2 sm:$0xff]
        %s1420 = scalar_lea.vmem [#allocation2], 48
        %v1421 = vld [vmem:[%s1420] ss:$2 sm:$0xff]
        %s1422 = scalar_lea.vmem [#allocation2], 64
        %v1423 = vld [vmem:[%s1422] ss:$2 sm:$0x7]
        %s1424 = scalar_lea.vmem [#allocation2], 1
        %v1425 = vld [vmem:[%s1424] ss:$2 sm:$0xff]
        %s1426 = scalar_lea.vmem [#allocation2], 17
        %v1427 = vld [vmem:[%s1426] ss:$2 sm:$0xff]
        %s1428 = scalar_lea.vmem [#allocation2], 33
        %v1429 = vld [vmem:[%s1428] ss:$2 sm:$0xff]
        %s1430 = scalar_lea.vmem [#allocation2], 49
        %v1431 = vld [vmem:[%s1430] ss:$2 sm:$0xff]
        %s1432 = scalar_lea.vmem [#allocation2], 65
        %v1433 = vld [vmem:[%s1432] ss:$2 sm:$0x7]
        %v1434 = vmax.f32 %v1415, %v1425
        %v1435 = vmax.f32 %v1417, %v1427
        %v1436 = vmax.f32 %v1419, %v1429
        %v1437 = vmax.f32 %v1421, %v1431
        %v1438 = vmax.f32 %v1423, %v1433
        %v1439 = vld [vmem:[%s4] sm:$0x1]
        %v1440 = vperm.slane %v1439, 0
        %v1441 = vadd.f32 %v1434, %v1440
        %v1442 = vadd.f32 %v1435, %v1440
        %v1443 = vadd.f32 %v1436, %v1440
        %v1444 = vadd.f32 %v1437, %v1440
        %v1445 = vadd.f32 %v1438, %v1440
        %v1446 = vmax.f32 %v1441, 0.0
        %v1447 = vmax.f32 %v1442, 0.0
        %v1448 = vmax.f32 %v1443, 0.0
        %v1449 = vmax.f32 %v1444, 0.0
        %v1450 = vmax.f32 %v1445, 0.0
        %v1451 = vpack.c.bf16 %v1446, %v1446
        %v1452 = vpack.c.bf16 %v1447, %v1447
        %v1453 = vpack.c.bf16 %v1448, %v1448
        %v1454 = vpack.c.bf16 %v1449, %v1449
        %v1455 = vpack.c.bf16 %v1450, %v1450
        %vm1456 = vsmask.f32 256
        %vm1457 = vsmask.f32 4368
        %vm1458 = vmor %vm1456, %vm1457
        %v1460 = vshrl.u32 %v1451, 16
        %v1462 = vrot.slane %v1460, 7
        %v1463 = vshll.u32 %v1451, 16
        %v1465 = vor.u32 %v1462, %v1463
        %v1466 = vrot.slane %v1462, 4
        %v1468 = vshrl.u32 %v1452, 16
        %v1470 = vrot.slane %v1468, 7
        %v1471 = vshll.u32 %v1452, 16
        %v1473 = vor.u32 %v1470, %v1471
        %v1474 = vsel %vm1458, %v1466, %v1473
        %v1475 = vrot.slane %v1470, 4
        %v1477 = vshrl.u32 %v1453, 16
        %v1479 = vrot.slane %v1477, 7
        %v1480 = vshll.u32 %v1453, 16
        %v1482 = vor.u32 %v1479, %v1480
        %v1483 = vsel %vm1458, %v1475, %v1482
        %v1484 = vrot.slane %v1479, 4
        %v1486 = vshrl.u32 %v1454, 16
        %v1488 = vrot.slane %v1486, 7
        %v1489 = vshll.u32 %v1454, 16
        %v1491 = vor.u32 %v1488, %v1489
        %v1492 = vsel %vm1458, %v1484, %v1491
        %v1493 = vrot.slane %v1488, 4
        %v1495 = vshrl.u32 %v1455, 16
        %v1497 = vrot.slane %v1495, 7
        %v1498 = vshll.u32 %v1455, 16
        %v1500 = vor.u32 %v1497, %v1498
        %v1501 = vsel %vm1458, %v1493, %v1500
        %vm1507 = vcmask 1043456
        %vm1508 = vsmask.f32 7938
        %vm1509 = vmand %vm1507, %vm1508
        %v1510 = vld [vmem:[#allocation3] sm:$0xf]
        %v1511 = vsel %vm1509, %v1465, %v1510
        %1512 = vst [vmem:[#allocation3] sm:$0xf] %v1511
        %1513 = vst [vmem:[#allocation3 + $0x4] sm:$0xf] %v1474
        %1514 = vst [vmem:[#allocation3 + $0x8] sm:$0xf] %v1483
        %1515 = vst [vmem:[#allocation3 + $0xc] sm:$0xf] %v1492
        %1516 = vst [vmem:[#allocation3 + $0x10] sm:$0x3] %v1501
        %vm1517 = vcmask 1040384
        %vm1518 = vmand %vm1517, %vm1456
        %v1519 = vld [vmem:[#allocation3] sm:$0x1]
        %v1520 = vsel %vm1518, 0, %v1519
        %1521 = vst [vmem:[#allocation3] sm:$0x1] %v1520
        %vm1522 = vmand %vm1517, %vm1508
        %v1523 = vld [vmem:[#allocation3 + $0x10] sm:$0x1]
        %v1524 = vsel %vm1522, 0, %v1523
        %1525 = vst [vmem:[#allocation3 + $0x10] sm:$0x1] %v1524
        %v1526 = vld [vmem:[#allocation3] sm:$0xf]
        %v1527 = vld [vmem:[#allocation3 + $0x4] sm:$0xf]
        %v1528 = vld [vmem:[#allocation3 + $0x8] sm:$0xf]
        %v1529 = vld [vmem:[#allocation3 + $0xc] sm:$0xf]
        %v1530 = vld [vmem:[#allocation3 + $0x10] sm:$0x1]
        %v1531 = vld [vmem:[%s2] sm:$0xff]
        %v1532 = vld [vmem:[%s2 + $0x8] sm:$0xff]
        %v1533 = vld [vmem:[%s2 + $0x10] sm:$0xff]
        %v1534 = vld [vmem:[%s2 + $0x18] sm:$0xff]
        %v1535 = vld [vmem:[%s2 + $0x20] sm:$0xff]
        %v1536 = vld [vmem:[%s2 + $0x28] sm:$0xff]
        %v1537 = vld [vmem:[%s2 + $0x30] sm:$0xff]
        %v1538 = vld [vmem:[%s2 + $0x38] sm:$0xff]
        %v1539 = vld [vmem:[%s2 + $0x40] sm:$0xff]
        %v1540 = vld [vmem:[%s2 + $0x48] sm:$0xff]
        %v1541 = vld [vmem:[%s2 + $0x50] sm:$0xff]
        %v1542 = vld [vmem:[%s2 + $0x58] sm:$0xff]
        %v1543 = vld [vmem:[%s2 + $0x60] sm:$0xff]
        %v1544 = vld [vmem:[%s2 + $0x68] sm:$0xff]
        %v1545 = vld [vmem:[%s2 + $0x70] sm:$0xff]
        %v1546 = vld [vmem:[%s2 + $0x78] sm:$0xff]
        %v1547 = vld [vmem:[#allocation3 + $0x10] sm:$0x3]
        %s1548 = scalar_lea.vmem %s2, 128
        %v1549 = vld [vmem:[%s1548] sm:$0xff]
        %v1550 = vld [vmem:[%s1548 + $0x8] sm:$0xff]
        %v1551 = vld [vmem:[%s1548 + $0x10] sm:$0xff]
        %v1552 = vld [vmem:[%s1548 + $0x18] sm:$0xff]
        %v1553 = vld [vmem:[%s1548 + $0x20] sm:$0xff]
        %v1554 = vld [vmem:[%s1548 + $0x28] sm:$0xff]
        %v1555 = vld [vmem:[%s1548 + $0x30] sm:$0xff]
        %v1556 = vld [vmem:[%s1548 + $0x38] sm:$0xff]
        %v1557 = vld [vmem:[%s1548 + $0x40] sm:$0xff]
        %v1558 = vld [vmem:[%s1548 + $0x48] sm:$0xff]
        %v1559 = vld [vmem:[%s1548 + $0x50] sm:$0xff]
        %v1560 = vld [vmem:[%s1548 + $0x58] sm:$0xff]
        %v1561 = vld [vmem:[%s1548 + $0x60] sm:$0xff]
        %v1562 = vld [vmem:[%s1548 + $0x68] sm:$0xff]
        %v1563 = vld [vmem:[%s1548 + $0x70] sm:$0xff]
        %v1564 = vld [vmem:[%s1548 + $0x78] sm:$0xff]
        %v1570 = vunpack.c.l.b16 %v1526
        %v1571 = vunpack.c.l.b16 %v1527
        %v1572 = vunpack.c.l.b16 %v1528
        %v1573 = vunpack.c.l.b16 %v1529
        %v1574 = vunpack.c.l.b16 %v1547
        %v1575 = vpack.c.b16 %v1571, %v1570
        %v1576 = vpack.c.b16 %v1573, %v1572
        %v1577 = vpack.c.b16 %v1574, %v1574
        %v1579 = vshrl.u32 %v1575, 16
        %v1581 = vshll.u32 %v1575, 16
        %v1583 = vrot.slane %v1581, 1
        %v1584 = vor.u32 %v1579, %v1583
        %v1586 = vshll.u32 %v1576, 16
        %v1588 = vrot.slane %v1586, 1
        %v1589 = vsel %vm432, %v1584, %v1588
        %v1590 = vshrl.u32 %v1576, 16
        %v1592 = vor.u32 %v1590, %v1588
        %v1594 = vshll.u32 %v1577, 16
        %v1596 = vrot.slane %v1594, 1
        %v1597 = vsel %vm432, %v1592, %v1596
        %v1598 = vshrl.u32 %v1577, 16
        %v1600 = vor.u32 %v1598, %v1596
        %v1620 = vunpack.c.l.b16 %v1549
        %v1621 = vunpack.c.h.b16 %v1549
        %v1622 = vunpack.c.l.b16 %v1550
        %v1623 = vunpack.c.h.b16 %v1550
        %v1624 = vunpack.c.l.b16 %v1551
        %v1625 = vunpack.c.h.b16 %v1551
        %v1626 = vunpack.c.l.b16 %v1552
        %v1627 = vunpack.c.h.b16 %v1552
        %v1628 = vunpack.c.l.b16 %v1553
        %v1629 = vunpack.c.h.b16 %v1553
        %v1630 = vunpack.c.l.b16 %v1554
        %v1631 = vunpack.c.h.b16 %v1554
        %v1632 = vunpack.c.l.b16 %v1555
        %v1633 = vunpack.c.h.b16 %v1555
        %v1634 = vunpack.c.l.b16 %v1556
        %v1635 = vunpack.c.h.b16 %v1556
        %v1636 = vunpack.c.l.b16 %v1557
        %v1637 = vunpack.c.h.b16 %v1557
        %v1638 = vunpack.c.l.b16 %v1558
        %v1639 = vunpack.c.h.b16 %v1558
        %v1640 = vunpack.c.l.b16 %v1559
        %v1641 = vunpack.c.h.b16 %v1559
        %v1642 = vunpack.c.l.b16 %v1560
        %v1643 = vunpack.c.h.b16 %v1560
        %v1644 = vunpack.c.l.b16 %v1561
        %v1645 = vunpack.c.h.b16 %v1561
        %v1646 = vunpack.c.l.b16 %v1562
        %v1647 = vunpack.c.h.b16 %v1562
        %v1648 = vunpack.c.l.b16 %v1563
        %v1649 = vunpack.c.h.b16 %v1563
        %v1650 = vunpack.c.l.b16 %v1564
        %v1651 = vunpack.c.h.b16 %v1564
        %v1652 = vpack.c.b16 %v1622, %v1620
        %v1653 = vpack.c.b16 %v1623, %v1621
        %v1654 = vpack.c.b16 %v1626, %v1624
        %v1655 = vpack.c.b16 %v1627, %v1625
        %v1656 = vpack.c.b16 %v1630, %v1628
        %v1657 = vpack.c.b16 %v1631, %v1629
        %v1658 = vpack.c.b16 %v1634, %v1632
        %v1659 = vpack.c.b16 %v1635, %v1633
        %v1660 = vpack.c.b16 %v1638, %v1636
        %v1661 = vpack.c.b16 %v1639, %v1637
        %v1662 = vpack.c.b16 %v1642, %v1640
        %v1663 = vpack.c.b16 %v1643, %v1641
        %v1664 = vpack.c.b16 %v1646, %v1644
        %v1665 = vpack.c.b16 %v1647, %v1645
        %v1666 = vpack.c.b16 %v1650, %v1648
        %v1667 = vpack.c.b16 %v1651, %v1649
        %1684 = vmatpush.bf16.msra.mxu0 %v1666
        %1685 = vmatpush.bf16.msra.mxu0 %v1664
        %1686 = vmatpush.bf16.msra.mxu0 %v1662
        %1687 = vmatpush.bf16.msra.mxu0 %v1660
        %1688 = vmatpush.bf16.msra.mxu0 %v1658
        %1689 = vmatpush.bf16.msra.mxu0 %v1656
        %1690 = vmatpush.bf16.msra.mxu0 %v1654
        %1691 = vmatpush.bf16.msra.mxu0 %v1652
        %1692 = vmatmul.bf16.gmra.mxu0 %v1589
        %v1693 = vpop.f32.mrf.mxu0
        %v1694 = vadd.f32 0.0, %v1693
        %v1695 = vpop.f32.mrf.mxu0
        %v1696 = vadd.f32 0.0, %v1695
        %1697 = vmatmul.bf16.gmra.mxu0 %v1597
        %v1698 = vpop.f32.mrf.mxu0
        %v1699 = vadd.f32 0.0, %v1698
        %v1700 = vpop.f32.mrf.mxu0
        %v1701 = vadd.f32 0.0, %v1700
        %1702 = vmatmul.bf16.gmra.mxu0 %v1600
        %v1703 = vpop.f32.mrf.mxu0
        %v1704 = vadd.f32 0.0, %v1703
        %v1705 = vpop.f32.mrf.mxu0
        %1706 = vdwg.mxu0
        %1707 = vmatpush.bf16.msra.mxu0 %v1667
        %1708 = vmatpush.bf16.msra.mxu0 %v1665
        %1709 = vmatpush.bf16.msra.mxu0 %v1663
        %1710 = vmatpush.bf16.msra.mxu0 %v1661
        %1711 = vmatpush.bf16.msra.mxu0 %v1659
        %1712 = vmatpush.bf16.msra.mxu0 %v1657
        %1713 = vmatpush.bf16.msra.mxu0 %v1655
        %1714 = vmatpush.bf16.msra.mxu0 %v1653
        %1715 = vmatmul.bf16.gmra.mxu0 %v1589
        %v1716 = vpop.f32.mrf.mxu0
        %v1717 = vadd.f32 0.0, %v1716
        %v1718 = vpop.f32.mrf.mxu0
        %v1719 = vadd.f32 0.0, %v1718
        %1720 = vmatmul.bf16.gmra.mxu0 %v1597
        %v1721 = vpop.f32.mrf.mxu0
        %v1722 = vadd.f32 0.0, %v1721
        %v1723 = vpop.f32.mrf.mxu0
        %v1724 = vadd.f32 0.0, %v1723
        %1725 = vmatmul.bf16.gmra.mxu0 %v1600
        %v1726 = vpop.f32.mrf.mxu0
        %v1727 = vadd.f32 0.0, %v1726
        %v1728 = vpop.f32.mrf.mxu0
        %1729 = vdwg.mxu0
        %v1731 = vunpack.c.l.b16 %v1530
        %v1732 = vpack.c.b16 %v1731, %v1731
        %v1752 = vunpack.c.l.b16 %v1531
        %v1753 = vunpack.c.h.b16 %v1531
        %v1754 = vunpack.c.l.b16 %v1532
        %v1755 = vunpack.c.h.b16 %v1532
        %v1756 = vunpack.c.l.b16 %v1533
        %v1757 = vunpack.c.h.b16 %v1533
        %v1758 = vunpack.c.l.b16 %v1534
        %v1759 = vunpack.c.h.b16 %v1534
        %v1760 = vunpack.c.l.b16 %v1535
        %v1761 = vunpack.c.h.b16 %v1535
        %v1762 = vunpack.c.l.b16 %v1536
        %v1763 = vunpack.c.h.b16 %v1536
        %v1764 = vunpack.c.l.b16 %v1537
        %v1765 = vunpack.c.h.b16 %v1537
        %v1766 = vunpack.c.l.b16 %v1538
        %v1767 = vunpack.c.h.b16 %v1538
        %v1768 = vunpack.c.l.b16 %v1539
        %v1769 = vunpack.c.h.b16 %v1539
        %v1770 = vunpack.c.l.b16 %v1540
        %v1771 = vunpack.c.h.b16 %v1540
        %v1772 = vunpack.c.l.b16 %v1541
        %v1773 = vunpack.c.h.b16 %v1541
        %v1774 = vunpack.c.l.b16 %v1542
        %v1775 = vunpack.c.h.b16 %v1542
        %v1776 = vunpack.c.l.b16 %v1543
        %v1777 = vunpack.c.h.b16 %v1543
        %v1778 = vunpack.c.l.b16 %v1544
        %v1779 = vunpack.c.h.b16 %v1544
        %v1780 = vunpack.c.l.b16 %v1545
        %v1781 = vunpack.c.h.b16 %v1545
        %v1782 = vunpack.c.l.b16 %v1546
        %v1783 = vunpack.c.h.b16 %v1546
        %v1784 = vpack.c.b16 %v1754, %v1752
        %v1785 = vpack.c.b16 %v1755, %v1753
        %v1786 = vpack.c.b16 %v1758, %v1756
        %v1787 = vpack.c.b16 %v1759, %v1757
        %v1788 = vpack.c.b16 %v1762, %v1760
        %v1789 = vpack.c.b16 %v1763, %v1761
        %v1790 = vpack.c.b16 %v1766, %v1764
        %v1791 = vpack.c.b16 %v1767, %v1765
        %v1792 = vpack.c.b16 %v1770, %v1768
        %v1793 = vpack.c.b16 %v1771, %v1769
        %v1794 = vpack.c.b16 %v1774, %v1772
        %v1795 = vpack.c.b16 %v1775, %v1773
        %v1796 = vpack.c.b16 %v1778, %v1776
        %v1797 = vpack.c.b16 %v1779, %v1777
        %v1798 = vpack.c.b16 %v1782, %v1780
        %v1799 = vpack.c.b16 %v1783, %v1781
        %1816 = vmatpush.bf16.msra.mxu0 %v1798
        %1817 = vmatpush.bf16.msra.mxu0 %v1796
        %1818 = vmatpush.bf16.msra.mxu0 %v1794
        %1819 = vmatpush.bf16.msra.mxu0 %v1792
        %1820 = vmatpush.bf16.msra.mxu0 %v1790
        %1821 = vmatpush.bf16.msra.mxu0 %v1788
        %1822 = vmatpush.bf16.msra.mxu0 %v1786
        %1823 = vmatpush.bf16.msra.mxu0 %v1784
        %1824 = vmatmul.bf16.gmra.mxu0 %v1575
        %v1825 = vpop.f32.mrf.mxu0
        %v1826 = vadd.f32 %v1694, %v1825
        %v1827 = vpop.f32.mrf.mxu0
        %v1828 = vadd.f32 %v1696, %v1827
        %1829 = vmatmul.bf16.gmra.mxu0 %v1576
        %v1830 = vpop.f32.mrf.mxu0
        %v1831 = vadd.f32 %v1699, %v1830
        %v1832 = vpop.f32.mrf.mxu0
        %v1833 = vadd.f32 %v1701, %v1832
        %1834 = vmatmul.bf16.gmra.mxu0 %v1732
        %v1835 = vpop.f32.mrf.mxu0
        %v1836 = vadd.f32 %v1704, %v1835
        %v1837 = vpop.f32.mrf.mxu0
        %1838 = vdwg.mxu0
        %1839 = vmatpush.bf16.msra.mxu0 %v1799
        %1840 = vmatpush.bf16.msra.mxu0 %v1797
        %1841 = vmatpush.bf16.msra.mxu0 %v1795
        %1842 = vmatpush.bf16.msra.mxu0 %v1793
        %1843 = vmatpush.bf16.msra.mxu0 %v1791
        %1844 = vmatpush.bf16.msra.mxu0 %v1789
        %1845 = vmatpush.bf16.msra.mxu0 %v1787
        %1846 = vmatpush.bf16.msra.mxu0 %v1785
        %1847 = vmatmul.bf16.gmra.mxu0 %v1575
        %v1848 = vpop.f32.mrf.mxu0
        %v1849 = vadd.f32 %v1717, %v1848
        %v1850 = vpop.f32.mrf.mxu0
        %v1851 = vadd.f32 %v1719, %v1850
        %1852 = vmatmul.bf16.gmra.mxu0 %v1576
        %v1853 = vpop.f32.mrf.mxu0
        %v1854 = vadd.f32 %v1722, %v1853
        %v1855 = vpop.f32.mrf.mxu0
        %v1856 = vadd.f32 %v1724, %v1855
        %1857 = vmatmul.bf16.gmra.mxu0 %v1732
        %v1858 = vpop.f32.mrf.mxu0
        %v1859 = vadd.f32 %v1727, %v1858
        %v1860 = vpop.f32.mrf.mxu0
        %1861 = vdwg.mxu0
        %v1862 = vld [vmem:[#allocation3] sm:$0xe]
        %s1863 = scalar_lea.vmem %s2, 256
        %v1864 = vld [vmem:[%s1863] sm:$0xff]
        %v1865 = vld [vmem:[%s1863 + $0x8] sm:$0xff]
        %v1866 = vld [vmem:[%s1863 + $0x10] sm:$0xff]
        %v1867 = vld [vmem:[%s1863 + $0x18] sm:$0xff]
        %v1868 = vld [vmem:[%s1863 + $0x20] sm:$0xff]
        %v1869 = vld [vmem:[%s1863 + $0x28] sm:$0xff]
        %v1870 = vld [vmem:[%s1863 + $0x30] sm:$0xff]
        %v1871 = vld [vmem:[%s1863 + $0x38] sm:$0xff]
        %v1872 = vld [vmem:[%s1863 + $0x40] sm:$0xff]
        %v1873 = vld [vmem:[%s1863 + $0x48] sm:$0xff]
        %v1874 = vld [vmem:[%s1863 + $0x50] sm:$0xff]
        %v1875 = vld [vmem:[%s1863 + $0x58] sm:$0xff]
        %v1876 = vld [vmem:[%s1863 + $0x60] sm:$0xff]
        %v1877 = vld [vmem:[%s1863 + $0x68] sm:$0xff]
        %v1878 = vld [vmem:[%s1863 + $0x70] sm:$0xff]
        %v1879 = vld [vmem:[%s1863 + $0x78] sm:$0xff]
        %v1881 = vunpack.c.l.b16 %v1862
        %v1882 = vpack.c.b16 %v1571, %v1881
        %v1883 = vrot.slane %v1882, 1
        %v1884 = vrot.slane %v1576, 1
        %v1885 = vsel %vm1088, %v1883, %v1884
        %v1886 = vrot.slane %v1577, 1
        %v1887 = vsel %vm1088, %v1884, %v1886
        %v1907 = vunpack.c.l.b16 %v1864
        %v1908 = vunpack.c.h.b16 %v1864
        %v1909 = vunpack.c.l.b16 %v1865
        %v1910 = vunpack.c.h.b16 %v1865
        %v1911 = vunpack.c.l.b16 %v1866
        %v1912 = vunpack.c.h.b16 %v1866
        %v1913 = vunpack.c.l.b16 %v1867
        %v1914 = vunpack.c.h.b16 %v1867
        %v1915 = vunpack.c.l.b16 %v1868
        %v1916 = vunpack.c.h.b16 %v1868
        %v1917 = vunpack.c.l.b16 %v1869
        %v1918 = vunpack.c.h.b16 %v1869
        %v1919 = vunpack.c.l.b16 %v1870
        %v1920 = vunpack.c.h.b16 %v1870
        %v1921 = vunpack.c.l.b16 %v1871
        %v1922 = vunpack.c.h.b16 %v1871
        %v1923 = vunpack.c.l.b16 %v1872
        %v1924 = vunpack.c.h.b16 %v1872
        %v1925 = vunpack.c.l.b16 %v1873
        %v1926 = vunpack.c.h.b16 %v1873
        %v1927 = vunpack.c.l.b16 %v1874
        %v1928 = vunpack.c.h.b16 %v1874
        %v1929 = vunpack.c.l.b16 %v1875
        %v1930 = vunpack.c.h.b16 %v1875
        %v1931 = vunpack.c.l.b16 %v1876
        %v1932 = vunpack.c.h.b16 %v1876
        %v1933 = vunpack.c.l.b16 %v1877
        %v1934 = vunpack.c.h.b16 %v1877
        %v1935 = vunpack.c.l.b16 %v1878
        %v1936 = vunpack.c.h.b16 %v1878
        %v1937 = vunpack.c.l.b16 %v1879
        %v1938 = vunpack.c.h.b16 %v1879
        %v1939 = vpack.c.b16 %v1909, %v1907
        %v1940 = vpack.c.b16 %v1910, %v1908
        %v1941 = vpack.c.b16 %v1913, %v1911
        %v1942 = vpack.c.b16 %v1914, %v1912
        %v1943 = vpack.c.b16 %v1917, %v1915
        %v1944 = vpack.c.b16 %v1918, %v1916
        %v1945 = vpack.c.b16 %v1921, %v1919
        %v1946 = vpack.c.b16 %v1922, %v1920
        %v1947 = vpack.c.b16 %v1925, %v1923
        %v1948 = vpack.c.b16 %v1926, %v1924
        %v1949 = vpack.c.b16 %v1929, %v1927
        %v1950 = vpack.c.b16 %v1930, %v1928
        %v1951 = vpack.c.b16 %v1933, %v1931
        %v1952 = vpack.c.b16 %v1934, %v1932
        %v1953 = vpack.c.b16 %v1937, %v1935
        %v1954 = vpack.c.b16 %v1938, %v1936
        %1971 = vmatpush.bf16.msra.mxu0 %v1953
        %1972 = vmatpush.bf16.msra.mxu0 %v1951
        %1973 = vmatpush.bf16.msra.mxu0 %v1949
        %1974 = vmatpush.bf16.msra.mxu0 %v1947
        %1975 = vmatpush.bf16.msra.mxu0 %v1945
        %1976 = vmatpush.bf16.msra.mxu0 %v1943
        %1977 = vmatpush.bf16.msra.mxu0 %v1941
        %1978 = vmatpush.bf16.msra.mxu0 %v1939
        %1979 = vmatmul.bf16.gmra.mxu0 %v1885
        %v1980 = vpop.f32.mrf.mxu0
        %v1981 = vadd.f32 0.0, %v1980
        %v1982 = vpop.f32.mrf.mxu0
        %v1983 = vadd.f32 0.0, %v1982
        %1984 = vmatmul.bf16.gmra.mxu0 %v1887
        %v1985 = vpop.f32.mrf.mxu0
        %v1986 = vadd.f32 0.0, %v1985
        %v1987 = vpop.f32.mrf.mxu0
        %v1988 = vadd.f32 0.0, %v1987
        %1989 = vmatmul.bf16.gmra.mxu0 %v1886
        %v1990 = vpop.f32.mrf.mxu0
        %v1991 = vadd.f32 0.0, %v1990
        %v1992 = vpop.f32.mrf.mxu0
        %1993 = vdwg.mxu0
        %1994 = vmatpush.bf16.msra.mxu0 %v1954
        %1995 = vmatpush.bf16.msra.mxu0 %v1952
        %1996 = vmatpush.bf16.msra.mxu0 %v1950
        %1997 = vmatpush.bf16.msra.mxu0 %v1948
        %1998 = vmatpush.bf16.msra.mxu0 %v1946
        %1999 = vmatpush.bf16.msra.mxu0 %v1944
        %2000 = vmatpush.bf16.msra.mxu0 %v1942
        %2001 = vmatpush.bf16.msra.mxu0 %v1940
        %2002 = vmatmul.bf16.gmra.mxu0 %v1885
        %v2003 = vpop.f32.mrf.mxu0
        %v2004 = vadd.f32 0.0, %v2003
        %v2005 = vpop.f32.mrf.mxu0
        %v2006 = vadd.f32 0.0, %v2005
        %2007 = vmatmul.bf16.gmra.mxu0 %v1887
        %v2008 = vpop.f32.mrf.mxu0
        %v2009 = vadd.f32 0.0, %v2008
        %v2010 = vpop.f32.mrf.mxu0
        %v2011 = vadd.f32 0.0, %v2010
        %2012 = vmatmul.bf16.gmra.mxu0 %v1886
        %v2013 = vpop.f32.mrf.mxu0
        %v2014 = vadd.f32 0.0, %v2013
        %v2015 = vpop.f32.mrf.mxu0
        %2016 = vdwg.mxu0
        %v2017 = vadd.f32 %v1826, %v1981
        %v2018 = vadd.f32 %v1849, %v2004
        %v2019 = vadd.f32 %v1828, %v1983
        %v2020 = vadd.f32 %v1851, %v2006
        %v2021 = vadd.f32 %v1831, %v1986
        %v2022 = vadd.f32 %v1854, %v2009
        %v2023 = vadd.f32 %v1833, %v1988
        %v2024 = vadd.f32 %v1856, %v2011
        %v2025 = vadd.f32 %v1836, %v1991
        %v2026 = vadd.f32 %v1859, %v2014
        %v2027 = vmax.f32 %v2017, %v2018
        %v2028 = vmax.f32 %v2019, %v2020
        %v2029 = vmax.f32 %v2021, %v2022
        %v2030 = vmax.f32 %v2023, %v2024
        %v2031 = vmax.f32 %v2025, %v2026
        %2032 = vst [vmem:[#allocation2] sm:$0xff] %v2027
        %2033 = vst [vmem:[#allocation2 + $0x8] sm:$0xff] %v2028
        %2034 = vst [vmem:[#allocation2 + $0x10] sm:$0xff] %v2029
        %2035 = vst [vmem:[#allocation2 + $0x18] sm:$0xff] %v2030
        %2036 = vst [vmem:[#allocation2 + $0x20] sm:$0x3] %v2031
        %v2037 = vld [vmem:[#allocation2] ss:$2 sm:$0xff]
        %v2038 = vld [vmem:[%s1416] ss:$2 sm:$0xff]
        %v2039 = vld [vmem:[%s1418] ss:$2 sm:$0x1]
        %v2040 = vld [vmem:[%s1424] ss:$2 sm:$0xff]
        %v2041 = vld [vmem:[%s1426] ss:$2 sm:$0xff]
        %v2042 = vld [vmem:[%s1428] ss:$2 sm:$0x1]
        %v2043 = vmax.f32 %v2037, %v2040
        %v2044 = vmax.f32 %v2038, %v2041
        %v2045 = vmax.f32 %v2039, %v2042
        %v2046 = vld [vmem:[%s4 + $0x1] sm:$0x1]
        %v2047 = vperm.slane %v2046, 0
        %v2048 = vadd.f32 %v2043, %v2047
        %v2049 = vadd.f32 %v2044, %v2047
        %v2050 = vadd.f32 %v2045, %v2047
        %v2051 = vmax.f32 %v2048, 0.0
        %v2052 = vmax.f32 %v2049, 0.0
        %v2053 = vmax.f32 %v2050, 0.0
        %v2054 = vpack.c.bf16 %v2051, %v2051
        %v2055 = vpack.c.bf16 %v2052, %v2052
        %v2056 = vpack.c.bf16 %v2053, %v2053
        %v2058 = vshrl.u32 %v2054, 16
        %v2060 = vrot.slane %v2058, 7
        %v2061 = vshll.u32 %v2054, 16
        %v2063 = vor.u32 %v2060, %v2061
        %v2064 = vrot.slane %v2060, 4
        %v2066 = vshrl.u32 %v2055, 16
        %v2068 = vrot.slane %v2066, 7
        %v2069 = vshll.u32 %v2055, 16
        %v2071 = vor.u32 %v2068, %v2069
        %v2072 = vsel %vm1458, %v2064, %v2071
        %v2073 = vrot.slane %v2068, 4
        %v2075 = vshll.u32 %v2056, 16
        %v2077 = vsel %vm1458, %v2073, %v2075
        %v2081 = vld [vmem:[#allocation4] sm:$0xf]
        %v2082 = vsel %vm1509, %v2063, %v2081
        %2083 = vst [vmem:[#allocation4] sm:$0xf] %v2082
        %2084 = vst [vmem:[#allocation4 + $0x4] sm:$0xf] %v2072
        %2085 = vst [vmem:[#allocation4 + $0x8] sm:$0x1] %v2077
        %v2086 = vld [vmem:[#allocation4] sm:$0x1]
        %v2087 = vsel %vm1518, 0, %v2086
        %2088 = vst [vmem:[#allocation4] sm:$0x1] %v2087
        %v2089 = vld [vmem:[#allocation4 + $0x8] sm:$0x1]
        %v2090 = vsel %vm1522, 0, %v2089
        %2091 = vst [vmem:[#allocation4 + $0x8] sm:$0x1] %v2090
        %v2092 = vld [vmem:[#allocation4] sm:$0xf]
        %v2093 = vld [vmem:[#allocation4 + $0x4] sm:$0xf]
        %v2094 = vld [vmem:[%s3] sm:$0xff]
        %v2095 = vld [vmem:[%s3 + $0x8] sm:$0xff]
        %v2096 = vld [vmem:[%s3 + $0x10] sm:$0xff]
        %v2097 = vld [vmem:[%s3 + $0x18] sm:$0xff]
        %v2098 = vld [vmem:[%s3 + $0x20] sm:$0xff]
        %v2099 = vld [vmem:[%s3 + $0x28] sm:$0xff]
        %v2100 = vld [vmem:[%s3 + $0x30] sm:$0xff]
        %v2101 = vld [vmem:[%s3 + $0x38] sm:$0xff]
        %v2102 = vld [vmem:[%s3 + $0x40] sm:$0xff]
        %v2103 = vld [vmem:[%s3 + $0x48] sm:$0xff]
        %v2104 = vld [vmem:[%s3 + $0x50] sm:$0xff]
        %v2105 = vld [vmem:[%s3 + $0x58] sm:$0xff]
        %v2106 = vld [vmem:[%s3 + $0x60] sm:$0xff]
        %v2107 = vld [vmem:[%s3 + $0x68] sm:$0xff]
        %v2108 = vld [vmem:[%s3 + $0x70] sm:$0xff]
        %v2109 = vld [vmem:[%s3 + $0x78] sm:$0xff]
        %v2110 = vld [vmem:[#allocation4 + $0x8] sm:$0x1]
        %s2111 = scalar_lea.vmem %s3, 128
        %v2112 = vld [vmem:[%s2111] sm:$0xff]
        %v2113 = vld [vmem:[%s2111 + $0x8] sm:$0xff]
        %v2114 = vld [vmem:[%s2111 + $0x10] sm:$0xff]
        %v2115 = vld [vmem:[%s2111 + $0x18] sm:$0xff]
        %v2116 = vld [vmem:[%s2111 + $0x20] sm:$0xff]
        %v2117 = vld [vmem:[%s2111 + $0x28] sm:$0xff]
        %v2118 = vld [vmem:[%s2111 + $0x30] sm:$0xff]
        %v2119 = vld [vmem:[%s2111 + $0x38] sm:$0xff]
        %v2120 = vld [vmem:[%s2111 + $0x40] sm:$0xff]
        %v2121 = vld [vmem:[%s2111 + $0x48] sm:$0xff]
        %v2122 = vld [vmem:[%s2111 + $0x50] sm:$0xff]
        %v2123 = vld [vmem:[%s2111 + $0x58] sm:$0xff]
        %v2124 = vld [vmem:[%s2111 + $0x60] sm:$0xff]
        %v2125 = vld [vmem:[%s2111 + $0x68] sm:$0xff]
        %v2126 = vld [vmem:[%s2111 + $0x70] sm:$0xff]
        %v2127 = vld [vmem:[%s2111 + $0x78] sm:$0xff]
        %v2131 = vunpack.c.l.b16 %v2092
        %v2132 = vunpack.c.l.b16 %v2093
        %v2133 = vunpack.c.l.b16 %v2110
        %v2134 = vpack.c.b16 %v2132, %v2131
        %v2135 = vpack.c.b16 %v2133, %v2133
        %v2137 = vshrl.u32 %v2134, 16
        %v2139 = vshll.u32 %v2134, 16
        %v2141 = vrot.slane %v2139, 1
        %v2142 = vor.u32 %v2137, %v2141
        %v2144 = vshll.u32 %v2135, 16
        %v2146 = vrot.slane %v2144, 1
        %v2147 = vsel %vm432, %v2142, %v2146
        %v2165 = vunpack.c.l.b16 %v2112
        %v2166 = vunpack.c.h.b16 %v2112
        %v2167 = vunpack.c.l.b16 %v2113
        %v2168 = vunpack.c.h.b16 %v2113
        %v2169 = vunpack.c.l.b16 %v2114
        %v2170 = vunpack.c.h.b16 %v2114
        %v2171 = vunpack.c.l.b16 %v2115
        %v2172 = vunpack.c.h.b16 %v2115
        %v2173 = vunpack.c.l.b16 %v2116
        %v2174 = vunpack.c.h.b16 %v2116
        %v2175 = vunpack.c.l.b16 %v2117
        %v2176 = vunpack.c.h.b16 %v2117
        %v2177 = vunpack.c.l.b16 %v2118
        %v2178 = vunpack.c.h.b16 %v2118
        %v2179 = vunpack.c.l.b16 %v2119
        %v2180 = vunpack.c.h.b16 %v2119
        %v2181 = vunpack.c.l.b16 %v2120
        %v2182 = vunpack.c.h.b16 %v2120
        %v2183 = vunpack.c.l.b16 %v2121
        %v2184 = vunpack.c.h.b16 %v2121
        %v2185 = vunpack.c.l.b16 %v2122
        %v2186 = vunpack.c.h.b16 %v2122
        %v2187 = vunpack.c.l.b16 %v2123
        %v2188 = vunpack.c.h.b16 %v2123
        %v2189 = vunpack.c.l.b16 %v2124
        %v2190 = vunpack.c.h.b16 %v2124
        %v2191 = vunpack.c.l.b16 %v2125
        %v2192 = vunpack.c.h.b16 %v2125
        %v2193 = vunpack.c.l.b16 %v2126
        %v2194 = vunpack.c.h.b16 %v2126
        %v2195 = vunpack.c.l.b16 %v2127
        %v2196 = vunpack.c.h.b16 %v2127
        %v2197 = vpack.c.b16 %v2167, %v2165
        %v2198 = vpack.c.b16 %v2168, %v2166
        %v2199 = vpack.c.b16 %v2171, %v2169
        %v2200 = vpack.c.b16 %v2172, %v2170
        %v2201 = vpack.c.b16 %v2175, %v2173
        %v2202 = vpack.c.b16 %v2176, %v2174
        %v2203 = vpack.c.b16 %v2179, %v2177
        %v2204 = vpack.c.b16 %v2180, %v2178
        %v2205 = vpack.c.b16 %v2183, %v2181
        %v2206 = vpack.c.b16 %v2184, %v2182
        %v2207 = vpack.c.b16 %v2187, %v2185
        %v2208 = vpack.c.b16 %v2188, %v2186
        %v2209 = vpack.c.b16 %v2191, %v2189
        %v2210 = vpack.c.b16 %v2192, %v2190
        %v2211 = vpack.c.b16 %v2195, %v2193
        %v2212 = vpack.c.b16 %v2196, %v2194
        %2229 = vmatpush.bf16.msra.mxu0 %v2211
        %2230 = vmatpush.bf16.msra.mxu0 %v2209
        %2231 = vmatpush.bf16.msra.mxu0 %v2207
        %2232 = vmatpush.bf16.msra.mxu0 %v2205
        %2233 = vmatpush.bf16.msra.mxu0 %v2203
        %2234 = vmatpush.bf16.msra.mxu0 %v2201
        %2235 = vmatpush.bf16.msra.mxu0 %v2199
        %2236 = vmatpush.bf16.msra.mxu0 %v2197
        %2237 = vmatmul.bf16.gmra.mxu0 %v2147
        %v2238 = vpop.f32.mrf.mxu0
        %v2239 = vadd.f32 0.0, %v2238
        %v2240 = vpop.f32.mrf.mxu0
        %v2241 = vadd.f32 0.0, %v2240
        %2242 = vdwg.mxu0
        %2243 = vmatpush.bf16.msra.mxu0 %v2212
        %2244 = vmatpush.bf16.msra.mxu0 %v2210
        %2245 = vmatpush.bf16.msra.mxu0 %v2208
        %2246 = vmatpush.bf16.msra.mxu0 %v2206
        %2247 = vmatpush.bf16.msra.mxu0 %v2204
        %2248 = vmatpush.bf16.msra.mxu0 %v2202
        %2249 = vmatpush.bf16.msra.mxu0 %v2200
        %2250 = vmatpush.bf16.msra.mxu0 %v2198
        %2251 = vmatmul.bf16.gmra.mxu0 %v2147
        %v2252 = vpop.f32.mrf.mxu0
        %v2253 = vadd.f32 0.0, %v2252
        %v2254 = vpop.f32.mrf.mxu0
        %v2255 = vadd.f32 0.0, %v2254
        %2256 = vdwg.mxu0
        %v2274 = vunpack.c.l.b16 %v2094
        %v2275 = vunpack.c.h.b16 %v2094
        %v2276 = vunpack.c.l.b16 %v2095
        %v2277 = vunpack.c.h.b16 %v2095
        %v2278 = vunpack.c.l.b16 %v2096
        %v2279 = vunpack.c.h.b16 %v2096
        %v2280 = vunpack.c.l.b16 %v2097
        %v2281 = vunpack.c.h.b16 %v2097
        %v2282 = vunpack.c.l.b16 %v2098
        %v2283 = vunpack.c.h.b16 %v2098
        %v2284 = vunpack.c.l.b16 %v2099
        %v2285 = vunpack.c.h.b16 %v2099
        %v2286 = vunpack.c.l.b16 %v2100
        %v2287 = vunpack.c.h.b16 %v2100
        %v2288 = vunpack.c.l.b16 %v2101
        %v2289 = vunpack.c.h.b16 %v2101
        %v2290 = vunpack.c.l.b16 %v2102
        %v2291 = vunpack.c.h.b16 %v2102
        %v2292 = vunpack.c.l.b16 %v2103
        %v2293 = vunpack.c.h.b16 %v2103
        %v2294 = vunpack.c.l.b16 %v2104
        %v2295 = vunpack.c.h.b16 %v2104
        %v2296 = vunpack.c.l.b16 %v2105
        %v2297 = vunpack.c.h.b16 %v2105
        %v2298 = vunpack.c.l.b16 %v2106
        %v2299 = vunpack.c.h.b16 %v2106
        %v2300 = vunpack.c.l.b16 %v2107
        %v2301 = vunpack.c.h.b16 %v2107
        %v2302 = vunpack.c.l.b16 %v2108
        %v2303 = vunpack.c.h.b16 %v2108
        %v2304 = vunpack.c.l.b16 %v2109
        %v2305 = vunpack.c.h.b16 %v2109
        %v2306 = vpack.c.b16 %v2276, %v2274
        %v2307 = vpack.c.b16 %v2277, %v2275
        %v2308 = vpack.c.b16 %v2280, %v2278
        %v2309 = vpack.c.b16 %v2281, %v2279
        %v2310 = vpack.c.b16 %v2284, %v2282
        %v2311 = vpack.c.b16 %v2285, %v2283
        %v2312 = vpack.c.b16 %v2288, %v2286
        %v2313 = vpack.c.b16 %v2289, %v2287
        %v2314 = vpack.c.b16 %v2292, %v2290
        %v2315 = vpack.c.b16 %v2293, %v2291
        %v2316 = vpack.c.b16 %v2296, %v2294
        %v2317 = vpack.c.b16 %v2297, %v2295
        %v2318 = vpack.c.b16 %v2300, %v2298
        %v2319 = vpack.c.b16 %v2301, %v2299
        %v2320 = vpack.c.b16 %v2304, %v2302
        %v2321 = vpack.c.b16 %v2305, %v2303
        %2338 = vmatpush.bf16.msra.mxu0 %v2320
        %2339 = vmatpush.bf16.msra.mxu0 %v2318
        %2340 = vmatpush.bf16.msra.mxu0 %v2316
        %2341 = vmatpush.bf16.msra.mxu0 %v2314
        %2342 = vmatpush.bf16.msra.mxu0 %v2312
        %2343 = vmatpush.bf16.msra.mxu0 %v2310
        %2344 = vmatpush.bf16.msra.mxu0 %v2308
        %2345 = vmatpush.bf16.msra.mxu0 %v2306
        %2346 = vmatmul.bf16.gmra.mxu0 %v2134
        %v2347 = vpop.f32.mrf.mxu0
        %v2348 = vadd.f32 %v2239, %v2347
        %v2349 = vpop.f32.mrf.mxu0
        %v2350 = vadd.f32 %v2241, %v2349
        %2351 = vdwg.mxu0
        %2352 = vmatpush.bf16.msra.mxu0 %v2321
        %2353 = vmatpush.bf16.msra.mxu0 %v2319
        %2354 = vmatpush.bf16.msra.mxu0 %v2317
        %2355 = vmatpush.bf16.msra.mxu0 %v2315
        %2356 = vmatpush.bf16.msra.mxu0 %v2313
        %2357 = vmatpush.bf16.msra.mxu0 %v2311
        %2358 = vmatpush.bf16.msra.mxu0 %v2309
        %2359 = vmatpush.bf16.msra.mxu0 %v2307
        %2360 = vmatmul.bf16.gmra.mxu0 %v2134
        %v2361 = vpop.f32.mrf.mxu0
        %v2362 = vadd.f32 %v2253, %v2361
        %v2363 = vpop.f32.mrf.mxu0
        %v2364 = vadd.f32 %v2255, %v2363
        %2365 = vdwg.mxu0
        %v2366 = vld [vmem:[#allocation4] sm:$0xe]
        %s2367 = scalar_lea.vmem %s3, 256
        %v2368 = vld [vmem:[%s2367] sm:$0xff]
        %v2369 = vld [vmem:[%s2367 + $0x8] sm:$0xff]
        %v2370 = vld [vmem:[%s2367 + $0x10] sm:$0xff]
        %v2371 = vld [vmem:[%s2367 + $0x18] sm:$0xff]
        %v2372 = vld [vmem:[%s2367 + $0x20] sm:$0xff]
        %v2373 = vld [vmem:[%s2367 + $0x28] sm:$0xff]
        %v2374 = vld [vmem:[%s2367 + $0x30] sm:$0xff]
        %v2375 = vld [vmem:[%s2367 + $0x38] sm:$0xff]
        %v2376 = vld [vmem:[%s2367 + $0x40] sm:$0xff]
        %v2377 = vld [vmem:[%s2367 + $0x48] sm:$0xff]
        %v2378 = vld [vmem:[%s2367 + $0x50] sm:$0xff]
        %v2379 = vld [vmem:[%s2367 + $0x58] sm:$0xff]
        %v2380 = vld [vmem:[%s2367 + $0x60] sm:$0xff]
        %v2381 = vld [vmem:[%s2367 + $0x68] sm:$0xff]
        %v2382 = vld [vmem:[%s2367 + $0x70] sm:$0xff]
        %v2383 = vld [vmem:[%s2367 + $0x78] sm:$0xff]
        %v2385 = vunpack.c.l.b16 %v2366
        %v2386 = vpack.c.b16 %v2132, %v2385
        %v2387 = vrot.slane %v2386, 1
        %v2388 = vrot.slane %v2135, 1
        %v2389 = vsel %vm1088, %v2387, %v2388
        %v2407 = vunpack.c.l.b16 %v2368
        %v2408 = vunpack.c.h.b16 %v2368
        %v2409 = vunpack.c.l.b16 %v2369
        %v2410 = vunpack.c.h.b16 %v2369
        %v2411 = vunpack.c.l.b16 %v2370
        %v2412 = vunpack.c.h.b16 %v2370
        %v2413 = vunpack.c.l.b16 %v2371
        %v2414 = vunpack.c.h.b16 %v2371
        %v2415 = vunpack.c.l.b16 %v2372
        %v2416 = vunpack.c.h.b16 %v2372
        %v2417 = vunpack.c.l.b16 %v2373
        %v2418 = vunpack.c.h.b16 %v2373
        %v2419 = vunpack.c.l.b16 %v2374
        %v2420 = vunpack.c.h.b16 %v2374
        %v2421 = vunpack.c.l.b16 %v2375
        %v2422 = vunpack.c.h.b16 %v2375
        %v2423 = vunpack.c.l.b16 %v2376
        %v2424 = vunpack.c.h.b16 %v2376
        %v2425 = vunpack.c.l.b16 %v2377
        %v2426 = vunpack.c.h.b16 %v2377
        %v2427 = vunpack.c.l.b16 %v2378
        %v2428 = vunpack.c.h.b16 %v2378
        %v2429 = vunpack.c.l.b16 %v2379
        %v2430 = vunpack.c.h.b16 %v2379
        %v2431 = vunpack.c.l.b16 %v2380
        %v2432 = vunpack.c.h.b16 %v2380
        %v2433 = vunpack.c.l.b16 %v2381
        %v2434 = vunpack.c.h.b16 %v2381
        %v2435 = vunpack.c.l.b16 %v2382
        %v2436 = vunpack.c.h.b16 %v2382
        %v2437 = vunpack.c.l.b16 %v2383
        %v2438 = vunpack.c.h.b16 %v2383
        %v2439 = vpack.c.b16 %v2409, %v2407
        %v2440 = vpack.c.b16 %v2410, %v2408
        %v2441 = vpack.c.b16 %v2413, %v2411
        %v2442 = vpack.c.b16 %v2414, %v2412
        %v2443 = vpack.c.b16 %v2417, %v2415
        %v2444 = vpack.c.b16 %v2418, %v2416
        %v2445 = vpack.c.b16 %v2421, %v2419
        %v2446 = vpack.c.b16 %v2422, %v2420
        %v2447 = vpack.c.b16 %v2425, %v2423
        %v2448 = vpack.c.b16 %v2426, %v2424
        %v2449 = vpack.c.b16 %v2429, %v2427
        %v2450 = vpack.c.b16 %v2430, %v2428
        %v2451 = vpack.c.b16 %v2433, %v2431
        %v2452 = vpack.c.b16 %v2434, %v2432
        %v2453 = vpack.c.b16 %v2437, %v2435
        %v2454 = vpack.c.b16 %v2438, %v2436
        %2471 = vmatpush.bf16.msra.mxu0 %v2453
        %2472 = vmatpush.bf16.msra.mxu0 %v2451
        %2473 = vmatpush.bf16.msra.mxu0 %v2449
        %2474 = vmatpush.bf16.msra.mxu0 %v2447
        %2475 = vmatpush.bf16.msra.mxu0 %v2445
        %2476 = vmatpush.bf16.msra.mxu0 %v2443
        %2477 = vmatpush.bf16.msra.mxu0 %v2441
        %2478 = vmatpush.bf16.msra.mxu0 %v2439
        %2479 = vmatmul.bf16.gmra.mxu0 %v2389
        %v2480 = vpop.f32.mrf.mxu0
        %v2481 = vadd.f32 0.0, %v2480
        %v2482 = vpop.f32.mrf.mxu0
        %v2483 = vadd.f32 0.0, %v2482
        %2484 = vdwg.mxu0
        %2485 = vmatpush.bf16.msra.mxu0 %v2454
        %2486 = vmatpush.bf16.msra.mxu0 %v2452
        %2487 = vmatpush.bf16.msra.mxu0 %v2450
        %2488 = vmatpush.bf16.msra.mxu0 %v2448
        %2489 = vmatpush.bf16.msra.mxu0 %v2446
        %2490 = vmatpush.bf16.msra.mxu0 %v2444
        %2491 = vmatpush.bf16.msra.mxu0 %v2442
        %2492 = vmatpush.bf16.msra.mxu0 %v2440
        %2493 = vmatmul.bf16.gmra.mxu0 %v2389
        %v2494 = vpop.f32.mrf.mxu0
        %v2495 = vadd.f32 0.0, %v2494
        %v2496 = vpop.f32.mrf.mxu0
        %v2497 = vadd.f32 0.0, %v2496
        %2498 = vdwg.mxu0
        %v2499 = vadd.f32 %v2348, %v2481
        %v2500 = vadd.f32 %v2362, %v2495
        %v2501 = vadd.f32 %v2350, %v2483
        %v2502 = vadd.f32 %v2364, %v2497
        %v2503 = vmax.f32 %v2499, %v2500
        %v2504 = vmax.f32 %v2501, %v2502
        %2505 = vst [vmem:[#allocation2] sm:$0xff] %v2503
        %2506 = vst [vmem:[#allocation2 + $0x8] sm:$0xff] %v2504
        %v2507 = vld [vmem:[%s4 + $0x2] sm:$0x1]
        %v2508 = vld [vmem:[#allocation2] sm:$0x1]
        %v2509 = vld [vmem:[#allocation2 + $0x1] sm:$0x1]
        %v2510 = vmax.f32 %v2508, %v2509
        %v2511 = vadd.f32 %v2510, %v2507
        %v2512 = vmax.f32 %v2511, 0.0
        %v2513 = vlaneseq
        %vm2514 = vcmp.ge.s32.totalorder %v2513, 0
        %vm2515 = vcmp.lt.s32.totalorder %v2513, 128
        %vm2516 = vmand %vm2514, %vm2515
        %2517 = vst.msk [vmem:[#allocation5] sm:$0x1] %vm2516, %v2512
        %v2518 = vld [vmem:[#allocation2 + $0x2] sm:$0x1]
        %v2519 = vld [vmem:[#allocation2 + $0x3] sm:$0x1]
        %v2520 = vmax.f32 %v2518, %v2519
        %v2521 = vadd.f32 %v2520, %v2507
        %v2522 = vmax.f32 %v2521, 0.0
        %2523 = vst.msk [vmem:[#allocation5 + $0x1] sm:$0x1] %vm2516, %v2522
        %v2524 = vld [vmem:[#allocation2 + $0x4] sm:$0x1]
        %v2525 = vld [vmem:[#allocation2 + $0x5] sm:$0x1]
        %v2526 = vmax.f32 %v2524, %v2525
        %v2527 = vadd.f32 %v2526, %v2507
        %v2528 = vmax.f32 %v2527, 0.0
        %2529 = vst.msk [vmem:[#allocation5 + $0x2] sm:$0x1] %vm2516, %v2528
        %v2530 = vld [vmem:[#allocation2 + $0x6] sm:$0x1]
        %v2531 = vld [vmem:[#allocation2 + $0x7] sm:$0x1]
        %v2532 = vmax.f32 %v2530, %v2531
        %v2533 = vadd.f32 %v2532, %v2507
        %v2534 = vmax.f32 %v2533, 0.0
        %2535 = vst.msk [vmem:[#allocation5 + $0x3] sm:$0x1] %vm2516, %v2534
        %v2536 = vld [vmem:[#allocation2 + $0x8] sm:$0x1]
        %v2537 = vld [vmem:[#allocation2 + $0x9] sm:$0x1]
        %v2538 = vmax.f32 %v2536, %v2537
        %v2539 = vadd.f32 %v2538, %v2507
        %v2540 = vmax.f32 %v2539, 0.0
        %2541 = vst.msk [vmem:[#allocation5 + $0x4] sm:$0x1] %vm2516, %v2540
        %v2542 = vld [vmem:[#allocation2 + $0xa] sm:$0x1]
        %v2543 = vld [vmem:[#allocation2 + $0xb] sm:$0x1]
        %v2544 = vmax.f32 %v2542, %v2543
        %v2545 = vadd.f32 %v2544, %v2507
        %v2546 = vmax.f32 %v2545, 0.0
        %2547 = vst.msk [vmem:[#allocation5 + $0x5] sm:$0x1] %vm2516, %v2546
        %v2548 = vld [vmem:[#allocation2 + $0xc] sm:$0x1]
        %v2549 = vld [vmem:[#allocation2 + $0xd] sm:$0x1]
        %v2550 = vmax.f32 %v2548, %v2549
        %v2551 = vadd.f32 %v2550, %v2507
        %v2552 = vmax.f32 %v2551, 0.0
        %2553 = vst.msk [vmem:[#allocation5 + $0x6] sm:$0x1] %vm2516, %v2552
        %v2554 = vld [vmem:[#allocation2 + $0xe] sm:$0x1]
        %v2555 = vld [vmem:[#allocation2 + $0xf] sm:$0x1]
        %v2556 = vmax.f32 %v2554, %v2555
        %v2557 = vadd.f32 %v2556, %v2507
        %v2558 = vmax.f32 %v2557, 0.0
        %2559 = vst.msk [vmem:[#allocation5 + $0x7] sm:$0x1] %vm2516, %v2558
        %v2560 = vld [vmem:[#allocation5] sm:$0xff]
        %v2561 = vld [vmem:[%s5] sm:$0xff]
        %v2562 = vld [vmem:[%s5 + $0x8] sm:$0xff]
        %v2563 = vld [vmem:[%s5 + $0x10] sm:$0xff]
        %v2564 = vld [vmem:[%s5 + $0x18] sm:$0xff]
        %v2565 = vld [vmem:[%s5 + $0x20] sm:$0xff]
        %v2566 = vld [vmem:[%s5 + $0x28] sm:$0xff]
        %v2567 = vld [vmem:[%s5 + $0x30] sm:$0xff]
        %v2568 = vld [vmem:[%s5 + $0x38] sm:$0xff]
        %v2569 = vld [vmem:[%s5 + $0x40] sm:$0xff]
        %v2570 = vld [vmem:[%s5 + $0x48] sm:$0xff]
        %v2571 = vld [vmem:[%s5 + $0x50] sm:$0xff]
        %v2572 = vld [vmem:[%s5 + $0x58] sm:$0xff]
        %v2573 = vld [vmem:[%s5 + $0x60] sm:$0xff]
        %v2574 = vld [vmem:[%s5 + $0x68] sm:$0xff]
        %v2575 = vld [vmem:[%s5 + $0x70] sm:$0xff]
        %v2576 = vld [vmem:[%s5 + $0x78] sm:$0xff]
        %v2577 = vld [vmem:[%s5 + $0x80] sm:$0xff]
        %v2578 = vld [vmem:[%s5 + $0x88] sm:$0xff]
        %v2579 = vld [vmem:[%s5 + $0x90] sm:$0xff]
        %v2580 = vld [vmem:[%s5 + $0x98] sm:$0xff]
        %v2581 = vld [vmem:[%s5 + $0xa0] sm:$0xff]
        %v2582 = vld [vmem:[%s5 + $0xa8] sm:$0xff]
        %v2583 = vld [vmem:[%s5 + $0xb0] sm:$0xff]
        %v2584 = vld [vmem:[%s5 + $0xb8] sm:$0xff]
        %v2585 = vld [vmem:[%s5 + $0xc0] sm:$0xff]
        %v2586 = vld [vmem:[%s5 + $0xc8] sm:$0xff]
        %v2587 = vld [vmem:[%s5 + $0xd0] sm:$0xff]
        %v2588 = vld [vmem:[%s5 + $0xd8] sm:$0xff]
        %v2589 = vld [vmem:[%s5 + $0xe0] sm:$0xff]
        %v2590 = vld [vmem:[%s5 + $0xe8] sm:$0xff]
        %v2591 = vld [vmem:[%s5 + $0xf0] sm:$0xff]
        %v2592 = vld [vmem:[%s5 + $0xf8] sm:$0xff]
        %v2593 = vld [vmem:[%s5 + $0x100] sm:$0xff]
        %v2594 = vld [vmem:[%s5 + $0x108] sm:$0xff]
        %v2595 = vld [vmem:[%s5 + $0x110] sm:$0xff]
        %v2596 = vld [vmem:[%s5 + $0x118] sm:$0xff]
        %v2597 = vld [vmem:[%s5 + $0x120] sm:$0xff]
        %v2598 = vld [vmem:[%s5 + $0x128] sm:$0xff]
        %v2599 = vld [vmem:[%s5 + $0x130] sm:$0xff]
        %v2600 = vld [vmem:[%s5 + $0x138] sm:$0xff]
        %v2601 = vld [vmem:[%s5 + $0x140] sm:$0xff]
        %v2602 = vld [vmem:[%s5 + $0x148] sm:$0xff]
        %v2603 = vld [vmem:[%s5 + $0x150] sm:$0xff]
        %v2604 = vld [vmem:[%s5 + $0x158] sm:$0xff]
        %v2605 = vld [vmem:[%s5 + $0x160] sm:$0xff]
        %v2606 = vld [vmem:[%s5 + $0x168] sm:$0xff]
        %v2607 = vld [vmem:[%s5 + $0x170] sm:$0xff]
        %v2608 = vld [vmem:[%s5 + $0x178] sm:$0xff]
        %v2609 = vld [vmem:[%s5 + $0x180] sm:$0xff]
        %v2610 = vld [vmem:[%s5 + $0x188] sm:$0xff]
        %v2611 = vld [vmem:[%s5 + $0x190] sm:$0xff]
        %v2612 = vld [vmem:[%s5 + $0x198] sm:$0xff]
        %v2613 = vld [vmem:[%s5 + $0x1a0] sm:$0xff]
        %v2614 = vld [vmem:[%s5 + $0x1a8] sm:$0xff]
        %v2615 = vld [vmem:[%s5 + $0x1b0] sm:$0xff]
        %v2616 = vld [vmem:[%s5 + $0x1b8] sm:$0xff]
        %v2617 = vld [vmem:[%s5 + $0x1c0] sm:$0xff]
        %v2618 = vld [vmem:[%s5 + $0x1c8] sm:$0xff]
        %v2619 = vld [vmem:[%s5 + $0x1d0] sm:$0xff]
        %v2620 = vld [vmem:[%s5 + $0x1d8] sm:$0xff]
        %v2621 = vld [vmem:[%s5 + $0x1e0] sm:$0xff]
        %v2622 = vld [vmem:[%s5 + $0x1e8] sm:$0xff]
        %v2623 = vld [vmem:[%s5 + $0x1f0] sm:$0xff]
        %v2624 = vld [vmem:[%s5 + $0x1f8] sm:$0xff]
        %v2625 = vld [vmem:[%s5 + $0x200] sm:$0xff]
        %v2626 = vld [vmem:[%s5 + $0x208] sm:$0xff]
        %v2627 = vld [vmem:[%s5 + $0x210] sm:$0xff]
        %v2628 = vld [vmem:[%s5 + $0x218] sm:$0xff]
        %v2629 = vld [vmem:[%s5 + $0x220] sm:$0xff]
        %v2630 = vld [vmem:[%s5 + $0x228] sm:$0xff]
        %v2631 = vld [vmem:[%s5 + $0x230] sm:$0xff]
        %v2632 = vld [vmem:[%s5 + $0x238] sm:$0xff]
        %v2633 = vld [vmem:[%s5 + $0x240] sm:$0xff]
        %v2634 = vld [vmem:[%s5 + $0x248] sm:$0xff]
        %v2635 = vld [vmem:[%s5 + $0x250] sm:$0xff]
        %v2636 = vld [vmem:[%s5 + $0x258] sm:$0xff]
        %v2637 = vld [vmem:[%s5 + $0x260] sm:$0xff]
        %v2638 = vld [vmem:[%s5 + $0x268] sm:$0xff]
        %v2639 = vld [vmem:[%s5 + $0x270] sm:$0xff]
        %v2640 = vld [vmem:[%s5 + $0x278] sm:$0xff]
        %v2641 = vld [vmem:[%s5 + $0x280] sm:$0xff]
        %v2642 = vld [vmem:[%s5 + $0x288] sm:$0xff]
        %v2643 = vld [vmem:[%s5 + $0x290] sm:$0xff]
        %v2644 = vld [vmem:[%s5 + $0x298] sm:$0xff]
        %v2645 = vld [vmem:[%s5 + $0x2a0] sm:$0xff]
        %v2646 = vld [vmem:[%s5 + $0x2a8] sm:$0xff]
        %v2647 = vld [vmem:[%s5 + $0x2b0] sm:$0xff]
        %v2648 = vld [vmem:[%s5 + $0x2b8] sm:$0xff]
        %v2649 = vld [vmem:[%s5 + $0x2c0] sm:$0xff]
        %v2650 = vld [vmem:[%s5 + $0x2c8] sm:$0xff]
        %v2651 = vld [vmem:[%s5 + $0x2d0] sm:$0xff]
        %v2652 = vld [vmem:[%s5 + $0x2d8] sm:$0xff]
        %v2653 = vld [vmem:[%s5 + $0x2e0] sm:$0xff]
        %v2654 = vld [vmem:[%s5 + $0x2e8] sm:$0xff]
        %v2655 = vld [vmem:[%s5 + $0x2f0] sm:$0xff]
        %v2656 = vld [vmem:[%s5 + $0x2f8] sm:$0xff]
        %v2657 = vld [vmem:[%s5 + $0x300] sm:$0xff]
        %v2658 = vld [vmem:[%s5 + $0x308] sm:$0xff]
        %v2659 = vld [vmem:[%s5 + $0x310] sm:$0xff]
        %v2660 = vld [vmem:[%s5 + $0x318] sm:$0xff]
        %v2661 = vld [vmem:[%s5 + $0x320] sm:$0xff]
        %v2662 = vld [vmem:[%s5 + $0x328] sm:$0xff]
        %v2663 = vld [vmem:[%s5 + $0x330] sm:$0xff]
        %v2664 = vld [vmem:[%s5 + $0x338] sm:$0xff]
        %v2665 = vld [vmem:[%s5 + $0x340] sm:$0xff]
        %v2666 = vld [vmem:[%s5 + $0x348] sm:$0xff]
        %v2667 = vld [vmem:[%s5 + $0x350] sm:$0xff]
        %v2668 = vld [vmem:[%s5 + $0x358] sm:$0xff]
        %v2669 = vld [vmem:[%s5 + $0x360] sm:$0xff]
        %v2670 = vld [vmem:[%s5 + $0x368] sm:$0xff]
        %v2671 = vld [vmem:[%s5 + $0x370] sm:$0xff]
        %v2672 = vld [vmem:[%s5 + $0x378] sm:$0xff]
        %v2673 = vld [vmem:[%s5 + $0x380] sm:$0xff]
        %v2674 = vld [vmem:[%s5 + $0x388] sm:$0xff]
        %v2675 = vld [vmem:[%s5 + $0x390] sm:$0xff]
        %v2676 = vld [vmem:[%s5 + $0x398] sm:$0xff]
        %v2677 = vld [vmem:[%s5 + $0x3a0] sm:$0xff]
        %v2678 = vld [vmem:[%s5 + $0x3a8] sm:$0xff]
        %v2679 = vld [vmem:[%s5 + $0x3b0] sm:$0xff]
        %v2680 = vld [vmem:[%s5 + $0x3b8] sm:$0xff]
        %v2681 = vld [vmem:[%s5 + $0x3c0] sm:$0xff]
        %v2682 = vld [vmem:[%s5 + $0x3c8] sm:$0xff]
        %v2683 = vld [vmem:[%s5 + $0x3d0] sm:$0xff]
        %v2684 = vld [vmem:[%s5 + $0x3d8] sm:$0xff]
        %v2685 = vld [vmem:[%s5 + $0x3e0] sm:$0xff]
        %v2686 = vld [vmem:[%s5 + $0x3e8] sm:$0xff]
        %v2687 = vld [vmem:[%s5 + $0x3f0] sm:$0xff]
        %v2688 = vld [vmem:[%s5 + $0x3f8] sm:$0xff]
        %v2689 = vld [vmem:[%s6] sm:$0x1]
        %v2691 = vperm.slane %v2560, 0
        %v2692 = vperm.slane %v2560, 1
        %v2693 = vperm.slane %v2560, 2
        %v2694 = vperm.slane %v2560, 3
        %v2695 = vperm.slane %v2560, 4
        %v2696 = vperm.slane %v2560, 5
        %v2697 = vperm.slane %v2560, 6
        %v2698 = vperm.slane %v2560, 7
        %2707 = vmatpush.msra.mxu0 %v2576
        %2708 = vmatpush.msra.mxu0 %v2575
        %2709 = vmatpush.msra.mxu0 %v2574
        %2710 = vmatpush.msra.mxu0 %v2573
        %2711 = vmatpush.msra.mxu0 %v2572
        %2712 = vmatpush.msra.mxu0 %v2571
        %2713 = vmatpush.msra.mxu0 %v2570
        %2714 = vmatpush.msra.mxu0 %v2569
        %2715 = vmatpush.msra.mxu0 %v2568
        %2716 = vmatpush.msra.mxu0 %v2567
        %2717 = vmatpush.msra.mxu0 %v2566
        %2718 = vmatpush.msra.mxu0 %v2565
        %2719 = vmatpush.msra.mxu0 %v2564
        %2720 = vmatpush.msra.mxu0 %v2563
        %2721 = vmatpush.msra.mxu0 %v2562
        %2722 = vmatpush.msra.mxu0 %v2561
        %2723 = vmatmul.f32.gmra.mxu0 %v2691
        %v2724 = vpop.f32.mrf.mxu0
        %v2725 = vadd.f32 %v2689, %v2724
        %2726 = vdwg.mxu0
        %2727 = vmatpush.msra.mxu0 %v2592
        %2728 = vmatpush.msra.mxu0 %v2591
        %2729 = vmatpush.msra.mxu0 %v2590
        %2730 = vmatpush.msra.mxu0 %v2589
        %2731 = vmatpush.msra.mxu0 %v2588
        %2732 = vmatpush.msra.mxu0 %v2587
        %2733 = vmatpush.msra.mxu0 %v2586
        %2734 = vmatpush.msra.mxu0 %v2585
        %2735 = vmatpush.msra.mxu0 %v2584
        %2736 = vmatpush.msra.mxu0 %v2583
        %2737 = vmatpush.msra.mxu0 %v2582
        %2738 = vmatpush.msra.mxu0 %v2581
        %2739 = vmatpush.msra.mxu0 %v2580
        %2740 = vmatpush.msra.mxu0 %v2579
        %2741 = vmatpush.msra.mxu0 %v2578
        %2742 = vmatpush.msra.mxu0 %v2577
        %2743 = vmatmul.f32.gmra.mxu0 %v2692
        %v2744 = vpop.f32.mrf.mxu0
        %v2745 = vadd.f32 %v2725, %v2744
        %2746 = vdwg.mxu0
        %2747 = vmatpush.msra.mxu0 %v2608
        %2748 = vmatpush.msra.mxu0 %v2607
        %2749 = vmatpush.msra.mxu0 %v2606
        %2750 = vmatpush.msra.mxu0 %v2605
        %2751 = vmatpush.msra.mxu0 %v2604
        %2752 = vmatpush.msra.mxu0 %v2603
        %2753 = vmatpush.msra.mxu0 %v2602
        %2754 = vmatpush.msra.mxu0 %v2601
        %2755 = vmatpush.msra.mxu0 %v2600
        %2756 = vmatpush.msra.mxu0 %v2599
        %2757 = vmatpush.msra.mxu0 %v2598
        %2758 = vmatpush.msra.mxu0 %v2597
        %2759 = vmatpush.msra.mxu0 %v2596
        %2760 = vmatpush.msra.mxu0 %v2595
        %2761 = vmatpush.msra.mxu0 %v2594
        %2762 = vmatpush.msra.mxu0 %v2593
        %2763 = vmatmul.f32.gmra.mxu0 %v2693
        %v2764 = vpop.f32.mrf.mxu0
        %v2765 = vadd.f32 %v2745, %v2764
        %2766 = vdwg.mxu0
        %2767 = vmatpush.msra.mxu0 %v2624
        %2768 = vmatpush.msra.mxu0 %v2623
        %2769 = vmatpush.msra.mxu0 %v2622
        %2770 = vmatpush.msra.mxu0 %v2621
        %2771 = vmatpush.msra.mxu0 %v2620
        %2772 = vmatpush.msra.mxu0 %v2619
        %2773 = vmatpush.msra.mxu0 %v2618
        %2774 = vmatpush.msra.mxu0 %v2617
        %2775 = vmatpush.msra.mxu0 %v2616
        %2776 = vmatpush.msra.mxu0 %v2615
        %2777 = vmatpush.msra.mxu0 %v2614
        %2778 = vmatpush.msra.mxu0 %v2613
        %2779 = vmatpush.msra.mxu0 %v2612
        %2780 = vmatpush.msra.mxu0 %v2611
        %2781 = vmatpush.msra.mxu0 %v2610
        %2782 = vmatpush.msra.mxu0 %v2609
        %2783 = vmatmul.f32.gmra.mxu0 %v2694
        %v2784 = vpop.f32.mrf.mxu0
        %v2785 = vadd.f32 %v2765, %v2784
        %2786 = vdwg.mxu0
        %2787 = vmatpush.msra.mxu0 %v2640
        %2788 = vmatpush.msra.mxu0 %v2639
        %2789 = vmatpush.msra.mxu0 %v2638
        %2790 = vmatpush.msra.mxu0 %v2637
        %2791 = vmatpush.msra.mxu0 %v2636
        %2792 = vmatpush.msra.mxu0 %v2635
        %2793 = vmatpush.msra.mxu0 %v2634
        %2794 = vmatpush.msra.mxu0 %v2633
        %2795 = vmatpush.msra.mxu0 %v2632
        %2796 = vmatpush.msra.mxu0 %v2631
        %2797 = vmatpush.msra.mxu0 %v2630
        %2798 = vmatpush.msra.mxu0 %v2629
        %2799 = vmatpush.msra.mxu0 %v2628
        %2800 = vmatpush.msra.mxu0 %v2627
        %2801 = vmatpush.msra.mxu0 %v2626
        %2802 = vmatpush.msra.mxu0 %v2625
        %2803 = vmatmul.f32.gmra.mxu0 %v2695
        %v2804 = vpop.f32.mrf.mxu0
        %v2805 = vadd.f32 %v2785, %v2804
        %2806 = vdwg.mxu0
        %2807 = vmatpush.msra.mxu0 %v2656
        %2808 = vmatpush.msra.mxu0 %v2655
        %2809 = vmatpush.msra.mxu0 %v2654
        %2810 = vmatpush.msra.mxu0 %v2653
        %2811 = vmatpush.msra.mxu0 %v2652
        %2812 = vmatpush.msra.mxu0 %v2651
        %2813 = vmatpush.msra.mxu0 %v2650
        %2814 = vmatpush.msra.mxu0 %v2649
        %2815 = vmatpush.msra.mxu0 %v2648
        %2816 = vmatpush.msra.mxu0 %v2647
        %2817 = vmatpush.msra.mxu0 %v2646
        %2818 = vmatpush.msra.mxu0 %v2645
        %2819 = vmatpush.msra.mxu0 %v2644
        %2820 = vmatpush.msra.mxu0 %v2643
        %2821 = vmatpush.msra.mxu0 %v2642
        %2822 = vmatpush.msra.mxu0 %v2641
        %2823 = vmatmul.f32.gmra.mxu0 %v2696
        %v2824 = vpop.f32.mrf.mxu0
        %v2825 = vadd.f32 %v2805, %v2824
        %2826 = vdwg.mxu0
        %2827 = vmatpush.msra.mxu0 %v2672
        %2828 = vmatpush.msra.mxu0 %v2671
        %2829 = vmatpush.msra.mxu0 %v2670
        %2830 = vmatpush.msra.mxu0 %v2669
        %2831 = vmatpush.msra.mxu0 %v2668
        %2832 = vmatpush.msra.mxu0 %v2667
        %2833 = vmatpush.msra.mxu0 %v2666
        %2834 = vmatpush.msra.mxu0 %v2665
        %2835 = vmatpush.msra.mxu0 %v2664
        %2836 = vmatpush.msra.mxu0 %v2663
        %2837 = vmatpush.msra.mxu0 %v2662
        %2838 = vmatpush.msra.mxu0 %v2661
        %2839 = vmatpush.msra.mxu0 %v2660
        %2840 = vmatpush.msra.mxu0 %v2659
        %2841 = vmatpush.msra.mxu0 %v2658
        %2842 = vmatpush.msra.mxu0 %v2657
        %2843 = vmatmul.f32.gmra.mxu0 %v2697
        %v2844 = vpop.f32.mrf.mxu0
        %v2845 = vadd.f32 %v2825, %v2844
        %2846 = vdwg.mxu0
        %2847 = vmatpush.msra.mxu0 %v2688
        %2848 = vmatpush.msra.mxu0 %v2687
        %2849 = vmatpush.msra.mxu0 %v2686
        %2850 = vmatpush.msra.mxu0 %v2685
        %2851 = vmatpush.msra.mxu0 %v2684
        %2852 = vmatpush.msra.mxu0 %v2683
        %2853 = vmatpush.msra.mxu0 %v2682
        %2854 = vmatpush.msra.mxu0 %v2681
        %2855 = vmatpush.msra.mxu0 %v2680
        %2856 = vmatpush.msra.mxu0 %v2679
        %2857 = vmatpush.msra.mxu0 %v2678
        %2858 = vmatpush.msra.mxu0 %v2677
        %2859 = vmatpush.msra.mxu0 %v2676
        %2860 = vmatpush.msra.mxu0 %v2675
        %2861 = vmatpush.msra.mxu0 %v2674
        %2862 = vmatpush.msra.mxu0 %v2673
        %2863 = vmatmul.f32.gmra.mxu0 %v2698
        %v2864 = vpop.f32.mrf.mxu0
        %v2865 = vadd.f32 %v2845, %v2864
        %2866 = vdwg.mxu0
        %v2867 = vmax.f32 %v2865, 0.0
        %v2868 = vld [vmem:[%s7] sm:$0xff]
        %v2869 = vld [vmem:[%s7 + $0x8] sm:$0xff]
        %v2870 = vld [vmem:[%s8] sm:$0x1]
        %vm2871 = vcmask 130048
        %v2873 = vsel %vm2871, %v2867, 0
        %2875 = vmatpush.msra.mxu0 0.0
        %2876 = vmatpush.msra.mxu0 0.0
        %2877 = vmatpush.msra.mxu0 0.0
        %2878 = vmatpush.msra.mxu0 0.0
        %2879 = vmatpush.msra.mxu0 0.0
        %2880 = vmatpush.msra.mxu0 0.0
        %2881 = vmatpush.msra.mxu0 0.0
        %2882 = vmatpush.msra.mxu0 0.0
        %2883 = vmatpush.msra.mxu0 0.0
        %2884 = vmatpush.msra.mxu0 0.0
        %2885 = vmatpush.msra.mxu0 0.0
        %2886 = vmatpush.msra.mxu0 0.0
        %2887 = vmatpush.msra.mxu0 0.0
        %2888 = vmatpush.msra.mxu0 0.0
        %2889 = vmatpush.msra.mxu0 %v2869
        %2890 = vmatpush.msra.mxu0 %v2868
        %2891 = vmatmul.f32.gmra.mxu0 %v2873
        %v2892 = vpop.f32.mrf.mxu0
        %v2893 = vadd.f32 %v2870, %v2892
        %2894 = vdwg.mxu0
        %vm2895 = vcmask 40960
        %v2896 = vsel %vm2895, %v2893, -inf
        %2897 = vmax.xlane.f32.xlu0 %v2896
        %v2898 = vpop.xlane.xlu0 %2897
        %v2899 = vsub.f32 %v2893, %v2898
        %v2900 = vmul.f32 %v2899, 1.442695
        %v2901 = vpow.pop %v2900
        %v2902 = vsel %vm2895, %v2901, 0.0
        %2903 = vadd.xlane.f32.xlu0 %v2902
        %v2904 = vpop.xlane.xlu0 %2903
        %v2905 = vlog2.pop %v2904
        %v2906 = vmul.f32 %v2905, 0.6931472
        %v2907 = vsub.f32 %v2899, %v2906
        %2908 = vst.msk [vmem:[%s327] sm:$0x1] %vm2895, %v2907
        %s2909 = sand.u32 %s225, 1
        %s2910 = scalar_lea.sflag [#allocation7], %s2909
        %s2911 = sand.u32 %s225, 1
        %s2912 = scalar_lea.vmem [#allocation6], %s2911
        // Predicated region
        $region57: #{net_forward.1} parent=55 // pred_check
          %p2913 = pneg %p235
        $region58: #{net_forward.1} parent=55 // pred_check_branch
          %2915 = sbr.rel (%p2913) target = $region60
        $region59: #{net_forward.1} parent=55 // pred_region
          %2917 = vsyncadd %s2910, 0
          %s2918 = scalar_lea.hbm %s9, %s23
          %s2920 = sshll.u32 %s2912, 4
          %s2921 = int_to_ptr.vmem [resolvable:$true] %s2920
          %s2922 = sshll.u32 %s2918, 4
          %s2923 = int_to_ptr.hbm [resolvable:$true] %s2922
          %2925 = dma.vmem_to_hbm [thread:$0]  %s2921, 16, %s2923, %s2910
        $region60: #{net_forward.1} parent=55 // pred_fallthru
          _
      $region56: #{net_forward.1} parent=5 // pred_fallthru
        _
      %p2926 = scmp.le.s32.totalorder 2, %s18
      // Predicated region
      $region61: #{net_forward.1} parent=5 // pred_check
        %p2927 = pneg %p2926
      $region62: #{net_forward.1} parent=5 // pred_check_branch
        %2929 = sbr.rel (%p2927) target = $region64
      $region63: #{net_forward.1} parent=5 // pred_region
        %s2930 = ssub.s32 %s18, 2
        // Predicated region
        $region65: #{net_forward.1} parent=63 // pred_check
          %p2931 = pneg %p241
        $region66: #{net_forward.1} parent=63 // pred_check_branch
          %2933 = sbr.rel (%p2931) target = $region68
        $region67: #{net_forward.1} parent=63 // pred_region
          %s2934 = sand.u32 %s226, 1
          %s2935 = scalar_lea.sflag [#allocation7], %s2934
          %s2936 = sand.u32 %s226, 1
          %s2937 = scalar_lea.vmem [#allocation6], %s2936
          %2939 = dma.done %s2935, 16
        $region68: #{net_forward.1} parent=63 // pred_fallthru
          _
      $region64: #{net_forward.1} parent=5 // pred_fallthru
        _
    $region6: #{net_forward.1} parent=1 // loop_footer
      %s22 = sadd.s32 1, %s18
    $region7: #{net_forward.1} parent=1 // loop_footer_branch
      %17 = sbr.rel target = $region3
    $region8: #{net_forward.1} parent=1 // loop_exit
      _
    %2940 = vsyncpa [#allocation7], 1
    %s2941 = scalar_lea.sflag [#allocation7], 1
    %2942 = vsyncpa %s2941, 1

</llo_original>
